<compile_context>
chip_gen: v6e
topology: v6e:2x2x1
jax: 0.10.0
libtpu: 0.0.40
codegen_flags: <defaults>
</compile_context>

<pallas_src>
import functools

import numpy as np
import jax
import jax.numpy as jnp
from jax.experimental import pallas as pl
from jax.experimental.pallas import tpu as pltpu

# ----------------------------- config -------------------------------------
PATCH = 4
D_MODEL = 32
N_HEADS = 2
HEAD_DIM = D_MODEL // N_HEADS
MLP_DIM = 4 * D_MODEL
N_CLS = 4
ENC_LAYERS = 2
DEC_LAYERS = 1
LN_EPS = 1e-6
ATTN_SCALE = HEAD_DIM ** -0.5

_BBLK_ROWS = 40                      # per-block rows in slab_b (32 weights + 1 bias, 8-aligned)
_CB = MLP_DIM + 3 * D_MODEL          # 224 lanes: [fc1 (128) | qkv (96)]
_MXU_DTYPE = jnp.bfloat16            # matmul-operand dtype (accumulation stays f32)


# ----------------------------- in-kernel helpers ---------------------------
def _mm(a, b):
    return jnp.dot(a.astype(_MXU_DTYPE), b.astype(_MXU_DTYPE),
                   preferred_element_type=jnp.float32)


def _mm_nt(a, b):
    # a @ b.T without materializing the transpose (contract last dims of both).
    return jax.lax.dot_general(a.astype(_MXU_DTYPE), b.astype(_MXU_DTYPE),
                               (((1,), (1,)), ((), ())),
                               preferred_element_type=jnp.float32)


def _norm(x, eps=LN_EPS):
    # LayerNorm without affine (gamma/beta folded into the following matmul).
    mu = jnp.mean(x, axis=-1, keepdims=True)
    xc = x - mu
    var = jnp.mean(xc * xc, axis=-1, keepdims=True)
    return xc * jax.lax.rsqrt(var + eps)


def _block_fwd(x, blk_i, A, b_ref, b_local, n_tok):
    """Pre-norm transformer block on a row-stacked (b_local*n_tok, D) slab."""
    base = blk_i * _BBLK_ROWS
    fc1_w = b_ref[base:base + D_MODEL, 0:MLP_DIM]
    qkv_w = b_ref[base:base + D_MODEL, MLP_DIM:_CB]
    fc1_b = b_ref[base + D_MODEL:base + D_MODEL + 1, 0:MLP_DIM]
    qkv_b = b_ref[base + D_MODEL:base + D_MODEL + 1, MLP_DIM:_CB]

    # ---- attention (LN1 affine + softmax scale already folded into qkv_w/qkv_b) ----
    h = _norm(x)
    qkv = _mm(h, qkv_w) + qkv_b                       # one fused (R,32)@(32,96) matmul
    attn_pieces = []
    for b in range(b_local):                          # only attention is per-image
        r0 = b * n_tok
        heads = []
        for hh in range(N_HEADS):
            q = qkv[r0:r0 + n_tok, hh * HEAD_DIM:(hh + 1) * HEAD_DIM]
            k = qkv[r0:r0 + n_tok, D_MODEL + hh * HEAD_DIM:D_MODEL + (hh + 1) * HEAD_DIM]
            v = qkv[r0:r0 + n_tok, 2 * D_MODEL + hh * HEAD_DIM:2 * D_MODEL + (hh + 1) * HEAD_DIM]
            s = _mm_nt(q, k)                          # (n_tok, n_tok); scale folded into q
            s = s - jnp.max(s, axis=-1, keepdims=True)
            e = jnp.exp(s)
            p = e * pl.reciprocal(jnp.sum(e, axis=-1, keepdims=True), approx=True)
            heads.append(_mm(p, v))                   # (n_tok, HEAD_DIM)
        attn_pieces.append(heads[0] if N_HEADS == 1
                           else jnp.concatenate(heads, axis=-1))
    attn = attn_pieces[0] if b_local == 1 else jnp.concatenate(attn_pieces, axis=0)
    x = x + _mm(attn, A(f"blk{blk_i}_proj_w")) + A(f"blk{blk_i}_proj_b")

    # ---- MLP (LN2 affine folded into fc1_w/fc1_b) ----
    h = _norm(x)
    # TODO(synk): PyTorch nn.GELU() is exact erf-GELU; tanh approximation used
    # here for Mosaic-safe lowering (~1e-3 per-element difference).
    h = jax.nn.gelu(_mm(h, fc1_w) + fc1_b, approximate=True)
    h = _mm(h, A(f"blk{blk_i}_fc2_w")) + A(f"blk{blk_i}_fc2_b")
    return x + h


# ----------------------------- fused kernel --------------------------------
def _segmenter_kernel(tok_ref, a_ref, b_ref, mgb_ref, kt_ref, out_ref, *,
                      offs, b_local, n_patches, n_enc, n_dec):
    def A(name):                      # static, 8-row-aligned view into the packed slab
        o, r = offs[name]
        return a_ref[o:o + r, :]

    n_e = n_patches + 1               # encoder tokens per image (cls token last)
    n_d = n_patches + N_CLS           # decoder tokens per image

    # ----- encoder: patch-embed (+bias +cls via augmented matmul) + pos -----
    pos = A("pos")
    xs = [_mm(tok_ref[b], A("w_emb")) + pos for b in range(b_local)]
    x = xs[0] if b_local == 1 else jnp.concatenate(xs, axis=0)   # (b_local*n_e, D)

    for i in range(n_enc):
        x = _block_fwd(x, i, A, b_ref, b_local, n_e)

    x = _norm(x)                      # encoder final LN (affine folded into proj_dec)

    # ----- decoder (MaskTransformer) -----
    y = _mm(x, A("proj_dec_w")) + A("proj_dec_b")     # row-parallel; cls rows unused
    cls_emb = A("cls_emb")
    pieces = []
    for b in range(b_local):
        pieces.append(y[b * n_e:b * n_e + n_patches, :])
        pieces.append(cls_emb)
    xd = jnp.concatenate(pieces, axis=0)              # (b_local*n_d, D)

    for i in range(n_dec):
        xd = _block_fwd(xd, n_enc + i, A, b_ref, b_local, n_d)

    xd = _norm(xd)                    # decoder final LN (affine folded into projections)

    pf = _mm(xd, A("proj_patch")) + A("bias_patch")
    cf = _mm(xd, A("proj_classes")) + A("bias_classes")
    pf = pf * jax.lax.rsqrt(jnp.sum(pf * pf, axis=-1, keepdims=True))
    cf = cf * jax.lax.rsqrt(jnp.sum(cf * cf, axis=-1, keepdims=True))

    mg = mgb_ref[0:N_CLS, :]          # (N_CLS, 1) mask-LN gamma
    mb = mgb_ref[N_CLS:2 * N_CLS, :]  # (N_CLS, 1) mask-LN beta
    kt = kt_ref[...]
    for b in range(b_local):
        p_b = pf[b * n_d:b * n_d + n_patches, :]
        c_b = cf[b * n_d + n_patches:(b + 1) * n_d, :]
        m = _mm_nt(c_b, p_b)                          # (N_CLS, Np), class-major
        mu = jnp.mean(m, axis=0, keepdims=True)       # LayerNorm over the class axis
        mc = m - mu
        var = jnp.mean(mc * mc, axis=0, keepdims=True)
        m = mc * jax.lax.rsqrt(var + LN_EPS) * mg + mb
        out_ref[b] = _mm(m, kt)                       # fused bilinear upsample -> (N_CLS, H*W)


# ----------------------------- wrapper-side prep ---------------------------
def _round_up(x, m):
    return ((x + m - 1) // m) * m


def _interp_matrix(in_size, out_size):
    # F.interpolate(mode='bilinear', align_corners=False) as a dense (out, in) matrix.
    M = np.zeros((out_size, in_size), dtype=np.float32)
    scale = in_size / out_size
    for i in range(out_size):
        src = max((i + 0.5) * scale - 0.5, 0.0)
        i0 = min(int(np.floor(src)), in_size - 1)
        i1 = min(i0 + 1, in_size - 1)
        l1 = min(max(src - i0, 0.0), 1.0)
        M[i, i0] += 1.0 - l1
        M[i, i1] += l1
    return M


def _fold_block(bp):
    """Fold LN1/LN2 affine and the attention scale into the block weights."""
    f32 = jnp.float32
    g1 = bp["n1_g"].astype(f32); b1 = bp["n1_b"].astype(f32)
    g2 = bp["n2_g"].astype(f32); b2 = bp["n2_b"].astype(f32)
    Wqkv = bp["qkv_w"].astype(f32); bqkv = bp["qkv_b"].astype(f32)
    W1 = bp["fc1_w"].astype(f32); bfc1 = bp["fc1_b"].astype(f32)

    qkv_w = g1[:, None] * Wqkv
    qkv_b = b1 @ Wqkv + bqkv
    qkv_w = qkv_w.at[:, :D_MODEL].multiply(ATTN_SCALE)   # fold softmax scale into q
    qkv_b = qkv_b.at[:D_MODEL].multiply(ATTN_SCALE)

    fc1_w = g2[:, None] * W1
    fc1_b = b2 @ W1 + bfc1

    return dict(
        qkv_w=qkv_w, qkv_b=qkv_b.reshape(1, -1),
        fc1_w=fc1_w, fc1_b=fc1_b.reshape(1, -1),
        proj_w=bp["proj_w"].astype(f32), proj_b=bp["proj_b"].reshape(1, -1).astype(f32),
        fc2_w=bp["fc2_w"].astype(f32), fc2_b=bp["fc2_b"].reshape(1, -1).astype(f32),
    )


def _pack_block_b(fold):
    w = jnp.concatenate([fold["fc1_w"], fold["qkv_w"]], axis=1)            # (32, 224)
    b = jnp.concatenate([fold["fc1_b"], fold["qkv_b"]], axis=1)            # (1, 224)
    pad = jnp.zeros((_BBLK_ROWS - D_MODEL - 1, _CB), jnp.float32)
    return jnp.concatenate([w, b, pad], axis=0)                            # (40, 224)


def _build_slab(entries):
    """Row-stack (name, (r, 32)) arrays, padding each to 8 rows; return slab + offsets."""
    offs, parts, cur = {}, [], 0
    for name, a in entries:
        a = a.astype(jnp.float32)
        offs[name] = (cur, a.shape[0])
        pad = (-a.shape[0]) % 8
        if pad:
            a = jnp.concatenate([a, jnp.zeros((pad, a.shape[1]), jnp.float32)], axis=0)
        parts.append(a)
        cur += a.shape[0]
    return jnp.concatenate(parts, axis=0), offs


def _images_per_step(batch):
    # Single-TC v5e/v6e: fold the whole batch into one grid step (row-stacked).
    # Dual-TC v7x: split the batch across grid steps so each TensorCore gets half.
    try:
        kind = jax.devices()[0].device_kind.lower()
    except Exception:
        kind = ""
    if ("v7" in kind or "tpu7" in kind) and batch % 2 == 0:
        return batch // 2
    return batch


def padding(im, patch_size):
    H, W = im.shape[2], im.shape[3]
    pad_h = (patch_size - H % patch_size) % patch_size
    pad_w = (patch_size - W % patch_size) % patch_size
    return jnp.pad(im, ((0, 0), (0, 0), (0, pad_h), (0, pad_w)))


def segmenter_forward(params, im):
    B, C, H_ori, W_ori = im.shape
    im = padding(im, PATCH)
    H, W = im.shape[2], im.shape[3]
    gs_h, gs_w = H // PATCH, W // PATCH
    n_patches = gs_h * gs_w
    n_enc_tok = n_patches + 1
    cpp = C * PATCH * PATCH
    feat = cpp + 2
    f_pad = _round_up(feat, 64)          # lane-friendly token feature width
    hw = H * W

    b_local = _images_per_step(B)
    n_steps = B // b_local

    # ---- pure-layout XLA prep: patch extraction + cls/bias augmentation (cls LAST) ----
    px = im.astype(jnp.float32).reshape(B, C, gs_h, PATCH, gs_w, PATCH)
    px = px.transpose(0, 2, 4, 1, 3, 5).reshape(B, n_patches, cpp)
    patch_rows = jnp.concatenate(
        [px, jnp.ones((B, n_patches, 1), jnp.float32),
         jnp.zeros((B, n_patches, 1), jnp.float32)], axis=-1)
    cls_rows = jnp.concatenate(
        [jnp.zeros((B, 1, cpp + 1), jnp.float32), jnp.ones((B, 1, 1), jnp.float32)], axis=-1)
    tokens = jnp.concatenate([patch_rows, cls_rows], axis=1)            # (B, Ne, feat)
    tokens = jnp.pad(tokens, ((0, 0), (0, 0), (0, f_pad - feat)))       # (B, Ne, f_pad)

    # ---- weight folding + packing (tiny, one-time wrapper-side layout work) ----
    f32 = jnp.float32
    w_emb = jnp.concatenate([params["patch_w"],
                             params["patch_b"].reshape(1, D_MODEL),
                             params["cls_token"].reshape(1, D_MODEL)], axis=0).astype(f32)
    w_emb = jnp.pad(w_emb, ((0, f_pad - feat), (0, 0)))                 # (f_pad, D)

    pos = params["pos_embed"].reshape(n_enc_tok, D_MODEL).astype(f32)
    pos = jnp.concatenate([pos[1:], pos[:1]], axis=0)                   # cls pos-row moved last

    ge = params["enc_norm_g"].astype(f32); be = params["enc_norm_b"].astype(f32)
    Wd = params["proj_dec_w"].astype(f32); bd = params["proj_dec_b"].astype(f32)
    proj_dec_w = ge[:, None] * Wd
    proj_dec_b = (be @ Wd + bd).reshape(1, D_MODEL)

    gd = params["dec_norm_g"].astype(f32); bdn = params["dec_norm_b"].astype(f32)
    Wp = params["proj_patch"].astype(f32); Wc = params["proj_classes"].astype(f32)
    proj_patch = gd[:, None] * Wp
    bias_patch = (bdn @ Wp).reshape(1, D_MODEL)
    proj_classes = gd[:, None] * Wc
    bias_classes = (bdn @ Wc).reshape(1, D_MODEL)

    entries_a = [("w_emb", w_emb), ("pos", pos),
                 ("proj_dec_w", proj_dec_w), ("proj_dec_b", proj_dec_b),
                 ("cls_emb", params["cls_emb"].reshape(N_CLS, D_MODEL).astype(f32)),
                 ("proj_patch", proj_patch), ("bias_patch", bias_patch),
                 ("proj_classes", proj_classes), ("bias_classes", bias_classes)]
    chunks_b = []
    all_blocks = params["enc_blocks"] + params["dec_blocks"]
    for i, bp in enumerate(all_blocks):
        fold = _fold_block(bp)
        entries_a += [(f"blk{i}_proj_w", fold["proj_w"]), (f"blk{i}_proj_b", fold["proj_b"]),
                      (f"blk{i}_fc2_w", fold["fc2_w"]), (f"blk{i}_fc2_b", fold["fc2_b"])]
        chunks_b.append(_pack_block_b(fold))

    slab_a, offs = _build_slab(entries_a)                               # (R_A, 32)
    slab_b = jnp.concatenate(chunks_b, axis=0)                          # (n_blocks*40, 224)
    mask_gb = jnp.concatenate([params["mask_norm_g"].reshape(N_CLS, 1),
                               params["mask_norm_b"].reshape(N_CLS, 1)],
                              axis=0).astype(f32)                       # (2*N_CLS, 1)
    # bilinear upsample folded into one lane-dense matmul: m (n_cls, Np) @ kt (Np, H*W)
    kt = jnp.asarray(np.kron(_interp_matrix(gs_h, H), _interp_matrix(gs_w, W)).T)

    kernel = functools.partial(_segmenter_kernel,
                               offs=offs, b_local=b_local, n_patches=n_patches,
                               n_enc=len(params["enc_blocks"]),
                               n_dec=len(params["dec_blocks"]))

    in_specs = [
        pl.BlockSpec((b_local, n_enc_tok, f_pad), lambda g: (g, 0, 0)),
        pl.BlockSpec(slab_a.shape, lambda g: (0, 0)),
        pl.BlockSpec(slab_b.shape, lambda g: (0, 0)),
        pl.BlockSpec(mask_gb.shape, lambda g: (0, 0)),
        pl.BlockSpec(kt.shape, lambda g: (0, 0)),
    ]

    masks = pl.pallas_call(
        kernel,
        out_shape=jax.ShapeDtypeStruct((B, N_CLS, hw), jnp.float32),
        grid=(n_steps,),
        in_specs=in_specs,
        out_specs=pl.BlockSpec((b_local, N_CLS, hw), lambda g: (g, 0, 0)),
        compiler_params=pltpu.CompilerParams(dimension_semantics=("parallel",)),
    )(tokens, slab_a, slab_b, mask_gb, kt)

    masks = masks.reshape(B, N_CLS, H, W)
    return masks[:, :, :H_ori, :W_ori]


# ----------------------------- parameter init ------------------------------
def init_block_params(key):
    ks = jax.random.split(key, 4)
    return dict(
        n1_g=jnp.ones((D_MODEL,), jnp.float32), n1_b=jnp.zeros((D_MODEL,), jnp.float32),
        qkv_w=0.02 * jax.random.normal(ks[0], (D_MODEL, 3 * D_MODEL), jnp.float32),
        qkv_b=jnp.zeros((3 * D_MODEL,), jnp.float32),
        proj_w=0.02 * jax.random.normal(ks[1], (D_MODEL, D_MODEL), jnp.float32),
        proj_b=jnp.zeros((D_MODEL,), jnp.float32),
        n2_g=jnp.ones((D_MODEL,), jnp.float32), n2_b=jnp.zeros((D_MODEL,), jnp.float32),
        fc1_w=0.02 * jax.random.normal(ks[2], (D_MODEL, MLP_DIM), jnp.float32),
        fc1_b=jnp.zeros((MLP_DIM,), jnp.float32),
        fc2_w=0.02 * jax.random.normal(ks[3], (MLP_DIM, D_MODEL), jnp.float32),
        fc2_b=jnp.zeros((D_MODEL,), jnp.float32),
    )


def init_params(key, in_ch, n_patches):
    k = jax.random.split(key, 7 + ENC_LAYERS + DEC_LAYERS)
    return dict(
        patch_w=0.02 * jax.random.normal(k[0], (in_ch * PATCH * PATCH, D_MODEL), jnp.float32),
        patch_b=jnp.zeros((D_MODEL,), jnp.float32),
        cls_token=0.02 * jax.random.normal(k[1], (1, 1, D_MODEL), jnp.float32),
        pos_embed=0.02 * jax.random.normal(k[2], (1, n_patches + 1, D_MODEL), jnp.float32),
        enc_norm_g=jnp.ones((D_MODEL,), jnp.float32),
        enc_norm_b=jnp.zeros((D_MODEL,), jnp.float32),
        proj_dec_w=0.02 * jax.random.normal(k[3], (D_MODEL, D_MODEL), jnp.float32),
        proj_dec_b=jnp.zeros((D_MODEL,), jnp.float32),
        cls_emb=0.02 * jax.random.normal(k[4], (1, N_CLS, D_MODEL), jnp.float32),
        dec_norm_g=jnp.ones((D_MODEL,), jnp.float32),
        dec_norm_b=jnp.zeros((D_MODEL,), jnp.float32),
        proj_patch=(D_MODEL ** -0.5) * jax.random.normal(k[5], (D_MODEL, D_MODEL), jnp.float32),
        proj_classes=(D_MODEL ** -0.5) * jax.random.normal(k[6], (D_MODEL, D_MODEL), jnp.float32),
        mask_norm_g=jnp.ones((N_CLS,), jnp.float32),
        mask_norm_b=jnp.zeros((N_CLS,), jnp.float32),
        enc_blocks=[init_block_params(k[7 + i]) for i in range(ENC_LAYERS)],
        dec_blocks=[init_block_params(k[7 + ENC_LAYERS + i]) for i in range(DEC_LAYERS)],
    )


# ----------------------------- main -----------------------------------------
if __name__ == "__main__":
    key = jax.random.PRNGKey(0)
    k_im, k_par = jax.random.split(key)

    B, C, H_ori, W_ori = 2, 3, 15, 15  # non-multiple of PATCH -> exercises padding/unpadding
    im = jax.random.normal(k_im, (B, C, H_ori, W_ori), jnp.float32)

    H_pad = H_ori + (PATCH - H_ori % PATCH) % PATCH
    W_pad = W_ori + (PATCH - W_ori % PATCH) % PATCH
    n_patches = (H_pad // PATCH) * (W_pad // PATCH)
    params = init_params(k_par, C, n_patches)

    fwd = jax.jit(segmenter_forward)
    masks = jax.block_until_ready(fwd(params, im))

    assert masks.shape == (B, N_CLS, H_ori, W_ori), masks.shape
    assert bool(jnp.all(jnp.isfinite(masks)))
    print("KERNEL_OK")
</pallas_src>

<mosaic_0001>
module attributes {stable_mosaic.version = 11 : i64} {
  func.func @_segmenter_kernel(%arg0: i32, %arg1: memref<2x17x64xf32, #tpu.memory_space<vmem>>, %arg2: memref<744x32xf32, #tpu.memory_space<vmem>>, %arg3: memref<120x224xf32, #tpu.memory_space<vmem>>, %arg4: memref<8x1xf32, #tpu.memory_space<vmem>>, %arg5: memref<16x256xf32, #tpu.memory_space<vmem>>, %arg6: memref<2x4x256xf32, #tpu.memory_space<vmem>>) attributes {dimension_semantics = [#tpu.dimension_semantics<parallel>], iteration_bounds = array<i64: 1>, scalar_prefetch = 0 : i64, scratch_operands = 0 : i64, tpu.core_type = #tpu.core_type<tc>, window_params = [{transform_indices = @transform_0, window_bounds = array<i64: 2, 17, 64>}, {pipeline_mode = #tpu.pipeline_mode<synchronous>, transform_indices = @transform_1, window_bounds = array<i64: 744, 32>}, {pipeline_mode = #tpu.pipeline_mode<synchronous>, transform_indices = @transform_2, window_bounds = array<i64: 120, 224>}, {pipeline_mode = #tpu.pipeline_mode<synchronous>, transform_indices = @transform_3, window_bounds = array<i64: 8, 1>}, {pipeline_mode = #tpu.pipeline_mode<synchronous>, transform_indices = @transform_4, window_bounds = array<i64: 16, 256>}, {transform_indices = @transform_5, window_bounds = array<i64: 2, 4, 256>}]} {
    %c64 = arith.constant 64 : index
    %c0 = arith.constant 0 : index
    %0 = vector.load %arg2[%c64, %c0] : memref<744x32xf32, #tpu.memory_space<vmem>>, vector<17x32xf32>
    %c0_0 = arith.constant 0 : index
    %c0_1 = arith.constant 0 : index
    %c0_2 = arith.constant 0 : index
    %1 = vector.load %arg1[%c0_0, %c0_1, %c0_2] : memref<2x17x64xf32, #tpu.memory_space<vmem>>, vector<1x17x64xf32>
    %2 = vector.shape_cast %1 : vector<1x17x64xf32> to vector<17x64xf32>
    %c0_3 = arith.constant 0 : index
    %c0_4 = arith.constant 0 : index
    %3 = vector.load %arg2[%c0_3, %c0_4] : memref<744x32xf32, #tpu.memory_space<vmem>>, vector<64x32xf32>
    %4 = arith.truncf %2 : vector<17x64xf32> to vector<17x64xbf16>
    %5 = arith.truncf %3 : vector<64x32xf32> to vector<64x32xbf16>
    %cst = arith.constant dense<0.000000e+00> : vector<17x32xf32>
    %6 = tpu.matmul %4, %5, %cst {dimension_numbers = #tpu.dot_dimension_numbers<[1], [0], [0], [1], [0, 0, 1, 1], [], []>} : vector<17x64xbf16>, vector<64x32xbf16>, vector<17x32xf32> -> vector<17x32xf32>
    %7 = arith.addf %6, %0 : vector<17x32xf32>
    %c1 = arith.constant 1 : index
    %c0_5 = arith.constant 0 : index
    %c0_6 = arith.constant 0 : index
    %8 = vector.load %arg1[%c1, %c0_5, %c0_6] : memref<2x17x64xf32, #tpu.memory_space<vmem>>, vector<1x17x64xf32>
    %9 = vector.shape_cast %8 : vector<1x17x64xf32> to vector<17x64xf32>
    %c0_7 = arith.constant 0 : index
    %c0_8 = arith.constant 0 : index
    %10 = vector.load %arg2[%c0_7, %c0_8] : memref<744x32xf32, #tpu.memory_space<vmem>>, vector<64x32xf32>
    %11 = arith.truncf %9 : vector<17x64xf32> to vector<17x64xbf16>
    %12 = arith.truncf %10 : vector<64x32xf32> to vector<64x32xbf16>
    %cst_9 = arith.constant dense<0.000000e+00> : vector<17x32xf32>
    %13 = tpu.matmul %11, %12, %cst_9 {dimension_numbers = #tpu.dot_dimension_numbers<[1], [0], [0], [1], [0, 0, 1, 1], [], []>} : vector<17x64xbf16>, vector<64x32xbf16>, vector<17x32xf32> -> vector<17x32xf32>
    %14 = arith.addf %13, %0 : vector<17x32xf32>
    %15 = tpu.concatenate %7, %14 in 0 : vector<17x32xf32>, vector<17x32xf32> -> vector<34x32xf32>
    %c0_10 = arith.constant 0 : index
    %c0_11 = arith.constant 0 : index
    %16 = vector.load %arg3[%c0_10, %c0_11] : memref<120x224xf32, #tpu.memory_space<vmem>>, vector<32x128xf32>
    %c0_12 = arith.constant 0 : index
    %c128 = arith.constant 128 : index
    %17 = vector.load %arg3[%c0_12, %c128] : memref<120x224xf32, #tpu.memory_space<vmem>>, vector<32x96xf32>
    %c32 = arith.constant 32 : index
    %c0_13 = arith.constant 0 : index
    %18 = vector.load %arg3[%c32, %c0_13] : memref<120x224xf32, #tpu.memory_space<vmem>>, vector<1x128xf32>
    %c32_14 = arith.constant 32 : index
    %c128_15 = arith.constant 128 : index
    %19 = vector.load %arg3[%c32_14, %c128_15] : memref<120x224xf32, #tpu.memory_space<vmem>>, vector<1x96xf32>
    %cst_16 = arith.constant dense<0.000000e+00> : vector<34xf32>
    %20 = vector.multi_reduction <add>, %15, %cst_16 [1] : vector<34x32xf32> to vector<34xf32>
    %21 = vector.shape_cast %20 : vector<34xf32> to vector<34x1xf32>
    %cst_17 = arith.constant 3.200000e+01 : f32
    %22 = vector.broadcast %cst_17 : f32 to vector<34x1xf32>
    %23 = arith.divf %21, %22 : vector<34x1xf32>
    %24 = vector.broadcast %23 : vector<34x1xf32> to vector<34x32xf32>
    %25 = arith.subf %15, %24 : vector<34x32xf32>
    %26 = arith.mulf %25, %25 : vector<34x32xf32>
    %cst_18 = arith.constant dense<0.000000e+00> : vector<34xf32>
    %27 = vector.multi_reduction <add>, %26, %cst_18 [1] : vector<34x32xf32> to vector<34xf32>
    %28 = vector.shape_cast %27 : vector<34xf32> to vector<34x1xf32>
    %cst_19 = arith.constant 3.200000e+01 : f32
    %29 = vector.broadcast %cst_19 : f32 to vector<34x1xf32>
    %30 = arith.divf %28, %29 : vector<34x1xf32>
    %cst_20 = arith.constant 9.99999997E-7 : f32
    %31 = vector.broadcast %cst_20 : f32 to vector<34x1xf32>
    %32 = arith.addf %30, %31 : vector<34x1xf32>
    %33 = math.rsqrt %32 : vector<34x1xf32>
    %34 = vector.broadcast %33 : vector<34x1xf32> to vector<34x32xf32>
    %35 = arith.mulf %25, %34 : vector<34x32xf32>
    %36 = arith.truncf %35 : vector<34x32xf32> to vector<34x32xbf16>
    %37 = arith.truncf %17 : vector<32x96xf32> to vector<32x96xbf16>
    %cst_21 = arith.constant dense<0.000000e+00> : vector<34x96xf32>
    %38 = tpu.matmul %36, %37, %cst_21 {dimension_numbers = #tpu.dot_dimension_numbers<[1], [0], [0], [1], [0, 0, 1, 1], [], []>} : vector<34x32xbf16>, vector<32x96xbf16>, vector<34x96xf32> -> vector<34x96xf32>
    %39 = vector.broadcast %19 : vector<1x96xf32> to vector<34x96xf32>
    %40 = arith.addf %38, %39 : vector<34x96xf32>
    %41 = vector.extract_strided_slice %40 {offsets = [0, 0], sizes = [17, 16], strides = [1, 1]} : vector<34x96xf32> to vector<17x16xf32>
    %42 = vector.extract_strided_slice %40 {offsets = [0, 32], sizes = [17, 16], strides = [1, 1]} : vector<34x96xf32> to vector<17x16xf32>
    %43 = vector.extract_strided_slice %40 {offsets = [0, 64], sizes = [17, 16], strides = [1, 1]} : vector<34x96xf32> to vector<17x16xf32>
    %44 = arith.truncf %41 : vector<17x16xf32> to vector<17x16xbf16>
    %45 = arith.truncf %42 : vector<17x16xf32> to vector<17x16xbf16>
    %cst_22 = arith.constant dense<0.000000e+00> : vector<17x17xf32>
    %46 = tpu.matmul %44, %45, %cst_22 {dimension_numbers = #tpu.dot_dimension_numbers<[1], [1], [0], [0], [0, 0, 1, 0], [], []>} : vector<17x16xbf16>, vector<17x16xbf16>, vector<17x17xf32> -> vector<17x17xf32>
    %cst_23 = arith.constant dense<0xFF800000> : vector<17xf32>
    %47 = vector.multi_reduction <maximumf>, %46, %cst_23 [1] : vector<17x17xf32> to vector<17xf32>
    %48 = vector.shape_cast %47 : vector<17xf32> to vector<17x1xf32>
    %49 = vector.broadcast %48 : vector<17x1xf32> to vector<17x17xf32>
    %50 = arith.subf %46, %49 : vector<17x17xf32>
    %51 = math.exp %50 : vector<17x17xf32>
    %cst_24 = arith.constant dense<0.000000e+00> : vector<17xf32>
    %52 = vector.multi_reduction <add>, %51, %cst_24 [1] : vector<17x17xf32> to vector<17xf32>
    %53 = vector.shape_cast %52 : vector<17xf32> to vector<17x1xf32>
    %54 = tpu.reciprocal %53 {approx = true} : vector<17x1xf32> -> vector<17x1xf32>
    %55 = vector.broadcast %54 : vector<17x1xf32> to vector<17x17xf32>
    %56 = arith.mulf %51, %55 : vector<17x17xf32>
    %57 = arith.truncf %56 : vector<17x17xf32> to vector<17x17xbf16>
    %58 = arith.truncf %43 : vector<17x16xf32> to vector<17x16xbf16>
    %cst_25 = arith.constant dense<0.000000e+00> : vector<17x16xf32>
    %59 = tpu.matmul %57, %58, %cst_25 {dimension_numbers = #tpu.dot_dimension_numbers<[1], [0], [0], [1], [0, 0, 1, 1], [], []>} : vector<17x17xbf16>, vector<17x16xbf16>, vector<17x16xf32> -> vector<17x16xf32>
    %60 = vector.extract_strided_slice %40 {offsets = [0, 16], sizes = [17, 16], strides = [1, 1]} : vector<34x96xf32> to vector<17x16xf32>
    %61 = vector.extract_strided_slice %40 {offsets = [0, 48], sizes = [17, 16], strides = [1, 1]} : vector<34x96xf32> to vector<17x16xf32>
    %62 = vector.extract_strided_slice %40 {offsets = [0, 80], sizes = [17, 16], strides = [1, 1]} : vector<34x96xf32> to vector<17x16xf32>
    %63 = arith.truncf %60 : vector<17x16xf32> to vector<17x16xbf16>
    %64 = arith.truncf %61 : vector<17x16xf32> to vector<17x16xbf16>
    %cst_26 = arith.constant dense<0.000000e+00> : vector<17x17xf32>
    %65 = tpu.matmul %63, %64, %cst_26 {dimension_numbers = #tpu.dot_dimension_numbers<[1], [1], [0], [0], [0, 0, 1, 0], [], []>} : vector<17x16xbf16>, vector<17x16xbf16>, vector<17x17xf32> -> vector<17x17xf32>
    %cst_27 = arith.constant dense<0xFF800000> : vector<17xf32>
    %66 = vector.multi_reduction <maximumf>, %65, %cst_27 [1] : vector<17x17xf32> to vector<17xf32>
    %67 = vector.shape_cast %66 : vector<17xf32> to vector<17x1xf32>
    %68 = vector.broadcast %67 : vector<17x1xf32> to vector<17x17xf32>
    %69 = arith.subf %65, %68 : vector<17x17xf32>
    %70 = math.exp %69 : vector<17x17xf32>
    %cst_28 = arith.constant dense<0.000000e+00> : vector<17xf32>
    %71 = vector.multi_reduction <add>, %70, %cst_28 [1] : vector<17x17xf32> to vector<17xf32>
    %72 = vector.shape_cast %71 : vector<17xf32> to vector<17x1xf32>
    %73 = tpu.reciprocal %72 {approx = true} : vector<17x1xf32> -> vector<17x1xf32>
    %74 = vector.broadcast %73 : vector<17x1xf32> to vector<17x17xf32>
    %75 = arith.mulf %70, %74 : vector<17x17xf32>
    %76 = arith.truncf %75 : vector<17x17xf32> to vector<17x17xbf16>
    %77 = arith.truncf %62 : vector<17x16xf32> to vector<17x16xbf16>
    %cst_29 = arith.constant dense<0.000000e+00> : vector<17x16xf32>
    %78 = tpu.matmul %76, %77, %cst_29 {dimension_numbers = #tpu.dot_dimension_numbers<[1], [0], [0], [1], [0, 0, 1, 1], [], []>} : vector<17x17xbf16>, vector<17x16xbf16>, vector<17x16xf32> -> vector<17x16xf32>
    %79 = tpu.concatenate %59, %78 in 1 : vector<17x16xf32>, vector<17x16xf32> -> vector<17x32xf32>
    %80 = vector.extract_strided_slice %40 {offsets = [17, 0], sizes = [17, 16], strides = [1, 1]} : vector<34x96xf32> to vector<17x16xf32>
    %81 = vector.extract_strided_slice %40 {offsets = [17, 32], sizes = [17, 16], strides = [1, 1]} : vector<34x96xf32> to vector<17x16xf32>
    %82 = vector.extract_strided_slice %40 {offsets = [17, 64], sizes = [17, 16], strides = [1, 1]} : vector<34x96xf32> to vector<17x16xf32>
    %83 = arith.truncf %80 : vector<17x16xf32> to vector<17x16xbf16>
    %84 = arith.truncf %81 : vector<17x16xf32> to vector<17x16xbf16>
    %cst_30 = arith.constant dense<0.000000e+00> : vector<17x17xf32>
    %85 = tpu.matmul %83, %84, %cst_30 {dimension_numbers = #tpu.dot_dimension_numbers<[1], [1], [0], [0], [0, 0, 1, 0], [], []>} : vector<17x16xbf16>, vector<17x16xbf16>, vector<17x17xf32> -> vector<17x17xf32>
    %cst_31 = arith.constant dense<0xFF800000> : vector<17xf32>
    %86 = vector.multi_reduction <maximumf>, %85, %cst_31 [1] : vector<17x17xf32> to vector<17xf32>
    %87 = vector.shape_cast %86 : vector<17xf32> to vector<17x1xf32>
    %88 = vector.broadcast %87 : vector<17x1xf32> to vector<17x17xf32>
    %89 = arith.subf %85, %88 : vector<17x17xf32>
    %90 = math.exp %89 : vector<17x17xf32>
    %cst_32 = arith.constant dense<0.000000e+00> : vector<17xf32>
    %91 = vector.multi_reduction <add>, %90, %cst_32 [1] : vector<17x17xf32> to vector<17xf32>
    %92 = vector.shape_cast %91 : vector<17xf32> to vector<17x1xf32>
    %93 = tpu.reciprocal %92 {approx = true} : vector<17x1xf32> -> vector<17x1xf32>
    %94 = vector.broadcast %93 : vector<17x1xf32> to vector<17x17xf32>
    %95 = arith.mulf %90, %94 : vector<17x17xf32>
    %96 = arith.truncf %95 : vector<17x17xf32> to vector<17x17xbf16>
    %97 = arith.truncf %82 : vector<17x16xf32> to vector<17x16xbf16>
    %cst_33 = arith.constant dense<0.000000e+00> : vector<17x16xf32>
    %98 = tpu.matmul %96, %97, %cst_33 {dimension_numbers = #tpu.dot_dimension_numbers<[1], [0], [0], [1], [0, 0, 1, 1], [], []>} : vector<17x17xbf16>, vector<17x16xbf16>, vector<17x16xf32> -> vector<17x16xf32>
    %99 = vector.extract_strided_slice %40 {offsets = [17, 16], sizes = [17, 16], strides = [1, 1]} : vector<34x96xf32> to vector<17x16xf32>
    %100 = vector.extract_strided_slice %40 {offsets = [17, 48], sizes = [17, 16], strides = [1, 1]} : vector<34x96xf32> to vector<17x16xf32>
    %101 = vector.extract_strided_slice %40 {offsets = [17, 80], sizes = [17, 16], strides = [1, 1]} : vector<34x96xf32> to vector<17x16xf32>
    %102 = arith.truncf %99 : vector<17x16xf32> to vector<17x16xbf16>
    %103 = arith.truncf %100 : vector<17x16xf32> to vector<17x16xbf16>
    %cst_34 = arith.constant dense<0.000000e+00> : vector<17x17xf32>
    %104 = tpu.matmul %102, %103, %cst_34 {dimension_numbers = #tpu.dot_dimension_numbers<[1], [1], [0], [0], [0, 0, 1, 0], [], []>} : vector<17x16xbf16>, vector<17x16xbf16>, vector<17x17xf32> -> vector<17x17xf32>
    %cst_35 = arith.constant dense<0xFF800000> : vector<17xf32>
    %105 = vector.multi_reduction <maximumf>, %104, %cst_35 [1] : vector<17x17xf32> to vector<17xf32>
    %106 = vector.shape_cast %105 : vector<17xf32> to vector<17x1xf32>
    %107 = vector.broadcast %106 : vector<17x1xf32> to vector<17x17xf32>
    %108 = arith.subf %104, %107 : vector<17x17xf32>
    %109 = math.exp %108 : vector<17x17xf32>
    %cst_36 = arith.constant dense<0.000000e+00> : vector<17xf32>
    %110 = vector.multi_reduction <add>, %109, %cst_36 [1] : vector<17x17xf32> to vector<17xf32>
    %111 = vector.shape_cast %110 : vector<17xf32> to vector<17x1xf32>
    %112 = tpu.reciprocal %111 {approx = true} : vector<17x1xf32> -> vector<17x1xf32>
    %113 = vector.broadcast %112 : vector<17x1xf32> to vector<17x17xf32>
    %114 = arith.mulf %109, %113 : vector<17x17xf32>
    %115 = arith.truncf %114 : vector<17x17xf32> to vector<17x17xbf16>
    %116 = arith.truncf %101 : vector<17x16xf32> to vector<17x16xbf16>
    %cst_37 = arith.constant dense<0.000000e+00> : vector<17x16xf32>
    %117 = tpu.matmul %115, %116, %cst_37 {dimension_numbers = #tpu.dot_dimension_numbers<[1], [0], [0], [1], [0, 0, 1, 1], [], []>} : vector<17x17xbf16>, vector<17x16xbf16>, vector<17x16xf32> -> vector<17x16xf32>
    %118 = tpu.concatenate %98, %117 in 1 : vector<17x16xf32>, vector<17x16xf32> -> vector<17x32xf32>
    %119 = tpu.concatenate %79, %118 in 0 : vector<17x32xf32>, vector<17x32xf32> -> vector<34x32xf32>
    %c216 = arith.constant 216 : index
    %c0_38 = arith.constant 0 : index
    %120 = vector.load %arg2[%c216, %c0_38] : memref<744x32xf32, #tpu.memory_space<vmem>>, vector<32x32xf32>
    %121 = arith.truncf %119 : vector<34x32xf32> to vector<34x32xbf16>
    %122 = arith.truncf %120 : vector<32x32xf32> to vector<32x32xbf16>
    %cst_39 = arith.constant dense<0.000000e+00> : vector<34x32xf32>
    %123 = tpu.matmul %121, %122, %cst_39 {dimension_numbers = #tpu.dot_dimension_numbers<[1], [0], [0], [1], [0, 0, 1, 1], [], []>} : vector<34x32xbf16>, vector<32x32xbf16>, vector<34x32xf32> -> vector<34x32xf32>
    %124 = arith.addf %15, %123 : vector<34x32xf32>
    %c248 = arith.constant 248 : index
    %c0_40 = arith.constant 0 : index
    %125 = vector.load %arg2[%c248, %c0_40] : memref<744x32xf32, #tpu.memory_space<vmem>>, vector<1x32xf32>
    %126 = vector.broadcast %125 : vector<1x32xf32> to vector<34x32xf32>
    %127 = arith.addf %124, %126 : vector<34x32xf32>
    %cst_41 = arith.constant dense<0.000000e+00> : vector<34xf32>
    %128 = vector.multi_reduction <add>, %127, %cst_41 [1] : vector<34x32xf32> to vector<34xf32>
    %129 = vector.shape_cast %128 : vector<34xf32> to vector<34x1xf32>
    %cst_42 = arith.constant 3.200000e+01 : f32
    %130 = vector.broadcast %cst_42 : f32 to vector<34x1xf32>
    %131 = arith.divf %129, %130 : vector<34x1xf32>
    %132 = vector.broadcast %131 : vector<34x1xf32> to vector<34x32xf32>
    %133 = arith.subf %127, %132 : vector<34x32xf32>
    %134 = arith.mulf %133, %133 : vector<34x32xf32>
    %cst_43 = arith.constant dense<0.000000e+00> : vector<34xf32>
    %135 = vector.multi_reduction <add>, %134, %cst_43 [1] : vector<34x32xf32> to vector<34xf32>
    %136 = vector.shape_cast %135 : vector<34xf32> to vector<34x1xf32>
    %cst_44 = arith.constant 3.200000e+01 : f32
    %137 = vector.broadcast %cst_44 : f32 to vector<34x1xf32>
    %138 = arith.divf %136, %137 : vector<34x1xf32>
    %cst_45 = arith.constant 9.99999997E-7 : f32
    %139 = vector.broadcast %cst_45 : f32 to vector<34x1xf32>
    %140 = arith.addf %138, %139 : vector<34x1xf32>
    %141 = math.rsqrt %140 : vector<34x1xf32>
    %142 = vector.broadcast %141 : vector<34x1xf32> to vector<34x32xf32>
    %143 = arith.mulf %133, %142 : vector<34x32xf32>
    %144 = arith.truncf %143 : vector<34x32xf32> to vector<34x32xbf16>
    %145 = arith.truncf %16 : vector<32x128xf32> to vector<32x128xbf16>
    %cst_46 = arith.constant dense<0.000000e+00> : vector<34x128xf32>
    %146 = tpu.matmul %144, %145, %cst_46 {dimension_numbers = #tpu.dot_dimension_numbers<[1], [0], [0], [1], [0, 0, 1, 1], [], []>} : vector<34x32xbf16>, vector<32x128xbf16>, vector<34x128xf32> -> vector<34x128xf32>
    %147 = vector.broadcast %18 : vector<1x128xf32> to vector<34x128xf32>
    %148 = arith.addf %146, %147 : vector<34x128xf32>
    %149 = arith.mulf %148, %148 : vector<34x128xf32>
    %150 = arith.mulf %148, %149 : vector<34x128xf32>
    %cst_47 = arith.constant 4.471500e-02 : f32
    %151 = vector.broadcast %cst_47 : f32 to vector<34x128xf32>
    %152 = arith.mulf %151, %150 : vector<34x128xf32>
    %153 = arith.addf %148, %152 : vector<34x128xf32>
    %cst_48 = arith.constant 0.797884583 : f32
    %154 = vector.broadcast %cst_48 : f32 to vector<34x128xf32>
    %155 = arith.mulf %154, %153 : vector<34x128xf32>
    %156 = math.tanh %155 : vector<34x128xf32>
    %cst_49 = arith.constant 1.000000e+00 : f32
    %157 = vector.broadcast %cst_49 : f32 to vector<34x128xf32>
    %158 = arith.addf %157, %156 : vector<34x128xf32>
    %cst_50 = arith.constant 5.000000e-01 : f32
    %159 = vector.broadcast %cst_50 : f32 to vector<34x128xf32>
    %160 = arith.mulf %159, %158 : vector<34x128xf32>
    %161 = arith.mulf %148, %160 : vector<34x128xf32>
    %c256 = arith.constant 256 : index
    %c0_51 = arith.constant 0 : index
    %162 = vector.load %arg2[%c256, %c0_51] : memref<744x32xf32, #tpu.memory_space<vmem>>, vector<128x32xf32>
    %163 = arith.truncf %161 : vector<34x128xf32> to vector<34x128xbf16>
    %164 = arith.truncf %162 : vector<128x32xf32> to vector<128x32xbf16>
    %cst_52 = arith.constant dense<0.000000e+00> : vector<34x32xf32>
    %165 = tpu.matmul %163, %164, %cst_52 {dimension_numbers = #tpu.dot_dimension_numbers<[1], [0], [0], [1], [0, 0, 1, 1], [], []>} : vector<34x128xbf16>, vector<128x32xbf16>, vector<34x32xf32> -> vector<34x32xf32>
    %c384 = arith.constant 384 : index
    %c0_53 = arith.constant 0 : index
    %166 = vector.load %arg2[%c384, %c0_53] : memref<744x32xf32, #tpu.memory_space<vmem>>, vector<1x32xf32>
    %167 = vector.broadcast %166 : vector<1x32xf32> to vector<34x32xf32>
    %168 = arith.addf %165, %167 : vector<34x32xf32>
    %169 = arith.addf %127, %168 : vector<34x32xf32>
    %c40 = arith.constant 40 : index
    %c0_54 = arith.constant 0 : index
    %170 = vector.load %arg3[%c40, %c0_54] : memref<120x224xf32, #tpu.memory_space<vmem>>, vector<32x128xf32>
    %c40_55 = arith.constant 40 : index
    %c128_56 = arith.constant 128 : index
    %171 = vector.load %arg3[%c40_55, %c128_56] : memref<120x224xf32, #tpu.memory_space<vmem>>, vector<32x96xf32>
    %c72 = arith.constant 72 : index
    %c0_57 = arith.constant 0 : index
    %172 = vector.load %arg3[%c72, %c0_57] : memref<120x224xf32, #tpu.memory_space<vmem>>, vector<1x128xf32>
    %c72_58 = arith.constant 72 : index
    %c128_59 = arith.constant 128 : index
    %173 = vector.load %arg3[%c72_58, %c128_59] : memref<120x224xf32, #tpu.memory_space<vmem>>, vector<1x96xf32>
    %cst_60 = arith.constant dense<0.000000e+00> : vector<34xf32>
    %174 = vector.multi_reduction <add>, %169, %cst_60 [1] : vector<34x32xf32> to vector<34xf32>
    %175 = vector.shape_cast %174 : vector<34xf32> to vector<34x1xf32>
    %cst_61 = arith.constant 3.200000e+01 : f32
    %176 = vector.broadcast %cst_61 : f32 to vector<34x1xf32>
    %177 = arith.divf %175, %176 : vector<34x1xf32>
    %178 = vector.broadcast %177 : vector<34x1xf32> to vector<34x32xf32>
    %179 = arith.subf %169, %178 : vector<34x32xf32>
    %180 = arith.mulf %179, %179 : vector<34x32xf32>
    %cst_62 = arith.constant dense<0.000000e+00> : vector<34xf32>
    %181 = vector.multi_reduction <add>, %180, %cst_62 [1] : vector<34x32xf32> to vector<34xf32>
    %182 = vector.shape_cast %181 : vector<34xf32> to vector<34x1xf32>
    %cst_63 = arith.constant 3.200000e+01 : f32
    %183 = vector.broadcast %cst_63 : f32 to vector<34x1xf32>
    %184 = arith.divf %182, %183 : vector<34x1xf32>
    %cst_64 = arith.constant 9.99999997E-7 : f32
    %185 = vector.broadcast %cst_64 : f32 to vector<34x1xf32>
    %186 = arith.addf %184, %185 : vector<34x1xf32>
    %187 = math.rsqrt %186 : vector<34x1xf32>
    %188 = vector.broadcast %187 : vector<34x1xf32> to vector<34x32xf32>
    %189 = arith.mulf %179, %188 : vector<34x32xf32>
    %190 = arith.truncf %189 : vector<34x32xf32> to vector<34x32xbf16>
    %191 = arith.truncf %171 : vector<32x96xf32> to vector<32x96xbf16>
    %cst_65 = arith.constant dense<0.000000e+00> : vector<34x96xf32>
    %192 = tpu.matmul %190, %191, %cst_65 {dimension_numbers = #tpu.dot_dimension_numbers<[1], [0], [0], [1], [0, 0, 1, 1], [], []>} : vector<34x32xbf16>, vector<32x96xbf16>, vector<34x96xf32> -> vector<34x96xf32>
    %193 = vector.broadcast %173 : vector<1x96xf32> to vector<34x96xf32>
    %194 = arith.addf %192, %193 : vector<34x96xf32>
    %195 = vector.extract_strided_slice %194 {offsets = [0, 0], sizes = [17, 16], strides = [1, 1]} : vector<34x96xf32> to vector<17x16xf32>
    %196 = vector.extract_strided_slice %194 {offsets = [0, 32], sizes = [17, 16], strides = [1, 1]} : vector<34x96xf32> to vector<17x16xf32>
    %197 = vector.extract_strided_slice %194 {offsets = [0, 64], sizes = [17, 16], strides = [1, 1]} : vector<34x96xf32> to vector<17x16xf32>
    %198 = arith.truncf %195 : vector<17x16xf32> to vector<17x16xbf16>
    %199 = arith.truncf %196 : vector<17x16xf32> to vector<17x16xbf16>
    %cst_66 = arith.constant dense<0.000000e+00> : vector<17x17xf32>
    %200 = tpu.matmul %198, %199, %cst_66 {dimension_numbers = #tpu.dot_dimension_numbers<[1], [1], [0], [0], [0, 0, 1, 0], [], []>} : vector<17x16xbf16>, vector<17x16xbf16>, vector<17x17xf32> -> vector<17x17xf32>
    %cst_67 = arith.constant dense<0xFF800000> : vector<17xf32>
    %201 = vector.multi_reduction <maximumf>, %200, %cst_67 [1] : vector<17x17xf32> to vector<17xf32>
    %202 = vector.shape_cast %201 : vector<17xf32> to vector<17x1xf32>
    %203 = vector.broadcast %202 : vector<17x1xf32> to vector<17x17xf32>
    %204 = arith.subf %200, %203 : vector<17x17xf32>
    %205 = math.exp %204 : vector<17x17xf32>
    %cst_68 = arith.constant dense<0.000000e+00> : vector<17xf32>
    %206 = vector.multi_reduction <add>, %205, %cst_68 [1] : vector<17x17xf32> to vector<17xf32>
    %207 = vector.shape_cast %206 : vector<17xf32> to vector<17x1xf32>
    %208 = tpu.reciprocal %207 {approx = true} : vector<17x1xf32> -> vector<17x1xf32>
    %209 = vector.broadcast %208 : vector<17x1xf32> to vector<17x17xf32>
    %210 = arith.mulf %205, %209 : vector<17x17xf32>
    %211 = arith.truncf %210 : vector<17x17xf32> to vector<17x17xbf16>
    %212 = arith.truncf %197 : vector<17x16xf32> to vector<17x16xbf16>
    %cst_69 = arith.constant dense<0.000000e+00> : vector<17x16xf32>
    %213 = tpu.matmul %211, %212, %cst_69 {dimension_numbers = #tpu.dot_dimension_numbers<[1], [0], [0], [1], [0, 0, 1, 1], [], []>} : vector<17x17xbf16>, vector<17x16xbf16>, vector<17x16xf32> -> vector<17x16xf32>
    %214 = vector.extract_strided_slice %194 {offsets = [0, 16], sizes = [17, 16], strides = [1, 1]} : vector<34x96xf32> to vector<17x16xf32>
    %215 = vector.extract_strided_slice %194 {offsets = [0, 48], sizes = [17, 16], strides = [1, 1]} : vector<34x96xf32> to vector<17x16xf32>
    %216 = vector.extract_strided_slice %194 {offsets = [0, 80], sizes = [17, 16], strides = [1, 1]} : vector<34x96xf32> to vector<17x16xf32>
    %217 = arith.truncf %214 : vector<17x16xf32> to vector<17x16xbf16>
    %218 = arith.truncf %215 : vector<17x16xf32> to vector<17x16xbf16>
    %cst_70 = arith.constant dense<0.000000e+00> : vector<17x17xf32>
    %219 = tpu.matmul %217, %218, %cst_70 {dimension_numbers = #tpu.dot_dimension_numbers<[1], [1], [0], [0], [0, 0, 1, 0], [], []>} : vector<17x16xbf16>, vector<17x16xbf16>, vector<17x17xf32> -> vector<17x17xf32>
    %cst_71 = arith.constant dense<0xFF800000> : vector<17xf32>
    %220 = vector.multi_reduction <maximumf>, %219, %cst_71 [1] : vector<17x17xf32> to vector<17xf32>
    %221 = vector.shape_cast %220 : vector<17xf32> to vector<17x1xf32>
    %222 = vector.broadcast %221 : vector<17x1xf32> to vector<17x17xf32>
    %223 = arith.subf %219, %222 : vector<17x17xf32>
    %224 = math.exp %223 : vector<17x17xf32>
    %cst_72 = arith.constant dense<0.000000e+00> : vector<17xf32>
    %225 = vector.multi_reduction <add>, %224, %cst_72 [1] : vector<17x17xf32> to vector<17xf32>
    %226 = vector.shape_cast %225 : vector<17xf32> to vector<17x1xf32>
    %227 = tpu.reciprocal %226 {approx = true} : vector<17x1xf32> -> vector<17x1xf32>
    %228 = vector.broadcast %227 : vector<17x1xf32> to vector<17x17xf32>
    %229 = arith.mulf %224, %228 : vector<17x17xf32>
    %230 = arith.truncf %229 : vector<17x17xf32> to vector<17x17xbf16>
    %231 = arith.truncf %216 : vector<17x16xf32> to vector<17x16xbf16>
    %cst_73 = arith.constant dense<0.000000e+00> : vector<17x16xf32>
    %232 = tpu.matmul %230, %231, %cst_73 {dimension_numbers = #tpu.dot_dimension_numbers<[1], [0], [0], [1], [0, 0, 1, 1], [], []>} : vector<17x17xbf16>, vector<17x16xbf16>, vector<17x16xf32> -> vector<17x16xf32>
    %233 = tpu.concatenate %213, %232 in 1 : vector<17x16xf32>, vector<17x16xf32> -> vector<17x32xf32>
    %234 = vector.extract_strided_slice %194 {offsets = [17, 0], sizes = [17, 16], strides = [1, 1]} : vector<34x96xf32> to vector<17x16xf32>
    %235 = vector.extract_strided_slice %194 {offsets = [17, 32], sizes = [17, 16], strides = [1, 1]} : vector<34x96xf32> to vector<17x16xf32>
    %236 = vector.extract_strided_slice %194 {offsets = [17, 64], sizes = [17, 16], strides = [1, 1]} : vector<34x96xf32> to vector<17x16xf32>
    %237 = arith.truncf %234 : vector<17x16xf32> to vector<17x16xbf16>
    %238 = arith.truncf %235 : vector<17x16xf32> to vector<17x16xbf16>
    %cst_74 = arith.constant dense<0.000000e+00> : vector<17x17xf32>
    %239 = tpu.matmul %237, %238, %cst_74 {dimension_numbers = #tpu.dot_dimension_numbers<[1], [1], [0], [0], [0, 0, 1, 0], [], []>} : vector<17x16xbf16>, vector<17x16xbf16>, vector<17x17xf32> -> vector<17x17xf32>
    %cst_75 = arith.constant dense<0xFF800000> : vector<17xf32>
    %240 = vector.multi_reduction <maximumf>, %239, %cst_75 [1] : vector<17x17xf32> to vector<17xf32>
    %241 = vector.shape_cast %240 : vector<17xf32> to vector<17x1xf32>
    %242 = vector.broadcast %241 : vector<17x1xf32> to vector<17x17xf32>
    %243 = arith.subf %239, %242 : vector<17x17xf32>
    %244 = math.exp %243 : vector<17x17xf32>
    %cst_76 = arith.constant dense<0.000000e+00> : vector<17xf32>
    %245 = vector.multi_reduction <add>, %244, %cst_76 [1] : vector<17x17xf32> to vector<17xf32>
    %246 = vector.shape_cast %245 : vector<17xf32> to vector<17x1xf32>
    %247 = tpu.reciprocal %246 {approx = true} : vector<17x1xf32> -> vector<17x1xf32>
    %248 = vector.broadcast %247 : vector<17x1xf32> to vector<17x17xf32>
    %249 = arith.mulf %244, %248 : vector<17x17xf32>
    %250 = arith.truncf %249 : vector<17x17xf32> to vector<17x17xbf16>
    %251 = arith.truncf %236 : vector<17x16xf32> to vector<17x16xbf16>
    %cst_77 = arith.constant dense<0.000000e+00> : vector<17x16xf32>
    %252 = tpu.matmul %250, %251, %cst_77 {dimension_numbers = #tpu.dot_dimension_numbers<[1], [0], [0], [1], [0, 0, 1, 1], [], []>} : vector<17x17xbf16>, vector<17x16xbf16>, vector<17x16xf32> -> vector<17x16xf32>
    %253 = vector.extract_strided_slice %194 {offsets = [17, 16], sizes = [17, 16], strides = [1, 1]} : vector<34x96xf32> to vector<17x16xf32>
    %254 = vector.extract_strided_slice %194 {offsets = [17, 48], sizes = [17, 16], strides = [1, 1]} : vector<34x96xf32> to vector<17x16xf32>
    %255 = vector.extract_strided_slice %194 {offsets = [17, 80], sizes = [17, 16], strides = [1, 1]} : vector<34x96xf32> to vector<17x16xf32>
    %256 = arith.truncf %253 : vector<17x16xf32> to vector<17x16xbf16>
    %257 = arith.truncf %254 : vector<17x16xf32> to vector<17x16xbf16>
    %cst_78 = arith.constant dense<0.000000e+00> : vector<17x17xf32>
    %258 = tpu.matmul %256, %257, %cst_78 {dimension_numbers = #tpu.dot_dimension_numbers<[1], [1], [0], [0], [0, 0, 1, 0], [], []>} : vector<17x16xbf16>, vector<17x16xbf16>, vector<17x17xf32> -> vector<17x17xf32>
    %cst_79 = arith.constant dense<0xFF800000> : vector<17xf32>
    %259 = vector.multi_reduction <maximumf>, %258, %cst_79 [1] : vector<17x17xf32> to vector<17xf32>
    %260 = vector.shape_cast %259 : vector<17xf32> to vector<17x1xf32>
    %261 = vector.broadcast %260 : vector<17x1xf32> to vector<17x17xf32>
    %262 = arith.subf %258, %261 : vector<17x17xf32>
    %263 = math.exp %262 : vector<17x17xf32>
    %cst_80 = arith.constant dense<0.000000e+00> : vector<17xf32>
    %264 = vector.multi_reduction <add>, %263, %cst_80 [1] : vector<17x17xf32> to vector<17xf32>
    %265 = vector.shape_cast %264 : vector<17xf32> to vector<17x1xf32>
    %266 = tpu.reciprocal %265 {approx = true} : vector<17x1xf32> -> vector<17x1xf32>
    %267 = vector.broadcast %266 : vector<17x1xf32> to vector<17x17xf32>
    %268 = arith.mulf %263, %267 : vector<17x17xf32>
    %269 = arith.truncf %268 : vector<17x17xf32> to vector<17x17xbf16>
    %270 = arith.truncf %255 : vector<17x16xf32> to vector<17x16xbf16>
    %cst_81 = arith.constant dense<0.000000e+00> : vector<17x16xf32>
    %271 = tpu.matmul %269, %270, %cst_81 {dimension_numbers = #tpu.dot_dimension_numbers<[1], [0], [0], [1], [0, 0, 1, 1], [], []>} : vector<17x17xbf16>, vector<17x16xbf16>, vector<17x16xf32> -> vector<17x16xf32>
    %272 = tpu.concatenate %252, %271 in 1 : vector<17x16xf32>, vector<17x16xf32> -> vector<17x32xf32>
    %273 = tpu.concatenate %233, %272 in 0 : vector<17x32xf32>, vector<17x32xf32> -> vector<34x32xf32>
    %c392 = arith.constant 392 : index
    %c0_82 = arith.constant 0 : index
    %274 = vector.load %arg2[%c392, %c0_82] : memref<744x32xf32, #tpu.memory_space<vmem>>, vector<32x32xf32>
    %275 = arith.truncf %273 : vector<34x32xf32> to vector<34x32xbf16>
    %276 = arith.truncf %274 : vector<32x32xf32> to vector<32x32xbf16>
    %cst_83 = arith.constant dense<0.000000e+00> : vector<34x32xf32>
    %277 = tpu.matmul %275, %276, %cst_83 {dimension_numbers = #tpu.dot_dimension_numbers<[1], [0], [0], [1], [0, 0, 1, 1], [], []>} : vector<34x32xbf16>, vector<32x32xbf16>, vector<34x32xf32> -> vector<34x32xf32>
    %278 = arith.addf %169, %277 : vector<34x32xf32>
    %c424 = arith.constant 424 : index
    %c0_84 = arith.constant 0 : index
    %279 = vector.load %arg2[%c424, %c0_84] : memref<744x32xf32, #tpu.memory_space<vmem>>, vector<1x32xf32>
    %280 = vector.broadcast %279 : vector<1x32xf32> to vector<34x32xf32>
    %281 = arith.addf %278, %280 : vector<34x32xf32>
    %cst_85 = arith.constant dense<0.000000e+00> : vector<34xf32>
    %282 = vector.multi_reduction <add>, %281, %cst_85 [1] : vector<34x32xf32> to vector<34xf32>
    %283 = vector.shape_cast %282 : vector<34xf32> to vector<34x1xf32>
    %cst_86 = arith.constant 3.200000e+01 : f32
    %284 = vector.broadcast %cst_86 : f32 to vector<34x1xf32>
    %285 = arith.divf %283, %284 : vector<34x1xf32>
    %286 = vector.broadcast %285 : vector<34x1xf32> to vector<34x32xf32>
    %287 = arith.subf %281, %286 : vector<34x32xf32>
    %288 = arith.mulf %287, %287 : vector<34x32xf32>
    %cst_87 = arith.constant dense<0.000000e+00> : vector<34xf32>
    %289 = vector.multi_reduction <add>, %288, %cst_87 [1] : vector<34x32xf32> to vector<34xf32>
    %290 = vector.shape_cast %289 : vector<34xf32> to vector<34x1xf32>
    %cst_88 = arith.constant 3.200000e+01 : f32
    %291 = vector.broadcast %cst_88 : f32 to vector<34x1xf32>
    %292 = arith.divf %290, %291 : vector<34x1xf32>
    %cst_89 = arith.constant 9.99999997E-7 : f32
    %293 = vector.broadcast %cst_89 : f32 to vector<34x1xf32>
    %294 = arith.addf %292, %293 : vector<34x1xf32>
    %295 = math.rsqrt %294 : vector<34x1xf32>
    %296 = vector.broadcast %295 : vector<34x1xf32> to vector<34x32xf32>
    %297 = arith.mulf %287, %296 : vector<34x32xf32>
    %298 = arith.truncf %297 : vector<34x32xf32> to vector<34x32xbf16>
    %299 = arith.truncf %170 : vector<32x128xf32> to vector<32x128xbf16>
    %cst_90 = arith.constant dense<0.000000e+00> : vector<34x128xf32>
    %300 = tpu.matmul %298, %299, %cst_90 {dimension_numbers = #tpu.dot_dimension_numbers<[1], [0], [0], [1], [0, 0, 1, 1], [], []>} : vector<34x32xbf16>, vector<32x128xbf16>, vector<34x128xf32> -> vector<34x128xf32>
    %301 = vector.broadcast %172 : vector<1x128xf32> to vector<34x128xf32>
    %302 = arith.addf %300, %301 : vector<34x128xf32>
    %303 = arith.mulf %302, %302 : vector<34x128xf32>
    %304 = arith.mulf %302, %303 : vector<34x128xf32>
    %cst_91 = arith.constant 4.471500e-02 : f32
    %305 = vector.broadcast %cst_91 : f32 to vector<34x128xf32>
    %306 = arith.mulf %305, %304 : vector<34x128xf32>
    %307 = arith.addf %302, %306 : vector<34x128xf32>
    %cst_92 = arith.constant 0.797884583 : f32
    %308 = vector.broadcast %cst_92 : f32 to vector<34x128xf32>
    %309 = arith.mulf %308, %307 : vector<34x128xf32>
    %310 = math.tanh %309 : vector<34x128xf32>
    %cst_93 = arith.constant 1.000000e+00 : f32
    %311 = vector.broadcast %cst_93 : f32 to vector<34x128xf32>
    %312 = arith.addf %311, %310 : vector<34x128xf32>
    %cst_94 = arith.constant 5.000000e-01 : f32
    %313 = vector.broadcast %cst_94 : f32 to vector<34x128xf32>
    %314 = arith.mulf %313, %312 : vector<34x128xf32>
    %315 = arith.mulf %302, %314 : vector<34x128xf32>
    %c432 = arith.constant 432 : index
    %c0_95 = arith.constant 0 : index
    %316 = vector.load %arg2[%c432, %c0_95] : memref<744x32xf32, #tpu.memory_space<vmem>>, vector<128x32xf32>
    %317 = arith.truncf %315 : vector<34x128xf32> to vector<34x128xbf16>
    %318 = arith.truncf %316 : vector<128x32xf32> to vector<128x32xbf16>
    %cst_96 = arith.constant dense<0.000000e+00> : vector<34x32xf32>
    %319 = tpu.matmul %317, %318, %cst_96 {dimension_numbers = #tpu.dot_dimension_numbers<[1], [0], [0], [1], [0, 0, 1, 1], [], []>} : vector<34x128xbf16>, vector<128x32xbf16>, vector<34x32xf32> -> vector<34x32xf32>
    %c560 = arith.constant 560 : index
    %c0_97 = arith.constant 0 : index
    %320 = vector.load %arg2[%c560, %c0_97] : memref<744x32xf32, #tpu.memory_space<vmem>>, vector<1x32xf32>
    %321 = vector.broadcast %320 : vector<1x32xf32> to vector<34x32xf32>
    %322 = arith.addf %319, %321 : vector<34x32xf32>
    %323 = arith.addf %281, %322 : vector<34x32xf32>
    %cst_98 = arith.constant dense<0.000000e+00> : vector<34xf32>
    %324 = vector.multi_reduction <add>, %323, %cst_98 [1] : vector<34x32xf32> to vector<34xf32>
    %325 = vector.shape_cast %324 : vector<34xf32> to vector<34x1xf32>
    %cst_99 = arith.constant 3.200000e+01 : f32
    %326 = vector.broadcast %cst_99 : f32 to vector<34x1xf32>
    %327 = arith.divf %325, %326 : vector<34x1xf32>
    %328 = vector.broadcast %327 : vector<34x1xf32> to vector<34x32xf32>
    %329 = arith.subf %323, %328 : vector<34x32xf32>
    %330 = arith.mulf %329, %329 : vector<34x32xf32>
    %cst_100 = arith.constant dense<0.000000e+00> : vector<34xf32>
    %331 = vector.multi_reduction <add>, %330, %cst_100 [1] : vector<34x32xf32> to vector<34xf32>
    %332 = vector.shape_cast %331 : vector<34xf32> to vector<34x1xf32>
    %cst_101 = arith.constant 3.200000e+01 : f32
    %333 = vector.broadcast %cst_101 : f32 to vector<34x1xf32>
    %334 = arith.divf %332, %333 : vector<34x1xf32>
    %cst_102 = arith.constant 9.99999997E-7 : f32
    %335 = vector.broadcast %cst_102 : f32 to vector<34x1xf32>
    %336 = arith.addf %334, %335 : vector<34x1xf32>
    %337 = math.rsqrt %336 : vector<34x1xf32>
    %338 = vector.broadcast %337 : vector<34x1xf32> to vector<34x32xf32>
    %339 = arith.mulf %329, %338 : vector<34x32xf32>
    %c88 = arith.constant 88 : index
    %c0_103 = arith.constant 0 : index
    %340 = vector.load %arg2[%c88, %c0_103] : memref<744x32xf32, #tpu.memory_space<vmem>>, vector<32x32xf32>
    %341 = arith.truncf %339 : vector<34x32xf32> to vector<34x32xbf16>
    %342 = arith.truncf %340 : vector<32x32xf32> to vector<32x32xbf16>
    %cst_104 = arith.constant dense<0.000000e+00> : vector<34x32xf32>
    %343 = tpu.matmul %341, %342, %cst_104 {dimension_numbers = #tpu.dot_dimension_numbers<[1], [0], [0], [1], [0, 0, 1, 1], [], []>} : vector<34x32xbf16>, vector<32x32xbf16>, vector<34x32xf32> -> vector<34x32xf32>
    %c120 = arith.constant 120 : index
    %c0_105 = arith.constant 0 : index
    %344 = vector.load %arg2[%c120, %c0_105] : memref<744x32xf32, #tpu.memory_space<vmem>>, vector<1x32xf32>
    %345 = vector.broadcast %344 : vector<1x32xf32> to vector<34x32xf32>
    %346 = arith.addf %343, %345 : vector<34x32xf32>
    %c128_106 = arith.constant 128 : index
    %c0_107 = arith.constant 0 : index
    %347 = vector.load %arg2[%c128_106, %c0_107] : memref<744x32xf32, #tpu.memory_space<vmem>>, vector<4x32xf32>
    %348 = vector.extract_strided_slice %346 {offsets = [0, 0], sizes = [16, 32], strides = [1, 1]} : vector<34x32xf32> to vector<16x32xf32>
    %349 = vector.extract_strided_slice %346 {offsets = [17, 0], sizes = [16, 32], strides = [1, 1]} : vector<34x32xf32> to vector<16x32xf32>
    %350 = tpu.concatenate %348, %347, %349, %347 in 0 : vector<16x32xf32>, vector<4x32xf32>, vector<16x32xf32>, vector<4x32xf32> -> vector<40x32xf32>
    %c80 = arith.constant 80 : index
    %c0_108 = arith.constant 0 : index
    %351 = vector.load %arg3[%c80, %c0_108] : memref<120x224xf32, #tpu.memory_space<vmem>>, vector<32x128xf32>
    %c80_109 = arith.constant 80 : index
    %c128_110 = arith.constant 128 : index
    %352 = vector.load %arg3[%c80_109, %c128_110] : memref<120x224xf32, #tpu.memory_space<vmem>>, vector<32x96xf32>
    %c112 = arith.constant 112 : index
    %c0_111 = arith.constant 0 : index
    %353 = vector.load %arg3[%c112, %c0_111] : memref<120x224xf32, #tpu.memory_space<vmem>>, vector<1x128xf32>
    %c112_112 = arith.constant 112 : index
    %c128_113 = arith.constant 128 : index
    %354 = vector.load %arg3[%c112_112, %c128_113] : memref<120x224xf32, #tpu.memory_space<vmem>>, vector<1x96xf32>
    %cst_114 = arith.constant dense<0.000000e+00> : vector<40xf32>
    %355 = vector.multi_reduction <add>, %350, %cst_114 [1] : vector<40x32xf32> to vector<40xf32>
    %356 = vector.shape_cast %355 : vector<40xf32> to vector<40x1xf32>
    %cst_115 = arith.constant 3.200000e+01 : f32
    %357 = vector.broadcast %cst_115 : f32 to vector<40x1xf32>
    %358 = arith.divf %356, %357 : vector<40x1xf32>
    %359 = vector.broadcast %358 : vector<40x1xf32> to vector<40x32xf32>
    %360 = arith.subf %350, %359 : vector<40x32xf32>
    %361 = arith.mulf %360, %360 : vector<40x32xf32>
    %cst_116 = arith.constant dense<0.000000e+00> : vector<40xf32>
    %362 = vector.multi_reduction <add>, %361, %cst_116 [1] : vector<40x32xf32> to vector<40xf32>
    %363 = vector.shape_cast %362 : vector<40xf32> to vector<40x1xf32>
    %cst_117 = arith.constant 3.200000e+01 : f32
    %364 = vector.broadcast %cst_117 : f32 to vector<40x1xf32>
    %365 = arith.divf %363, %364 : vector<40x1xf32>
    %cst_118 = arith.constant 9.99999997E-7 : f32
    %366 = vector.broadcast %cst_118 : f32 to vector<40x1xf32>
    %367 = arith.addf %365, %366 : vector<40x1xf32>
    %368 = math.rsqrt %367 : vector<40x1xf32>
    %369 = vector.broadcast %368 : vector<40x1xf32> to vector<40x32xf32>
    %370 = arith.mulf %360, %369 : vector<40x32xf32>
    %371 = arith.truncf %370 : vector<40x32xf32> to vector<40x32xbf16>
    %372 = arith.truncf %352 : vector<32x96xf32> to vector<32x96xbf16>
    %cst_119 = arith.constant dense<0.000000e+00> : vector<40x96xf32>
    %373 = tpu.matmul %371, %372, %cst_119 {dimension_numbers = #tpu.dot_dimension_numbers<[1], [0], [0], [1], [0, 0, 1, 1], [], []>} : vector<40x32xbf16>, vector<32x96xbf16>, vector<40x96xf32> -> vector<40x96xf32>
    %374 = vector.broadcast %354 : vector<1x96xf32> to vector<40x96xf32>
    %375 = arith.addf %373, %374 : vector<40x96xf32>
    %376 = vector.extract_strided_slice %375 {offsets = [0, 0], sizes = [20, 16], strides = [1, 1]} : vector<40x96xf32> to vector<20x16xf32>
    %377 = vector.extract_strided_slice %375 {offsets = [0, 32], sizes = [20, 16], strides = [1, 1]} : vector<40x96xf32> to vector<20x16xf32>
    %378 = vector.extract_strided_slice %375 {offsets = [0, 64], sizes = [20, 16], strides = [1, 1]} : vector<40x96xf32> to vector<20x16xf32>
    %379 = arith.truncf %376 : vector<20x16xf32> to vector<20x16xbf16>
    %380 = arith.truncf %377 : vector<20x16xf32> to vector<20x16xbf16>
    %cst_120 = arith.constant dense<0.000000e+00> : vector<20x20xf32>
    %381 = tpu.matmul %379, %380, %cst_120 {dimension_numbers = #tpu.dot_dimension_numbers<[1], [1], [0], [0], [0, 0, 1, 0], [], []>} : vector<20x16xbf16>, vector<20x16xbf16>, vector<20x20xf32> -> vector<20x20xf32>
    %cst_121 = arith.constant dense<0xFF800000> : vector<20xf32>
    %382 = vector.multi_reduction <maximumf>, %381, %cst_121 [1] : vector<20x20xf32> to vector<20xf32>
    %383 = vector.shape_cast %382 : vector<20xf32> to vector<20x1xf32>
    %384 = vector.broadcast %383 : vector<20x1xf32> to vector<20x20xf32>
    %385 = arith.subf %381, %384 : vector<20x20xf32>
    %386 = math.exp %385 : vector<20x20xf32>
    %cst_122 = arith.constant dense<0.000000e+00> : vector<20xf32>
    %387 = vector.multi_reduction <add>, %386, %cst_122 [1] : vector<20x20xf32> to vector<20xf32>
    %388 = vector.shape_cast %387 : vector<20xf32> to vector<20x1xf32>
    %389 = tpu.reciprocal %388 {approx = true} : vector<20x1xf32> -> vector<20x1xf32>
    %390 = vector.broadcast %389 : vector<20x1xf32> to vector<20x20xf32>
    %391 = arith.mulf %386, %390 : vector<20x20xf32>
    %392 = arith.truncf %391 : vector<20x20xf32> to vector<20x20xbf16>
    %393 = arith.truncf %378 : vector<20x16xf32> to vector<20x16xbf16>
    %cst_123 = arith.constant dense<0.000000e+00> : vector<20x16xf32>
    %394 = tpu.matmul %392, %393, %cst_123 {dimension_numbers = #tpu.dot_dimension_numbers<[1], [0], [0], [1], [0, 0, 1, 1], [], []>} : vector<20x20xbf16>, vector<20x16xbf16>, vector<20x16xf32> -> vector<20x16xf32>
    %395 = vector.extract_strided_slice %375 {offsets = [0, 16], sizes = [20, 16], strides = [1, 1]} : vector<40x96xf32> to vector<20x16xf32>
    %396 = vector.extract_strided_slice %375 {offsets = [0, 48], sizes = [20, 16], strides = [1, 1]} : vector<40x96xf32> to vector<20x16xf32>
    %397 = vector.extract_strided_slice %375 {offsets = [0, 80], sizes = [20, 16], strides = [1, 1]} : vector<40x96xf32> to vector<20x16xf32>
    %398 = arith.truncf %395 : vector<20x16xf32> to vector<20x16xbf16>
    %399 = arith.truncf %396 : vector<20x16xf32> to vector<20x16xbf16>
    %cst_124 = arith.constant dense<0.000000e+00> : vector<20x20xf32>
    %400 = tpu.matmul %398, %399, %cst_124 {dimension_numbers = #tpu.dot_dimension_numbers<[1], [1], [0], [0], [0, 0, 1, 0], [], []>} : vector<20x16xbf16>, vector<20x16xbf16>, vector<20x20xf32> -> vector<20x20xf32>
    %cst_125 = arith.constant dense<0xFF800000> : vector<20xf32>
    %401 = vector.multi_reduction <maximumf>, %400, %cst_125 [1] : vector<20x20xf32> to vector<20xf32>
    %402 = vector.shape_cast %401 : vector<20xf32> to vector<20x1xf32>
    %403 = vector.broadcast %402 : vector<20x1xf32> to vector<20x20xf32>
    %404 = arith.subf %400, %403 : vector<20x20xf32>
    %405 = math.exp %404 : vector<20x20xf32>
    %cst_126 = arith.constant dense<0.000000e+00> : vector<20xf32>
    %406 = vector.multi_reduction <add>, %405, %cst_126 [1] : vector<20x20xf32> to vector<20xf32>
    %407 = vector.shape_cast %406 : vector<20xf32> to vector<20x1xf32>
    %408 = tpu.reciprocal %407 {approx = true} : vector<20x1xf32> -> vector<20x1xf32>
    %409 = vector.broadcast %408 : vector<20x1xf32> to vector<20x20xf32>
    %410 = arith.mulf %405, %409 : vector<20x20xf32>
    %411 = arith.truncf %410 : vector<20x20xf32> to vector<20x20xbf16>
    %412 = arith.truncf %397 : vector<20x16xf32> to vector<20x16xbf16>
    %cst_127 = arith.constant dense<0.000000e+00> : vector<20x16xf32>
    %413 = tpu.matmul %411, %412, %cst_127 {dimension_numbers = #tpu.dot_dimension_numbers<[1], [0], [0], [1], [0, 0, 1, 1], [], []>} : vector<20x20xbf16>, vector<20x16xbf16>, vector<20x16xf32> -> vector<20x16xf32>
    %414 = tpu.concatenate %394, %413 in 1 : vector<20x16xf32>, vector<20x16xf32> -> vector<20x32xf32>
    %415 = vector.extract_strided_slice %375 {offsets = [20, 0], sizes = [20, 16], strides = [1, 1]} : vector<40x96xf32> to vector<20x16xf32>
    %416 = vector.extract_strided_slice %375 {offsets = [20, 32], sizes = [20, 16], strides = [1, 1]} : vector<40x96xf32> to vector<20x16xf32>
    %417 = vector.extract_strided_slice %375 {offsets = [20, 64], sizes = [20, 16], strides = [1, 1]} : vector<40x96xf32> to vector<20x16xf32>
    %418 = arith.truncf %415 : vector<20x16xf32> to vector<20x16xbf16>
    %419 = arith.truncf %416 : vector<20x16xf32> to vector<20x16xbf16>
    %cst_128 = arith.constant dense<0.000000e+00> : vector<20x20xf32>
    %420 = tpu.matmul %418, %419, %cst_128 {dimension_numbers = #tpu.dot_dimension_numbers<[1], [1], [0], [0], [0, 0, 1, 0], [], []>} : vector<20x16xbf16>, vector<20x16xbf16>, vector<20x20xf32> -> vector<20x20xf32>
    %cst_129 = arith.constant dense<0xFF800000> : vector<20xf32>
    %421 = vector.multi_reduction <maximumf>, %420, %cst_129 [1] : vector<20x20xf32> to vector<20xf32>
    %422 = vector.shape_cast %421 : vector<20xf32> to vector<20x1xf32>
    %423 = vector.broadcast %422 : vector<20x1xf32> to vector<20x20xf32>
    %424 = arith.subf %420, %423 : vector<20x20xf32>
    %425 = math.exp %424 : vector<20x20xf32>
    %cst_130 = arith.constant dense<0.000000e+00> : vector<20xf32>
    %426 = vector.multi_reduction <add>, %425, %cst_130 [1] : vector<20x20xf32> to vector<20xf32>
    %427 = vector.shape_cast %426 : vector<20xf32> to vector<20x1xf32>
    %428 = tpu.reciprocal %427 {approx = true} : vector<20x1xf32> -> vector<20x1xf32>
    %429 = vector.broadcast %428 : vector<20x1xf32> to vector<20x20xf32>
    %430 = arith.mulf %425, %429 : vector<20x20xf32>
    %431 = arith.truncf %430 : vector<20x20xf32> to vector<20x20xbf16>
    %432 = arith.truncf %417 : vector<20x16xf32> to vector<20x16xbf16>
    %cst_131 = arith.constant dense<0.000000e+00> : vector<20x16xf32>
    %433 = tpu.matmul %431, %432, %cst_131 {dimension_numbers = #tpu.dot_dimension_numbers<[1], [0], [0], [1], [0, 0, 1, 1], [], []>} : vector<20x20xbf16>, vector<20x16xbf16>, vector<20x16xf32> -> vector<20x16xf32>
    %434 = vector.extract_strided_slice %375 {offsets = [20, 16], sizes = [20, 16], strides = [1, 1]} : vector<40x96xf32> to vector<20x16xf32>
    %435 = vector.extract_strided_slice %375 {offsets = [20, 48], sizes = [20, 16], strides = [1, 1]} : vector<40x96xf32> to vector<20x16xf32>
    %436 = vector.extract_strided_slice %375 {offsets = [20, 80], sizes = [20, 16], strides = [1, 1]} : vector<40x96xf32> to vector<20x16xf32>
    %437 = arith.truncf %434 : vector<20x16xf32> to vector<20x16xbf16>
    %438 = arith.truncf %435 : vector<20x16xf32> to vector<20x16xbf16>
    %cst_132 = arith.constant dense<0.000000e+00> : vector<20x20xf32>
    %439 = tpu.matmul %437, %438, %cst_132 {dimension_numbers = #tpu.dot_dimension_numbers<[1], [1], [0], [0], [0, 0, 1, 0], [], []>} : vector<20x16xbf16>, vector<20x16xbf16>, vector<20x20xf32> -> vector<20x20xf32>
    %cst_133 = arith.constant dense<0xFF800000> : vector<20xf32>
    %440 = vector.multi_reduction <maximumf>, %439, %cst_133 [1] : vector<20x20xf32> to vector<20xf32>
    %441 = vector.shape_cast %440 : vector<20xf32> to vector<20x1xf32>
    %442 = vector.broadcast %441 : vector<20x1xf32> to vector<20x20xf32>
    %443 = arith.subf %439, %442 : vector<20x20xf32>
    %444 = math.exp %443 : vector<20x20xf32>
    %cst_134 = arith.constant dense<0.000000e+00> : vector<20xf32>
    %445 = vector.multi_reduction <add>, %444, %cst_134 [1] : vector<20x20xf32> to vector<20xf32>
    %446 = vector.shape_cast %445 : vector<20xf32> to vector<20x1xf32>
    %447 = tpu.reciprocal %446 {approx = true} : vector<20x1xf32> -> vector<20x1xf32>
    %448 = vector.broadcast %447 : vector<20x1xf32> to vector<20x20xf32>
    %449 = arith.mulf %444, %448 : vector<20x20xf32>
    %450 = arith.truncf %449 : vector<20x20xf32> to vector<20x20xbf16>
    %451 = arith.truncf %436 : vector<20x16xf32> to vector<20x16xbf16>
    %cst_135 = arith.constant dense<0.000000e+00> : vector<20x16xf32>
    %452 = tpu.matmul %450, %451, %cst_135 {dimension_numbers = #tpu.dot_dimension_numbers<[1], [0], [0], [1], [0, 0, 1, 1], [], []>} : vector<20x20xbf16>, vector<20x16xbf16>, vector<20x16xf32> -> vector<20x16xf32>
    %453 = tpu.concatenate %433, %452 in 1 : vector<20x16xf32>, vector<20x16xf32> -> vector<20x32xf32>
    %454 = tpu.concatenate %414, %453 in 0 : vector<20x32xf32>, vector<20x32xf32> -> vector<40x32xf32>
    %c568 = arith.constant 568 : index
    %c0_136 = arith.constant 0 : index
    %455 = vector.load %arg2[%c568, %c0_136] : memref<744x32xf32, #tpu.memory_space<vmem>>, vector<32x32xf32>
    %456 = arith.truncf %454 : vector<40x32xf32> to vector<40x32xbf16>
    %457 = arith.truncf %455 : vector<32x32xf32> to vector<32x32xbf16>
    %cst_137 = arith.constant dense<0.000000e+00> : vector<40x32xf32>
    %458 = tpu.matmul %456, %457, %cst_137 {dimension_numbers = #tpu.dot_dimension_numbers<[1], [0], [0], [1], [0, 0, 1, 1], [], []>} : vector<40x32xbf16>, vector<32x32xbf16>, vector<40x32xf32> -> vector<40x32xf32>
    %459 = arith.addf %350, %458 : vector<40x32xf32>
    %c600 = arith.constant 600 : index
    %c0_138 = arith.constant 0 : index
    %460 = vector.load %arg2[%c600, %c0_138] : memref<744x32xf32, #tpu.memory_space<vmem>>, vector<1x32xf32>
    %461 = vector.broadcast %460 : vector<1x32xf32> to vector<40x32xf32>
    %462 = arith.addf %459, %461 : vector<40x32xf32>
    %cst_139 = arith.constant dense<0.000000e+00> : vector<40xf32>
    %463 = vector.multi_reduction <add>, %462, %cst_139 [1] : vector<40x32xf32> to vector<40xf32>
    %464 = vector.shape_cast %463 : vector<40xf32> to vector<40x1xf32>
    %cst_140 = arith.constant 3.200000e+01 : f32
    %465 = vector.broadcast %cst_140 : f32 to vector<40x1xf32>
    %466 = arith.divf %464, %465 : vector<40x1xf32>
    %467 = vector.broadcast %466 : vector<40x1xf32> to vector<40x32xf32>
    %468 = arith.subf %462, %467 : vector<40x32xf32>
    %469 = arith.mulf %468, %468 : vector<40x32xf32>
    %cst_141 = arith.constant dense<0.000000e+00> : vector<40xf32>
    %470 = vector.multi_reduction <add>, %469, %cst_141 [1] : vector<40x32xf32> to vector<40xf32>
    %471 = vector.shape_cast %470 : vector<40xf32> to vector<40x1xf32>
    %cst_142 = arith.constant 3.200000e+01 : f32
    %472 = vector.broadcast %cst_142 : f32 to vector<40x1xf32>
    %473 = arith.divf %471, %472 : vector<40x1xf32>
    %cst_143 = arith.constant 9.99999997E-7 : f32
    %474 = vector.broadcast %cst_143 : f32 to vector<40x1xf32>
    %475 = arith.addf %473, %474 : vector<40x1xf32>
    %476 = math.rsqrt %475 : vector<40x1xf32>
    %477 = vector.broadcast %476 : vector<40x1xf32> to vector<40x32xf32>
    %478 = arith.mulf %468, %477 : vector<40x32xf32>
    %479 = arith.truncf %478 : vector<40x32xf32> to vector<40x32xbf16>
    %480 = arith.truncf %351 : vector<32x128xf32> to vector<32x128xbf16>
    %cst_144 = arith.constant dense<0.000000e+00> : vector<40x128xf32>
    %481 = tpu.matmul %479, %480, %cst_144 {dimension_numbers = #tpu.dot_dimension_numbers<[1], [0], [0], [1], [0, 0, 1, 1], [], []>} : vector<40x32xbf16>, vector<32x128xbf16>, vector<40x128xf32> -> vector<40x128xf32>
    %482 = vector.broadcast %353 : vector<1x128xf32> to vector<40x128xf32>
    %483 = arith.addf %481, %482 : vector<40x128xf32>
    %484 = arith.mulf %483, %483 : vector<40x128xf32>
    %485 = arith.mulf %483, %484 : vector<40x128xf32>
    %cst_145 = arith.constant 4.471500e-02 : f32
    %486 = vector.broadcast %cst_145 : f32 to vector<40x128xf32>
    %487 = arith.mulf %486, %485 : vector<40x128xf32>
    %488 = arith.addf %483, %487 : vector<40x128xf32>
    %cst_146 = arith.constant 0.797884583 : f32
    %489 = vector.broadcast %cst_146 : f32 to vector<40x128xf32>
    %490 = arith.mulf %489, %488 : vector<40x128xf32>
    %491 = math.tanh %490 : vector<40x128xf32>
    %cst_147 = arith.constant 1.000000e+00 : f32
    %492 = vector.broadcast %cst_147 : f32 to vector<40x128xf32>
    %493 = arith.addf %492, %491 : vector<40x128xf32>
    %cst_148 = arith.constant 5.000000e-01 : f32
    %494 = vector.broadcast %cst_148 : f32 to vector<40x128xf32>
    %495 = arith.mulf %494, %493 : vector<40x128xf32>
    %496 = arith.mulf %483, %495 : vector<40x128xf32>
    %c608 = arith.constant 608 : index
    %c0_149 = arith.constant 0 : index
    %497 = vector.load %arg2[%c608, %c0_149] : memref<744x32xf32, #tpu.memory_space<vmem>>, vector<128x32xf32>
    %498 = arith.truncf %496 : vector<40x128xf32> to vector<40x128xbf16>
    %499 = arith.truncf %497 : vector<128x32xf32> to vector<128x32xbf16>
    %cst_150 = arith.constant dense<0.000000e+00> : vector<40x32xf32>
    %500 = tpu.matmul %498, %499, %cst_150 {dimension_numbers = #tpu.dot_dimension_numbers<[1], [0], [0], [1], [0, 0, 1, 1], [], []>} : vector<40x128xbf16>, vector<128x32xbf16>, vector<40x32xf32> -> vector<40x32xf32>
    %c736 = arith.constant 736 : index
    %c0_151 = arith.constant 0 : index
    %501 = vector.load %arg2[%c736, %c0_151] : memref<744x32xf32, #tpu.memory_space<vmem>>, vector<1x32xf32>
    %502 = vector.broadcast %501 : vector<1x32xf32> to vector<40x32xf32>
    %503 = arith.addf %500, %502 : vector<40x32xf32>
    %504 = arith.addf %462, %503 : vector<40x32xf32>
    %cst_152 = arith.constant dense<0.000000e+00> : vector<40xf32>
    %505 = vector.multi_reduction <add>, %504, %cst_152 [1] : vector<40x32xf32> to vector<40xf32>
    %506 = vector.shape_cast %505 : vector<40xf32> to vector<40x1xf32>
    %cst_153 = arith.constant 3.200000e+01 : f32
    %507 = vector.broadcast %cst_153 : f32 to vector<40x1xf32>
    %508 = arith.divf %506, %507 : vector<40x1xf32>
    %509 = vector.broadcast %508 : vector<40x1xf32> to vector<40x32xf32>
    %510 = arith.subf %504, %509 : vector<40x32xf32>
    %511 = arith.mulf %510, %510 : vector<40x32xf32>
    %cst_154 = arith.constant dense<0.000000e+00> : vector<40xf32>
    %512 = vector.multi_reduction <add>, %511, %cst_154 [1] : vector<40x32xf32> to vector<40xf32>
    %513 = vector.shape_cast %512 : vector<40xf32> to vector<40x1xf32>
    %cst_155 = arith.constant 3.200000e+01 : f32
    %514 = vector.broadcast %cst_155 : f32 to vector<40x1xf32>
    %515 = arith.divf %513, %514 : vector<40x1xf32>
    %cst_156 = arith.constant 9.99999997E-7 : f32
    %516 = vector.broadcast %cst_156 : f32 to vector<40x1xf32>
    %517 = arith.addf %515, %516 : vector<40x1xf32>
    %518 = math.rsqrt %517 : vector<40x1xf32>
    %519 = vector.broadcast %518 : vector<40x1xf32> to vector<40x32xf32>
    %520 = arith.mulf %510, %519 : vector<40x32xf32>
    %c136 = arith.constant 136 : index
    %c0_157 = arith.constant 0 : index
    %521 = vector.load %arg2[%c136, %c0_157] : memref<744x32xf32, #tpu.memory_space<vmem>>, vector<32x32xf32>
    %522 = arith.truncf %520 : vector<40x32xf32> to vector<40x32xbf16>
    %523 = arith.truncf %521 : vector<32x32xf32> to vector<32x32xbf16>
    %cst_158 = arith.constant dense<0.000000e+00> : vector<40x32xf32>
    %524 = tpu.matmul %522, %523, %cst_158 {dimension_numbers = #tpu.dot_dimension_numbers<[1], [0], [0], [1], [0, 0, 1, 1], [], []>} : vector<40x32xbf16>, vector<32x32xbf16>, vector<40x32xf32> -> vector<40x32xf32>
    %c168 = arith.constant 168 : index
    %c0_159 = arith.constant 0 : index
    %525 = vector.load %arg2[%c168, %c0_159] : memref<744x32xf32, #tpu.memory_space<vmem>>, vector<1x32xf32>
    %526 = vector.broadcast %525 : vector<1x32xf32> to vector<40x32xf32>
    %527 = arith.addf %524, %526 : vector<40x32xf32>
    %c176 = arith.constant 176 : index
    %c0_160 = arith.constant 0 : index
    %528 = vector.load %arg2[%c176, %c0_160] : memref<744x32xf32, #tpu.memory_space<vmem>>, vector<32x32xf32>
    %529 = arith.truncf %520 : vector<40x32xf32> to vector<40x32xbf16>
    %530 = arith.truncf %528 : vector<32x32xf32> to vector<32x32xbf16>
    %cst_161 = arith.constant dense<0.000000e+00> : vector<40x32xf32>
    %531 = tpu.matmul %529, %530, %cst_161 {dimension_numbers = #tpu.dot_dimension_numbers<[1], [0], [0], [1], [0, 0, 1, 1], [], []>} : vector<40x32xbf16>, vector<32x32xbf16>, vector<40x32xf32> -> vector<40x32xf32>
    %c208 = arith.constant 208 : index
    %c0_162 = arith.constant 0 : index
    %532 = vector.load %arg2[%c208, %c0_162] : memref<744x32xf32, #tpu.memory_space<vmem>>, vector<1x32xf32>
    %533 = vector.broadcast %532 : vector<1x32xf32> to vector<40x32xf32>
    %534 = arith.addf %531, %533 : vector<40x32xf32>
    %535 = arith.mulf %527, %527 : vector<40x32xf32>
    %cst_163 = arith.constant dense<0.000000e+00> : vector<40xf32>
    %536 = vector.multi_reduction <add>, %535, %cst_163 [1] : vector<40x32xf32> to vector<40xf32>
    %537 = vector.shape_cast %536 : vector<40xf32> to vector<40x1xf32>
    %538 = math.rsqrt %537 : vector<40x1xf32>
    %539 = vector.broadcast %538 : vector<40x1xf32> to vector<40x32xf32>
    %540 = arith.mulf %527, %539 : vector<40x32xf32>
    %541 = arith.mulf %534, %534 : vector<40x32xf32>
    %cst_164 = arith.constant dense<0.000000e+00> : vector<40xf32>
    %542 = vector.multi_reduction <add>, %541, %cst_164 [1] : vector<40x32xf32> to vector<40xf32>
    %543 = vector.shape_cast %542 : vector<40xf32> to vector<40x1xf32>
    %544 = math.rsqrt %543 : vector<40x1xf32>
    %545 = vector.broadcast %544 : vector<40x1xf32> to vector<40x32xf32>
    %546 = arith.mulf %534, %545 : vector<40x32xf32>
    %c0_165 = arith.constant 0 : index
    %c0_166 = arith.constant 0 : index
    %547 = vector.load %arg4[%c0_165, %c0_166] : memref<8x1xf32, #tpu.memory_space<vmem>>, vector<4x1xf32>
    %c4 = arith.constant 4 : index
    %c0_167 = arith.constant 0 : index
    %548 = vector.load %arg4[%c4, %c0_167] : memref<8x1xf32, #tpu.memory_space<vmem>>, vector<4x1xf32>
    %c0_168 = arith.constant 0 : index
    %c0_169 = arith.constant 0 : index
    %549 = vector.load %arg5[%c0_168, %c0_169] : memref<16x256xf32, #tpu.memory_space<vmem>>, vector<16x256xf32>
    %550 = vector.extract_strided_slice %540 {offsets = [0, 0], sizes = [16, 32], strides = [1, 1]} : vector<40x32xf32> to vector<16x32xf32>
    %551 = vector.extract_strided_slice %546 {offsets = [16, 0], sizes = [4, 32], strides = [1, 1]} : vector<40x32xf32> to vector<4x32xf32>
    %552 = arith.truncf %551 : vector<4x32xf32> to vector<4x32xbf16>
    %553 = arith.truncf %550 : vector<16x32xf32> to vector<16x32xbf16>
    %cst_170 = arith.constant dense<0.000000e+00> : vector<4x16xf32>
    %554 = tpu.matmul %552, %553, %cst_170 {dimension_numbers = #tpu.dot_dimension_numbers<[1], [1], [0], [0], [0, 0, 1, 0], [], []>} : vector<4x32xbf16>, vector<16x32xbf16>, vector<4x16xf32> -> vector<4x16xf32>
    %cst_171 = arith.constant dense<0.000000e+00> : vector<16xf32>
    %555 = vector.multi_reduction <add>, %554, %cst_171 [0] : vector<4x16xf32> to vector<16xf32>
    %556 = vector.shape_cast %555 : vector<16xf32> to vector<1x16xf32>
    %cst_172 = arith.constant 4.000000e+00 : f32
    %557 = vector.broadcast %cst_172 : f32 to vector<1x16xf32>
    %558 = arith.divf %556, %557 : vector<1x16xf32>
    %559 = vector.broadcast %558 : vector<1x16xf32> to vector<4x16xf32>
    %560 = arith.subf %554, %559 : vector<4x16xf32>
    %561 = arith.mulf %560, %560 : vector<4x16xf32>
    %cst_173 = arith.constant dense<0.000000e+00> : vector<16xf32>
    %562 = vector.multi_reduction <add>, %561, %cst_173 [0] : vector<4x16xf32> to vector<16xf32>
    %563 = vector.shape_cast %562 : vector<16xf32> to vector<1x16xf32>
    %cst_174 = arith.constant 4.000000e+00 : f32
    %564 = vector.broadcast %cst_174 : f32 to vector<1x16xf32>
    %565 = arith.divf %563, %564 : vector<1x16xf32>
    %cst_175 = arith.constant 9.99999997E-7 : f32
    %566 = vector.broadcast %cst_175 : f32 to vector<1x16xf32>
    %567 = arith.addf %565, %566 : vector<1x16xf32>
    %568 = math.rsqrt %567 : vector<1x16xf32>
    %569 = vector.broadcast %568 : vector<1x16xf32> to vector<4x16xf32>
    %570 = arith.mulf %560, %569 : vector<4x16xf32>
    %571 = vector.broadcast %547 : vector<4x1xf32> to vector<4x16xf32>
    %572 = arith.mulf %570, %571 : vector<4x16xf32>
    %573 = vector.broadcast %548 : vector<4x1xf32> to vector<4x16xf32>
    %574 = arith.addf %572, %573 : vector<4x16xf32>
    %575 = arith.truncf %574 : vector<4x16xf32> to vector<4x16xbf16>
    %576 = arith.truncf %549 : vector<16x256xf32> to vector<16x256xbf16>
    %cst_176 = arith.constant dense<0.000000e+00> : vector<4x256xf32>
    %577 = tpu.matmul %575, %576, %cst_176 {dimension_numbers = #tpu.dot_dimension_numbers<[1], [0], [0], [1], [0, 0, 1, 1], [], []>} : vector<4x16xbf16>, vector<16x256xbf16>, vector<4x256xf32> -> vector<4x256xf32>
    %c0_177 = arith.constant 0 : index
    %c0_178 = arith.constant 0 : index
    %c0_179 = arith.constant 0 : index
    %578 = vector.load %arg6[%c0_177, %c0_178, %c0_179] : memref<2x4x256xf32, #tpu.memory_space<vmem>>, vector<1x4x256xf32>
    %579 = vector.shape_cast %578 : vector<1x4x256xf32> to vector<4x256xf32>
    %580 = vector.shape_cast %577 : vector<4x256xf32> to vector<1x4x256xf32>
    tpu.vector_store %arg6[%c0_177, %c0_178, %c0_179], %580 {strides = array<i32>} : memref<2x4x256xf32, #tpu.memory_space<vmem>>, vector<1x4x256xf32>,
    %581 = vector.extract_strided_slice %540 {offsets = [20, 0], sizes = [16, 32], strides = [1, 1]} : vector<40x32xf32> to vector<16x32xf32>
    %582 = vector.extract_strided_slice %546 {offsets = [36, 0], sizes = [4, 32], strides = [1, 1]} : vector<40x32xf32> to vector<4x32xf32>
    %583 = arith.truncf %582 : vector<4x32xf32> to vector<4x32xbf16>
    %584 = arith.truncf %581 : vector<16x32xf32> to vector<16x32xbf16>
    %cst_180 = arith.constant dense<0.000000e+00> : vector<4x16xf32>
    %585 = tpu.matmul %583, %584, %cst_180 {dimension_numbers = #tpu.dot_dimension_numbers<[1], [1], [0], [0], [0, 0, 1, 0], [], []>} : vector<4x32xbf16>, vector<16x32xbf16>, vector<4x16xf32> -> vector<4x16xf32>
    %cst_181 = arith.constant dense<0.000000e+00> : vector<16xf32>
    %586 = vector.multi_reduction <add>, %585, %cst_181 [0] : vector<4x16xf32> to vector<16xf32>
    %587 = vector.shape_cast %586 : vector<16xf32> to vector<1x16xf32>
    %cst_182 = arith.constant 4.000000e+00 : f32
    %588 = vector.broadcast %cst_182 : f32 to vector<1x16xf32>
    %589 = arith.divf %587, %588 : vector<1x16xf32>
    %590 = vector.broadcast %589 : vector<1x16xf32> to vector<4x16xf32>
    %591 = arith.subf %585, %590 : vector<4x16xf32>
    %592 = arith.mulf %591, %591 : vector<4x16xf32>
    %cst_183 = arith.constant dense<0.000000e+00> : vector<16xf32>
    %593 = vector.multi_reduction <add>, %592, %cst_183 [0] : vector<4x16xf32> to vector<16xf32>
    %594 = vector.shape_cast %593 : vector<16xf32> to vector<1x16xf32>
    %cst_184 = arith.constant 4.000000e+00 : f32
    %595 = vector.broadcast %cst_184 : f32 to vector<1x16xf32>
    %596 = arith.divf %594, %595 : vector<1x16xf32>
    %cst_185 = arith.constant 9.99999997E-7 : f32
    %597 = vector.broadcast %cst_185 : f32 to vector<1x16xf32>
    %598 = arith.addf %596, %597 : vector<1x16xf32>
    %599 = math.rsqrt %598 : vector<1x16xf32>
    %600 = vector.broadcast %599 : vector<1x16xf32> to vector<4x16xf32>
    %601 = arith.mulf %591, %600 : vector<4x16xf32>
    %602 = vector.broadcast %547 : vector<4x1xf32> to vector<4x16xf32>
    %603 = arith.mulf %601, %602 : vector<4x16xf32>
    %604 = vector.broadcast %548 : vector<4x1xf32> to vector<4x16xf32>
    %605 = arith.addf %603, %604 : vector<4x16xf32>
    %606 = arith.truncf %605 : vector<4x16xf32> to vector<4x16xbf16>
    %607 = arith.truncf %549 : vector<16x256xf32> to vector<16x256xbf16>
    %cst_186 = arith.constant dense<0.000000e+00> : vector<4x256xf32>
    %608 = tpu.matmul %606, %607, %cst_186 {dimension_numbers = #tpu.dot_dimension_numbers<[1], [0], [0], [1], [0, 0, 1, 1], [], []>} : vector<4x16xbf16>, vector<16x256xbf16>, vector<4x256xf32> -> vector<4x256xf32>
    %c1_187 = arith.constant 1 : index
    %c0_188 = arith.constant 0 : index
    %c0_189 = arith.constant 0 : index
    %609 = vector.load %arg6[%c1_187, %c0_188, %c0_189] : memref<2x4x256xf32, #tpu.memory_space<vmem>>, vector<1x4x256xf32>
    %610 = vector.shape_cast %609 : vector<1x4x256xf32> to vector<4x256xf32>
    %611 = vector.shape_cast %608 : vector<4x256xf32> to vector<1x4x256xf32>
    tpu.vector_store %arg6[%c1_187, %c0_188, %c0_189], %611 {strides = array<i32>} : memref<2x4x256xf32, #tpu.memory_space<vmem>>, vector<1x4x256xf32>,
    return
  }
  func.func @transform_0(%arg0: i32) -> (i32, i32, i32) {
    %c0_i32 = arith.constant 0 : i32
    %c0_i32_0 = arith.constant 0 : i32
    %c0_i32_1 = arith.constant 0 : i32
    return %arg0, %c0_i32, %c0_i32_0 : i32, i32, i32
  }
  func.func @transform_1(%arg0: i32) -> (i32, i32) {
    %c0_i32 = arith.constant 0 : i32
    %c0_i32_0 = arith.constant 0 : i32
    %c0_i32_1 = arith.constant 0 : i32
    return %c0_i32, %c0_i32_0 : i32, i32
  }
  func.func @transform_2(%arg0: i32) -> (i32, i32) {
    %c0_i32 = arith.constant 0 : i32
    %c0_i32_0 = arith.constant 0 : i32
    %c0_i32_1 = arith.constant 0 : i32
    return %c0_i32, %c0_i32_0 : i32, i32
  }
  func.func @transform_3(%arg0: i32) -> (i32, i32) {
    %c0_i32 = arith.constant 0 : i32
    %c0_i32_0 = arith.constant 0 : i32
    %c0_i32_1 = arith.constant 0 : i32
    return %c0_i32, %c0_i32_0 : i32, i32
  }
  func.func @transform_4(%arg0: i32) -> (i32, i32) {
    %c0_i32 = arith.constant 0 : i32
    %c0_i32_0 = arith.constant 0 : i32
    %c0_i32_1 = arith.constant 0 : i32
    return %c0_i32, %c0_i32_0 : i32, i32
  }
  func.func @transform_5(%arg0: i32) -> (i32, i32, i32) {
    %c0_i32 = arith.constant 0 : i32
    %c0_i32_0 = arith.constant 0 : i32
    %c0_i32_1 = arith.constant 0 : i32
    return %arg0, %c0_i32, %c0_i32_0 : i32, i32, i32
  }
}

</mosaic_0001>

<llo_original>
// kernel: segmenter_forward.1
$region0: #{segmenter_forward.1}
  #allocation0 [shape = 'u32[]', space=smem, size = 0x4, offset = 0x4, fixed_abs, tag = 'smem constant byte address 0x4 - core index']
  #allocation1 [shape = 'u32[144,128]{1,0:T(1,128)}', space=vmem, size = 0x12000, scoped, tag = 'internal scratch']
  %s0 = inlined_call_operand.vmem [shape: f32[2,17,64], index: 0, kind: input, shape index: {}]
  %s1 = inlined_call_operand.vmem [shape: f32[744,32], index: 1, kind: input, shape index: {}]
  %s2 = inlined_call_operand.vmem [shape: f32[120,224], index: 2, kind: input, shape index: {}]
  %s3 = inlined_call_operand.vmem [shape: f32[8,1], index: 3, kind: input, shape index: {}]
  %s4 = inlined_call_operand.vmem [shape: f32[16,256], index: 4, kind: input, shape index: {}]
  %s5 = inlined_call_operand.vmem [shape: f32[2,4,256], index: 5, kind: output, shape index: {}]
  %s6 = sld [smem:[#allocation0]]
  $region30: #{segmenter_forward.1} parent=0
    _
  %s8 = ssub.s32 1, %s6
  %s9 = scalar_select 0, %s8, %s6
  // Predicated region
  $region2: #{segmenter_forward.1} parent=0 // pred_check
    _
  $region3: #{segmenter_forward.1} parent=0 // pred_check_branch
    %11 = sbr.rel (0) target = $region5
  $region4: #{segmenter_forward.1} parent=0 // pred_region
    _
  $region5: #{segmenter_forward.1} parent=0 // pred_fallthru
    _
  // Predicated region
  $region6: #{segmenter_forward.1} parent=0 // pred_check
    _
  $region7: #{segmenter_forward.1} parent=0 // pred_check_branch
    %13 = sbr.rel (0) target = $region9
  $region8: #{segmenter_forward.1} parent=0 // pred_region
    _
  $region9: #{segmenter_forward.1} parent=0 // pred_fallthru
    _
  // Predicated region
  $region10: #{segmenter_forward.1} parent=0 // pred_check
    _
  $region11: #{segmenter_forward.1} parent=0 // pred_check_branch
    %15 = sbr.rel (0) target = $region13
  $region12: #{segmenter_forward.1} parent=0 // pred_region
    _
  $region13: #{segmenter_forward.1} parent=0 // pred_fallthru
    _
  // Predicated region
  $region14: #{segmenter_forward.1} parent=0 // pred_check
    _
  $region15: #{segmenter_forward.1} parent=0 // pred_check_branch
    %17 = sbr.rel (0) target = $region17
  $region16: #{segmenter_forward.1} parent=0 // pred_region
    _
  $region17: #{segmenter_forward.1} parent=0 // pred_fallthru
    _
  // Predicated region
  $region18: #{segmenter_forward.1} parent=0 // pred_check
    _
  $region19: #{segmenter_forward.1} parent=0 // pred_check_branch
    %19 = sbr.rel (0) target = $region21
  $region20: #{segmenter_forward.1} parent=0 // pred_region
    _
  $region21: #{segmenter_forward.1} parent=0 // pred_fallthru
    _
  %v21 = vld [vmem:[%s1 + $0x40] sm:$0xff]
  %v22 = vld [vmem:[%s1 + $0x48] sm:$0xff]
  %v23 = vld [vmem:[%s1 + $0x50] sm:$0x1]
  %v24 = vld [vmem:[%s0] sm:$0xff]
  %v25 = vld [vmem:[%s0 + $0x8] sm:$0xff]
  %v26 = vld [vmem:[%s0 + $0x10] sm:$0x1]
  %v27 = vld [vmem:[%s1] sm:$0xff]
  %v28 = vld [vmem:[%s1 + $0x8] sm:$0xff]
  %v29 = vld [vmem:[%s1 + $0x10] sm:$0xff]
  %v30 = vld [vmem:[%s1 + $0x18] sm:$0xff]
  %v31 = vld [vmem:[%s1 + $0x20] sm:$0xff]
  %v32 = vld [vmem:[%s1 + $0x28] sm:$0xff]
  %v33 = vld [vmem:[%s1 + $0x30] sm:$0xff]
  %v34 = vld [vmem:[%s1 + $0x38] sm:$0xff]
  %v35 = vpack.c.bf16 %v25, %v24
  %v36 = vpack.c.bf16 %v26, %v26
  %v37 = vpack.c.bf16 %v28, %v27
  %v38 = vpack.c.bf16 %v30, %v29
  %v39 = vpack.c.bf16 %v32, %v31
  %v40 = vpack.c.bf16 %v34, %v33
  %vm41 = vcmask 523264
  %v43 = vsel %vm41, %v35, 0
  %v46 = vsel %vm41, %v36, 0
  %48 = vmatprep.subr.bf16.mxu0 0
  %49 = vmatpush1.bf16.msra.mxu0 0
  %50 = vmatprep.subr.bf16.mxu0 0
  %51 = vmatpush1.bf16.msra.mxu0 0
  %52 = vmatprep.subr.bf16.mxu0 0
  %53 = vmatpush1.bf16.msra.mxu0 0
  %54 = vmatprep.subr.bf16.mxu0 0
  %55 = vmatpush1.bf16.msra.mxu0 0
  %56 = vmatprep.subr.bf16.mxu0 0
  %57 = vmatpush1.bf16.msra.mxu0 %v40
  %58 = vmatprep.subr.bf16.mxu0 0
  %59 = vmatpush1.bf16.msra.mxu0 %v39
  %60 = vmatprep.subr.bf16.mxu0 0
  %61 = vmatpush1.bf16.msra.mxu0 %v38
  %62 = vmatprep.subr.bf16.mxu0 0
  %63 = vmatpush1.bf16.msra.mxu0 %v37
  %64 = vmatprep.subr.bf16.mxu0 0
  %65 = vmatpush2.bf16.msra.mxu0 0
  %66 = vmatprep.subr.bf16.mxu0 0
  %67 = vmatpush2.bf16.msra.mxu0 0
  %68 = vmatprep.subr.bf16.mxu0 0
  %69 = vmatpush2.bf16.msra.mxu0 0
  %70 = vmatprep.subr.bf16.mxu0 0
  %71 = vmatpush2.bf16.msra.mxu0 0
  %72 = vmatprep.subr.bf16.mxu0 0
  %73 = vmatpush2.bf16.msra.mxu0 0
  %74 = vmatprep.subr.bf16.mxu0 0
  %75 = vmatpush2.bf16.msra.mxu0 0
  %76 = vmatprep.subr.bf16.mxu0 0
  %77 = vmatpush2.bf16.msra.mxu0 0
  %78 = vmatprep.subr.bf16.mxu0 0
  %79 = vmatpush2.bf16.msra.mxu0 0
  %80 = vmatprep.mubr.bf16.mxu0 0
  %81 = vmatmul.mubr.bf16.gmra.mxu0 %v43
  %v82 = vpop.f32.mrf.mxu0
  %v83 = vadd.f32 %v21, %v82
  %v84 = vpop.f32.mrf.mxu0
  %v85 = vpop.f32.mrf.mxu0
  %v86 = vadd.f32 %v22, %v85
  %v87 = vpop.f32.mrf.mxu0
  %88 = vmatprep.mubr.bf16.mxu0 0
  %89 = vmatmul.mubr.bf16.gmra.mxu0 %v46
  %v90 = vpop.f32.mrf.mxu0
  %v91 = vadd.f32 %v23, %v90
  %v92 = vpop.f32.mrf.mxu0
  %v93 = vpop.f32.mrf.mxu0
  %v94 = vpop.f32.mrf.mxu0
  %95 = vdwg.mxu0
  %s96 = scalar_lea.vmem %s0, 24
  %v97 = vld [vmem:[%s96] sm:$0xff]
  %v98 = vld [vmem:[%s96 + $0x8] sm:$0xff]
  %v99 = vld [vmem:[%s96 + $0x10] sm:$0x1]
  %v100 = vpack.c.bf16 %v98, %v97
  %v101 = vpack.c.bf16 %v99, %v99
  %v103 = vsel %vm41, %v100, 0
  %v106 = vsel %vm41, %v101, 0
  %108 = vmatprep.subr.bf16.mxu0 0
  %109 = vmatpush1.bf16.msra.mxu0 0
  %110 = vmatprep.subr.bf16.mxu0 0
  %111 = vmatpush1.bf16.msra.mxu0 0
  %112 = vmatprep.subr.bf16.mxu0 0
  %113 = vmatpush1.bf16.msra.mxu0 0
  %114 = vmatprep.subr.bf16.mxu0 0
  %115 = vmatpush1.bf16.msra.mxu0 0
  %116 = vmatprep.subr.bf16.mxu0 0
  %117 = vmatpush1.bf16.msra.mxu0 %v40
  %118 = vmatprep.subr.bf16.mxu0 0
  %119 = vmatpush1.bf16.msra.mxu0 %v39
  %120 = vmatprep.subr.bf16.mxu0 0
  %121 = vmatpush1.bf16.msra.mxu0 %v38
  %122 = vmatprep.subr.bf16.mxu0 0
  %123 = vmatpush1.bf16.msra.mxu0 %v37
  %124 = vmatprep.subr.bf16.mxu0 0
  %125 = vmatpush2.bf16.msra.mxu0 0
  %126 = vmatprep.subr.bf16.mxu0 0
  %127 = vmatpush2.bf16.msra.mxu0 0
  %128 = vmatprep.subr.bf16.mxu0 0
  %129 = vmatpush2.bf16.msra.mxu0 0
  %130 = vmatprep.subr.bf16.mxu0 0
  %131 = vmatpush2.bf16.msra.mxu0 0
  %132 = vmatprep.subr.bf16.mxu0 0
  %133 = vmatpush2.bf16.msra.mxu0 0
  %134 = vmatprep.subr.bf16.mxu0 0
  %135 = vmatpush2.bf16.msra.mxu0 0
  %136 = vmatprep.subr.bf16.mxu0 0
  %137 = vmatpush2.bf16.msra.mxu0 0
  %138 = vmatprep.subr.bf16.mxu0 0
  %139 = vmatpush2.bf16.msra.mxu0 0
  %140 = vmatprep.mubr.bf16.mxu0 0
  %141 = vmatmul.mubr.bf16.gmra.mxu0 %v103
  %v142 = vpop.f32.mrf.mxu0
  %v143 = vadd.f32 %v21, %v142
  %v144 = vpop.f32.mrf.mxu0
  %v145 = vpop.f32.mrf.mxu0
  %v146 = vadd.f32 %v22, %v145
  %v147 = vpop.f32.mrf.mxu0
  %148 = vmatprep.mubr.bf16.mxu0 0
  %149 = vmatmul.mubr.bf16.gmra.mxu0 %v106
  %v150 = vpop.f32.mrf.mxu0
  %v151 = vadd.f32 %v23, %v150
  %v152 = vpop.f32.mrf.mxu0
  %v153 = vpop.f32.mrf.mxu0
  %v154 = vpop.f32.mrf.mxu0
  %155 = vdwg.mxu0
  %vm159 = vcmask 1040384
  %v160 = vrot.slane %v143, 7
  %v161 = vrot.slane %v146, 7
  %v162 = vsel %vm159, %v160, %v161
  %v163 = vrot.slane %v151, 7
  %v164 = vsel %vm159, %v161, %v163
  %v168 = vsel %vm159, %v91, %v160
  %v169 = vld [vmem:[%s2] sm:$0xff]
  %v170 = vld [vmem:[%s2 + $0x10] sm:$0xff]
  %v171 = vld [vmem:[%s2 + $0x20] sm:$0xff]
  %v172 = vld [vmem:[%s2 + $0x30] sm:$0xff]
  %v173 = vld [vmem:[%s2 + $0x8] sm:$0xff]
  %v174 = vld [vmem:[%s2 + $0x18] sm:$0xff]
  %v175 = vld [vmem:[%s2 + $0x28] sm:$0xff]
  %v176 = vld [vmem:[%s2 + $0x38] sm:$0xff]
  %v177 = vld [vmem:[%s2 + $0x40] ss:$0 sm:$0xff]
  %v178 = vld [vmem:[%s2 + $0x48] ss:$0 sm:$0xff]
  %vm179 = vcmask 261120
  %v180 = vsel %vm179, %v83, 0.0
  %181 = vadd.xlane.f32.xlu0 %v180
  %v182 = vpop.xlane.xlu0 %181
  %v183 = vsel %vm179, %v86, 0.0
  %184 = vadd.xlane.f32.xlu0 %v183
  %v185 = vpop.xlane.xlu0 %184
  %v186 = vsel %vm179, %v168, 0.0
  %187 = vadd.xlane.f32.xlu0 %v186
  %v188 = vpop.xlane.xlu0 %187
  %v189 = vsel %vm179, %v162, 0.0
  %190 = vadd.xlane.f32.xlu0 %v189
  %v191 = vpop.xlane.xlu0 %190
  %vm192 = vcmask 254976
  %v193 = vsel %vm192, %v164, 0.0
  %194 = vadd.xlane.f32.xlu0 %v193
  %v195 = vpop.xlane.xlu0 %194
  %v196 = vrcp.pop 32.0
  %v197 = vmul.f32 %v182, %v196
  %v198 = vmul.f32 %v185, %v196
  %v199 = vmul.f32 %v188, %v196
  %v200 = vmul.f32 %v191, %v196
  %v201 = vmul.f32 %v195, %v196
  %v202 = vsub.f32 %v83, %v197
  %v203 = vsub.f32 %v86, %v198
  %v204 = vsub.f32 %v168, %v199
  %v205 = vsub.f32 %v162, %v200
  %v206 = vsub.f32 %v164, %v201
  %v207 = vmul.f32 %v202, %v202
  %v208 = vmul.f32 %v203, %v203
  %v209 = vmul.f32 %v204, %v204
  %v210 = vmul.f32 %v205, %v205
  %v211 = vmul.f32 %v206, %v206
  %v212 = vsel %vm179, %v207, 0.0
  %213 = vadd.xlane.f32.xlu0 %v212
  %v214 = vpop.xlane.xlu0 %213
  %v215 = vsel %vm179, %v208, 0.0
  %216 = vadd.xlane.f32.xlu0 %v215
  %v217 = vpop.xlane.xlu0 %216
  %v218 = vsel %vm179, %v209, 0.0
  %219 = vadd.xlane.f32.xlu0 %v218
  %v220 = vpop.xlane.xlu0 %219
  %v221 = vsel %vm179, %v210, 0.0
  %222 = vadd.xlane.f32.xlu0 %v221
  %v223 = vpop.xlane.xlu0 %222
  %v224 = vsel %vm192, %v211, 0.0
  %225 = vadd.xlane.f32.xlu0 %v224
  %v226 = vpop.xlane.xlu0 %225
  %v227 = vmul.f32 %v214, %v196
  %v228 = vmul.f32 %v217, %v196
  %v229 = vmul.f32 %v220, %v196
  %v230 = vmul.f32 %v223, %v196
  %v231 = vmul.f32 %v226, %v196
  %v232 = vadd.f32 %v227, 1e-06
  %v233 = vadd.f32 %v228, 1e-06
  %v234 = vadd.f32 %v229, 1e-06
  %v235 = vadd.f32 %v230, 1e-06
  %v236 = vadd.f32 %v231, 1e-06
  %v237 = vrsqrt.pop %v232
  %v238 = vrsqrt.pop %v233
  %v239 = vrsqrt.pop %v234
  %v240 = vrsqrt.pop %v235
  %v241 = vrsqrt.pop %v236
  %v242 = vmul.f32 %v202, %v237
  %v243 = vmul.f32 %v203, %v238
  %v244 = vmul.f32 %v204, %v239
  %v245 = vmul.f32 %v205, %v240
  %v246 = vmul.f32 %v206, %v241
  %v247 = vpack.c.bf16 %v243, %v242
  %v248 = vpack.c.bf16 %v245, %v244
  %v249 = vpack.c.bf16 %v246, %v246
  %v250 = vpack.c.bf16 %v174, %v173
  %v251 = vpack.c.bf16 %v176, %v175
  %v253 = vsel %vm179, %v247, 0
  %v256 = vsel %vm179, %v248, 0
  %v259 = vsel %vm179, %v249, 0
  %261 = vmatprep.subr.bf16.mxu0 0
  %262 = vmatpush1.bf16.msra.mxu0 0
  %263 = vmatprep.subr.bf16.mxu0 0
  %264 = vmatpush1.bf16.msra.mxu0 0
  %265 = vmatprep.subr.bf16.mxu0 0
  %266 = vmatpush1.bf16.msra.mxu0 0
  %267 = vmatprep.subr.bf16.mxu0 0
  %268 = vmatpush1.bf16.msra.mxu0 0
  %269 = vmatprep.subr.bf16.mxu0 0
  %270 = vmatpush1.bf16.msra.mxu0 0
  %271 = vmatprep.subr.bf16.mxu0 0
  %272 = vmatpush1.bf16.msra.mxu0 0
  %273 = vmatprep.subr.bf16.mxu0 0
  %274 = vmatpush1.bf16.msra.mxu0 %v251
  %275 = vmatprep.subr.bf16.mxu0 0
  %276 = vmatpush1.bf16.msra.mxu0 %v250
  %277 = vmatprep.subr.bf16.mxu0 0
  %278 = vmatpush2.bf16.msra.mxu0 0
  %279 = vmatprep.subr.bf16.mxu0 0
  %280 = vmatpush2.bf16.msra.mxu0 0
  %281 = vmatprep.subr.bf16.mxu0 0
  %282 = vmatpush2.bf16.msra.mxu0 0
  %283 = vmatprep.subr.bf16.mxu0 0
  %284 = vmatpush2.bf16.msra.mxu0 0
  %285 = vmatprep.subr.bf16.mxu0 0
  %286 = vmatpush2.bf16.msra.mxu0 0
  %287 = vmatprep.subr.bf16.mxu0 0
  %288 = vmatpush2.bf16.msra.mxu0 0
  %289 = vmatprep.subr.bf16.mxu0 0
  %290 = vmatpush2.bf16.msra.mxu0 0
  %291 = vmatprep.subr.bf16.mxu0 0
  %292 = vmatpush2.bf16.msra.mxu0 0
  %293 = vmatprep.mubr.bf16.mxu0 0
  %294 = vmatmul.mubr.bf16.gmra.mxu0 %v253
  %v295 = vpop.f32.mrf.mxu0
  %v296 = vadd.f32 %v178, %v295
  %v297 = vpop.f32.mrf.mxu0
  %v298 = vpop.f32.mrf.mxu0
  %v299 = vadd.f32 %v178, %v298
  %v300 = vpop.f32.mrf.mxu0
  %301 = vmatprep.mubr.bf16.mxu0 0
  %302 = vmatmul.mubr.bf16.gmra.mxu0 %v256
  %v303 = vpop.f32.mrf.mxu0
  %v304 = vadd.f32 %v178, %v303
  %v305 = vpop.f32.mrf.mxu0
  %v306 = vpop.f32.mrf.mxu0
  %v307 = vadd.f32 %v178, %v306
  %v308 = vpop.f32.mrf.mxu0
  %309 = vmatprep.mubr.bf16.mxu0 0
  %310 = vmatmul.mubr.bf16.gmra.mxu0 %v259
  %v311 = vpop.f32.mrf.mxu0
  %v312 = vadd.f32 %v178, %v311
  %v313 = vpop.f32.mrf.mxu0
  %v314 = vpop.f32.mrf.mxu0
  %v315 = vpop.f32.mrf.mxu0
  %316 = vdwg.mxu0
  %v317 = vpack.c.bf16 %v299, %v296
  %v318 = vpack.c.bf16 %v304, %v304
  %321 = vrot.lane.b32.xlu0 %v317, 96
  %v322 = vpop.permute.xlu0 %321
  %323 = vrot.lane.b32.xlu0 %v318, 96
  %v324 = vpop.permute.xlu0 %323
  %vm325 = vcmask 130048
  %v327 = vsel %vm325, %v317, 0
  %v330 = vsel %vm325, %v318, 0
  %v333 = vsel %vm325, %v322, 0
  %v336 = vsel %vm325, %v324, 0
  %338 = vmatprep.subr.bf16.mxu0 0
  %339 = vmatpush1.bf16.xpose.msra.mxu0 0
  %340 = vmatprep.subr.bf16.mxu0 0
  %341 = vmatpush1.bf16.xpose.msra.mxu0 0
  %342 = vmatprep.subr.bf16.mxu0 0
  %343 = vmatpush1.bf16.xpose.msra.mxu0 0
  %344 = vmatprep.subr.bf16.mxu0 0
  %345 = vmatpush1.bf16.xpose.msra.mxu0 0
  %346 = vmatprep.subr.bf16.mxu0 0
  %347 = vmatpush1.bf16.xpose.msra.mxu0 0
  %348 = vmatprep.subr.bf16.mxu0 0
  %349 = vmatpush1.bf16.xpose.msra.mxu0 0
  %350 = vmatprep.subr.bf16.mxu0 0
  %351 = vmatpush1.bf16.xpose.msra.mxu0 %v336
  %352 = vmatprep.subr.bf16.mxu0 0
  %353 = vmatpush1.bf16.xpose.msra.mxu0 %v333
  %354 = vmatprep.subr.bf16.mxu0 0
  %355 = vmatpush2.bf16.xpose.msra.mxu0 0
  %356 = vmatprep.subr.bf16.mxu0 0
  %357 = vmatpush2.bf16.xpose.msra.mxu0 0
  %358 = vmatprep.subr.bf16.mxu0 0
  %359 = vmatpush2.bf16.xpose.msra.mxu0 0
  %360 = vmatprep.subr.bf16.mxu0 0
  %361 = vmatpush2.bf16.xpose.msra.mxu0 0
  %362 = vmatprep.subr.bf16.mxu0 0
  %363 = vmatpush2.bf16.xpose.msra.mxu0 0
  %364 = vmatprep.subr.bf16.mxu0 0
  %365 = vmatpush2.bf16.xpose.msra.mxu0 0
  %366 = vmatprep.subr.bf16.mxu0 0
  %367 = vmatpush2.bf16.xpose.msra.mxu0 0
  %368 = vmatprep.subr.bf16.mxu0 0
  %369 = vmatpush2.bf16.xpose.msra.mxu0 0
  %370 = vmatprep.mubr.bf16.mxu0 0
  %371 = vmatmul.mubr.bf16.gmra.mxu0 %v327
  %v372 = vpop.f32.mrf.mxu0
  %v373 = vadd.f32 0.0, %v372
  %v374 = vpop.f32.mrf.mxu0
  %v375 = vpop.f32.mrf.mxu0
  %v376 = vadd.f32 0.0, %v375
  %v377 = vpop.f32.mrf.mxu0
  %378 = vmatprep.mubr.bf16.mxu0 0
  %379 = vmatmul.mubr.bf16.gmra.mxu0 %v330
  %v380 = vpop.f32.mrf.mxu0
  %v381 = vadd.f32 0.0, %v380
  %v382 = vpop.f32.mrf.mxu0
  %v383 = vpop.f32.mrf.mxu0
  %v384 = vpop.f32.mrf.mxu0
  %385 = vdwg.mxu0
  %vm386 = vcmask 138240
  %v387 = vsel %vm386, %v373, -inf
  %388 = vmax.xlane.f32.xlu0 %v387
  %v389 = vpop.xlane.xlu0 %388
  %v390 = vsel %vm386, %v376, -inf
  %391 = vmax.xlane.f32.xlu0 %v390
  %v392 = vpop.xlane.xlu0 %391
  %vm393 = vcmask 131072
  %v394 = vsel %vm393, %v381, -inf
  %395 = vmax.xlane.f32.xlu0 %v394
  %v396 = vpop.xlane.xlu0 %395
  %v397 = vsub.f32 %v373, %v389
  %v398 = vsub.f32 %v376, %v392
  %v399 = vsub.f32 %v381, %v396
  %v400 = vmul.f32 %v397, 1.442695
  %v401 = vpow.pop %v400
  %v402 = vmul.f32 %v398, 1.442695
  %v403 = vpow.pop %v402
  %v404 = vmul.f32 %v399, 1.442695
  %v405 = vpow.pop %v404
  %v406 = vsel %vm386, %v401, 0.0
  %407 = vadd.xlane.f32.xlu0 %v406
  %v408 = vpop.xlane.xlu0 %407
  %v409 = vsel %vm386, %v403, 0.0
  %410 = vadd.xlane.f32.xlu0 %v409
  %v411 = vpop.xlane.xlu0 %410
  %v412 = vsel %vm393, %v405, 0.0
  %413 = vadd.xlane.f32.xlu0 %v412
  %v414 = vpop.xlane.xlu0 %413
  %v415 = vrcp.pop %v408
  %v416 = vrcp.pop %v411
  %v417 = vrcp.pop %v414
  %v418 = vmul.f32 %v401, %v415
  %v419 = vmul.f32 %v403, %v416
  %v420 = vmul.f32 %v405, %v417
  %v421 = vpack.c.bf16 %v419, %v418
  %v422 = vpack.c.bf16 %v420, %v420
  %423 = vrot.lane.b32.xlu0 %v317, 64
  %v424 = vpop.permute.xlu0 %423
  %425 = vrot.lane.b32.xlu0 %v318, 64
  %v426 = vpop.permute.xlu0 %425
  %v429 = vsel %vm386, %v421, 0
  %v432 = vsel %vm386, %v422, 0
  %v434 = vsel 0, 4294967295, 65535
  %v435 = vsel %vm159, %v434, 0
  %v437 = vand.u32 %v426, %v435
  %439 = vmatprep.subr.bf16.mxu0 0
  %440 = vmatpush1.bf16.msra.mxu0 0
  %441 = vmatprep.subr.bf16.mxu0 0
  %442 = vmatpush1.bf16.msra.mxu0 0
  %443 = vmatprep.subr.bf16.mxu0 0
  %444 = vmatpush1.bf16.msra.mxu0 0
  %445 = vmatprep.subr.bf16.mxu0 0
  %446 = vmatpush1.bf16.msra.mxu0 0
  %447 = vmatprep.subr.bf16.mxu0 0
  %448 = vmatpush1.bf16.msra.mxu0 0
  %449 = vmatprep.subr.bf16.mxu0 0
  %450 = vmatpush1.bf16.msra.mxu0 0
  %451 = vmatprep.subr.bf16.mxu0 0
  %452 = vmatpush1.bf16.msra.mxu0 %v437
  %453 = vmatprep.subr.bf16.mxu0 0
  %454 = vmatpush1.bf16.msra.mxu0 %v424
  %455 = vmatprep.subr.bf16.mxu0 0
  %456 = vmatpush2.bf16.msra.mxu0 0
  %457 = vmatprep.subr.bf16.mxu0 0
  %458 = vmatpush2.bf16.msra.mxu0 0
  %459 = vmatprep.subr.bf16.mxu0 0
  %460 = vmatpush2.bf16.msra.mxu0 0
  %461 = vmatprep.subr.bf16.mxu0 0
  %462 = vmatpush2.bf16.msra.mxu0 0
  %463 = vmatprep.subr.bf16.mxu0 0
  %464 = vmatpush2.bf16.msra.mxu0 0
  %465 = vmatprep.subr.bf16.mxu0 0
  %466 = vmatpush2.bf16.msra.mxu0 0
  %467 = vmatprep.subr.bf16.mxu0 0
  %468 = vmatpush2.bf16.msra.mxu0 0
  %469 = vmatprep.subr.bf16.mxu0 0
  %470 = vmatpush2.bf16.msra.mxu0 0
  %471 = vmatprep.mubr.bf16.mxu0 0
  %472 = vmatmul.mubr.bf16.gmra.mxu0 %v429
  %v473 = vpop.f32.mrf.mxu0
  %v474 = vadd.f32 0.0, %v473
  %v475 = vpop.f32.mrf.mxu0
  %v476 = vpop.f32.mrf.mxu0
  %v477 = vadd.f32 0.0, %v476
  %v478 = vpop.f32.mrf.mxu0
  %479 = vmatprep.mubr.bf16.mxu0 0
  %480 = vmatmul.mubr.bf16.gmra.mxu0 %v432
  %v481 = vpop.f32.mrf.mxu0
  %v482 = vadd.f32 0.0, %v481
  %v483 = vpop.f32.mrf.mxu0
  %v484 = vpop.f32.mrf.mxu0
  %v485 = vpop.f32.mrf.mxu0
  %486 = vdwg.mxu0
  %487 = vrot.lane.b32.xlu0 %v317, 112
  %v488 = vpop.permute.xlu0 %487
  %489 = vrot.lane.b32.xlu0 %v318, 112
  %v490 = vpop.permute.xlu0 %489
  %491 = vrot.lane.b32.xlu0 %v317, 80
  %v492 = vpop.permute.xlu0 %491
  %493 = vrot.lane.b32.xlu0 %v318, 80
  %v494 = vpop.permute.xlu0 %493
  %v496 = vsel %vm325, %v488, 0
  %v499 = vsel %vm325, %v490, 0
  %v502 = vsel %vm325, %v492, 0
  %v505 = vsel %vm325, %v494, 0
  %507 = vmatprep.subr.bf16.mxu0 0
  %508 = vmatpush1.bf16.xpose.msra.mxu0 0
  %509 = vmatprep.subr.bf16.mxu0 0
  %510 = vmatpush1.bf16.xpose.msra.mxu0 0
  %511 = vmatprep.subr.bf16.mxu0 0
  %512 = vmatpush1.bf16.xpose.msra.mxu0 0
  %513 = vmatprep.subr.bf16.mxu0 0
  %514 = vmatpush1.bf16.xpose.msra.mxu0 0
  %515 = vmatprep.subr.bf16.mxu0 0
  %516 = vmatpush1.bf16.xpose.msra.mxu0 0
  %517 = vmatprep.subr.bf16.mxu0 0
  %518 = vmatpush1.bf16.xpose.msra.mxu0 0
  %519 = vmatprep.subr.bf16.mxu0 0
  %520 = vmatpush1.bf16.xpose.msra.mxu0 %v505
  %521 = vmatprep.subr.bf16.mxu0 0
  %522 = vmatpush1.bf16.xpose.msra.mxu0 %v502
  %523 = vmatprep.subr.bf16.mxu0 0
  %524 = vmatpush2.bf16.xpose.msra.mxu0 0
  %525 = vmatprep.subr.bf16.mxu0 0
  %526 = vmatpush2.bf16.xpose.msra.mxu0 0
  %527 = vmatprep.subr.bf16.mxu0 0
  %528 = vmatpush2.bf16.xpose.msra.mxu0 0
  %529 = vmatprep.subr.bf16.mxu0 0
  %530 = vmatpush2.bf16.xpose.msra.mxu0 0
  %531 = vmatprep.subr.bf16.mxu0 0
  %532 = vmatpush2.bf16.xpose.msra.mxu0 0
  %533 = vmatprep.subr.bf16.mxu0 0
  %534 = vmatpush2.bf16.xpose.msra.mxu0 0
  %535 = vmatprep.subr.bf16.mxu0 0
  %536 = vmatpush2.bf16.xpose.msra.mxu0 0
  %537 = vmatprep.subr.bf16.mxu0 0
  %538 = vmatpush2.bf16.xpose.msra.mxu0 0
  %539 = vmatprep.mubr.bf16.mxu0 0
  %540 = vmatmul.mubr.bf16.gmra.mxu0 %v496
  %v541 = vpop.f32.mrf.mxu0
  %v542 = vadd.f32 0.0, %v541
  %v543 = vpop.f32.mrf.mxu0
  %v544 = vpop.f32.mrf.mxu0
  %v545 = vadd.f32 0.0, %v544
  %v546 = vpop.f32.mrf.mxu0
  %547 = vmatprep.mubr.bf16.mxu0 0
  %548 = vmatmul.mubr.bf16.gmra.mxu0 %v499
  %v549 = vpop.f32.mrf.mxu0
  %v550 = vadd.f32 0.0, %v549
  %v551 = vpop.f32.mrf.mxu0
  %v552 = vpop.f32.mrf.mxu0
  %v553 = vpop.f32.mrf.mxu0
  %554 = vdwg.mxu0
  %v555 = vsel %vm386, %v542, -inf
  %556 = vmax.xlane.f32.xlu0 %v555
  %v557 = vpop.xlane.xlu0 %556
  %v558 = vsel %vm386, %v545, -inf
  %559 = vmax.xlane.f32.xlu0 %v558
  %v560 = vpop.xlane.xlu0 %559
  %v561 = vsel %vm393, %v550, -inf
  %562 = vmax.xlane.f32.xlu0 %v561
  %v563 = vpop.xlane.xlu0 %562
  %v564 = vsub.f32 %v542, %v557
  %v565 = vsub.f32 %v545, %v560
  %v566 = vsub.f32 %v550, %v563
  %v567 = vmul.f32 %v564, 1.442695
  %v568 = vpow.pop %v567
  %v569 = vmul.f32 %v565, 1.442695
  %v570 = vpow.pop %v569
  %v571 = vmul.f32 %v566, 1.442695
  %v572 = vpow.pop %v571
  %v573 = vsel %vm386, %v568, 0.0
  %574 = vadd.xlane.f32.xlu0 %v573
  %v575 = vpop.xlane.xlu0 %574
  %v576 = vsel %vm386, %v570, 0.0
  %577 = vadd.xlane.f32.xlu0 %v576
  %v578 = vpop.xlane.xlu0 %577
  %v579 = vsel %vm393, %v572, 0.0
  %580 = vadd.xlane.f32.xlu0 %v579
  %v581 = vpop.xlane.xlu0 %580
  %v582 = vrcp.pop %v575
  %v583 = vrcp.pop %v578
  %v584 = vrcp.pop %v581
  %v585 = vmul.f32 %v568, %v582
  %v586 = vmul.f32 %v570, %v583
  %v587 = vmul.f32 %v572, %v584
  %v588 = vpack.c.bf16 %v586, %v585
  %v589 = vpack.c.bf16 %v587, %v587
  %590 = vrot.lane.b32.xlu0 %v317, 48
  %v591 = vpop.permute.xlu0 %590
  %592 = vrot.lane.b32.xlu0 %v318, 48
  %v593 = vpop.permute.xlu0 %592
  %v596 = vsel %vm386, %v588, 0
  %v599 = vsel %vm386, %v589, 0
  %v602 = vand.u32 %v593, %v435
  %604 = vmatprep.subr.bf16.mxu0 0
  %605 = vmatpush1.bf16.msra.mxu0 0
  %606 = vmatprep.subr.bf16.mxu0 0
  %607 = vmatpush1.bf16.msra.mxu0 0
  %608 = vmatprep.subr.bf16.mxu0 0
  %609 = vmatpush1.bf16.msra.mxu0 0
  %610 = vmatprep.subr.bf16.mxu0 0
  %611 = vmatpush1.bf16.msra.mxu0 0
  %612 = vmatprep.subr.bf16.mxu0 0
  %613 = vmatpush1.bf16.msra.mxu0 0
  %614 = vmatprep.subr.bf16.mxu0 0
  %615 = vmatpush1.bf16.msra.mxu0 0
  %616 = vmatprep.subr.bf16.mxu0 0
  %617 = vmatpush1.bf16.msra.mxu0 %v602
  %618 = vmatprep.subr.bf16.mxu0 0
  %619 = vmatpush1.bf16.msra.mxu0 %v591
  %620 = vmatprep.subr.bf16.mxu0 0
  %621 = vmatpush2.bf16.msra.mxu0 0
  %622 = vmatprep.subr.bf16.mxu0 0
  %623 = vmatpush2.bf16.msra.mxu0 0
  %624 = vmatprep.subr.bf16.mxu0 0
  %625 = vmatpush2.bf16.msra.mxu0 0
  %626 = vmatprep.subr.bf16.mxu0 0
  %627 = vmatpush2.bf16.msra.mxu0 0
  %628 = vmatprep.subr.bf16.mxu0 0
  %629 = vmatpush2.bf16.msra.mxu0 0
  %630 = vmatprep.subr.bf16.mxu0 0
  %631 = vmatpush2.bf16.msra.mxu0 0
  %632 = vmatprep.subr.bf16.mxu0 0
  %633 = vmatpush2.bf16.msra.mxu0 0
  %634 = vmatprep.subr.bf16.mxu0 0
  %635 = vmatpush2.bf16.msra.mxu0 0
  %636 = vmatprep.mubr.bf16.mxu0 0
  %637 = vmatmul.mubr.bf16.gmra.mxu0 %v596
  %v638 = vpop.f32.mrf.mxu0
  %v639 = vadd.f32 0.0, %v638
  %v640 = vpop.f32.mrf.mxu0
  %v641 = vpop.f32.mrf.mxu0
  %v642 = vadd.f32 0.0, %v641
  %v643 = vpop.f32.mrf.mxu0
  %644 = vmatprep.mubr.bf16.mxu0 0
  %645 = vmatmul.mubr.bf16.gmra.mxu0 %v599
  %v646 = vpop.f32.mrf.mxu0
  %v647 = vadd.f32 0.0, %v646
  %v648 = vpop.f32.mrf.mxu0
  %v649 = vpop.f32.mrf.mxu0
  %v650 = vpop.f32.mrf.mxu0
  %651 = vdwg.mxu0
  %655 = vrot.lane.b32.xlu0 %v639, 16
  %v656 = vpop.permute.xlu0 %655
  %657 = vrot.lane.b32.xlu0 %v642, 16
  %v658 = vpop.permute.xlu0 %657
  %659 = vrot.lane.b32.xlu0 %v647, 16
  %v660 = vpop.permute.xlu0 %659
  %v664 = vsel %vm325, %v474, %v656
  %v665 = vsel %vm325, %v477, %v658
  %v666 = vsel %vm325, %v482, %v660
  %v667 = vpack.c.bf16 %v307, %v304
  %v668 = vpack.c.bf16 %v312, %v312
  %vm669 = vsmask.f32 7424
  %v671 = vshrl.u32 %v667, 16
  %v673 = vshll.u32 %v667, 16
  %v675 = vrot.slane %v673, 1
  %v676 = vor.u32 %v671, %v675
  %v678 = vshll.u32 %v668, 16
  %v680 = vrot.slane %v678, 1
  %v681 = vsel %vm669, %v676, %v680
  %v682 = vshrl.u32 %v668, 16
  %684 = vrot.lane.b32.xlu0 %v681, 96
  %v685 = vpop.permute.xlu0 %684
  %686 = vrot.lane.b32.xlu0 %v682, 96
  %v687 = vpop.permute.xlu0 %686
  %v689 = vsel %vm325, %v681, 0
  %v692 = vsel %vm325, %v682, 0
  %v695 = vsel %vm325, %v685, 0
  %v698 = vsel %vm325, %v687, 0
  %700 = vmatprep.subr.bf16.mxu0 0
  %701 = vmatpush1.bf16.xpose.msra.mxu0 0
  %702 = vmatprep.subr.bf16.mxu0 0
  %703 = vmatpush1.bf16.xpose.msra.mxu0 0
  %704 = vmatprep.subr.bf16.mxu0 0
  %705 = vmatpush1.bf16.xpose.msra.mxu0 0
  %706 = vmatprep.subr.bf16.mxu0 0
  %707 = vmatpush1.bf16.xpose.msra.mxu0 0
  %708 = vmatprep.subr.bf16.mxu0 0
  %709 = vmatpush1.bf16.xpose.msra.mxu0 0
  %710 = vmatprep.subr.bf16.mxu0 0
  %711 = vmatpush1.bf16.xpose.msra.mxu0 0
  %712 = vmatprep.subr.bf16.mxu0 0
  %713 = vmatpush1.bf16.xpose.msra.mxu0 %v698
  %714 = vmatprep.subr.bf16.mxu0 0
  %715 = vmatpush1.bf16.xpose.msra.mxu0 %v695
  %716 = vmatprep.subr.bf16.mxu0 0
  %717 = vmatpush2.bf16.xpose.msra.mxu0 0
  %718 = vmatprep.subr.bf16.mxu0 0
  %719 = vmatpush2.bf16.xpose.msra.mxu0 0
  %720 = vmatprep.subr.bf16.mxu0 0
  %721 = vmatpush2.bf16.xpose.msra.mxu0 0
  %722 = vmatprep.subr.bf16.mxu0 0
  %723 = vmatpush2.bf16.xpose.msra.mxu0 0
  %724 = vmatprep.subr.bf16.mxu0 0
  %725 = vmatpush2.bf16.xpose.msra.mxu0 0
  %726 = vmatprep.subr.bf16.mxu0 0
  %727 = vmatpush2.bf16.xpose.msra.mxu0 0
  %728 = vmatprep.subr.bf16.mxu0 0
  %729 = vmatpush2.bf16.xpose.msra.mxu0 0
  %730 = vmatprep.subr.bf16.mxu0 0
  %731 = vmatpush2.bf16.xpose.msra.mxu0 0
  %732 = vmatprep.mubr.bf16.mxu0 0
  %733 = vmatmul.mubr.bf16.gmra.mxu0 %v689
  %v734 = vpop.f32.mrf.mxu0
  %v735 = vadd.f32 0.0, %v734
  %v736 = vpop.f32.mrf.mxu0
  %v737 = vpop.f32.mrf.mxu0
  %v738 = vadd.f32 0.0, %v737
  %v739 = vpop.f32.mrf.mxu0
  %740 = vmatprep.mubr.bf16.mxu0 0
  %741 = vmatmul.mubr.bf16.gmra.mxu0 %v692
  %v742 = vpop.f32.mrf.mxu0
  %v743 = vadd.f32 0.0, %v742
  %v744 = vpop.f32.mrf.mxu0
  %v745 = vpop.f32.mrf.mxu0
  %v746 = vpop.f32.mrf.mxu0
  %747 = vdwg.mxu0
  %v748 = vsel %vm386, %v735, -inf
  %749 = vmax.xlane.f32.xlu0 %v748
  %v750 = vpop.xlane.xlu0 %749
  %v751 = vsel %vm386, %v738, -inf
  %752 = vmax.xlane.f32.xlu0 %v751
  %v753 = vpop.xlane.xlu0 %752
  %v754 = vsel %vm393, %v743, -inf
  %755 = vmax.xlane.f32.xlu0 %v754
  %v756 = vpop.xlane.xlu0 %755
  %v757 = vsub.f32 %v735, %v750
  %v758 = vsub.f32 %v738, %v753
  %v759 = vsub.f32 %v743, %v756
  %v760 = vmul.f32 %v757, 1.442695
  %v761 = vpow.pop %v760
  %v762 = vmul.f32 %v758, 1.442695
  %v763 = vpow.pop %v762
  %v764 = vmul.f32 %v759, 1.442695
  %v765 = vpow.pop %v764
  %v766 = vsel %vm386, %v761, 0.0
  %767 = vadd.xlane.f32.xlu0 %v766
  %v768 = vpop.xlane.xlu0 %767
  %v769 = vsel %vm386, %v763, 0.0
  %770 = vadd.xlane.f32.xlu0 %v769
  %v771 = vpop.xlane.xlu0 %770
  %v772 = vsel %vm393, %v765, 0.0
  %773 = vadd.xlane.f32.xlu0 %v772
  %v774 = vpop.xlane.xlu0 %773
  %v775 = vrcp.pop %v768
  %v776 = vrcp.pop %v771
  %v777 = vrcp.pop %v774
  %v778 = vmul.f32 %v761, %v775
  %v779 = vmul.f32 %v763, %v776
  %v780 = vmul.f32 %v765, %v777
  %v781 = vpack.c.bf16 %v779, %v778
  %v782 = vpack.c.bf16 %v780, %v780
  %783 = vrot.lane.b32.xlu0 %v681, 64
  %v784 = vpop.permute.xlu0 %783
  %785 = vrot.lane.b32.xlu0 %v682, 64
  %v786 = vpop.permute.xlu0 %785
  %v789 = vsel %vm386, %v781, 0
  %v792 = vsel %vm386, %v782, 0
  %v795 = vand.u32 %v786, %v435
  %797 = vmatprep.subr.bf16.mxu0 0
  %798 = vmatpush1.bf16.msra.mxu0 0
  %799 = vmatprep.subr.bf16.mxu0 0
  %800 = vmatpush1.bf16.msra.mxu0 0
  %801 = vmatprep.subr.bf16.mxu0 0
  %802 = vmatpush1.bf16.msra.mxu0 0
  %803 = vmatprep.subr.bf16.mxu0 0
  %804 = vmatpush1.bf16.msra.mxu0 0
  %805 = vmatprep.subr.bf16.mxu0 0
  %806 = vmatpush1.bf16.msra.mxu0 0
  %807 = vmatprep.subr.bf16.mxu0 0
  %808 = vmatpush1.bf16.msra.mxu0 0
  %809 = vmatprep.subr.bf16.mxu0 0
  %810 = vmatpush1.bf16.msra.mxu0 %v795
  %811 = vmatprep.subr.bf16.mxu0 0
  %812 = vmatpush1.bf16.msra.mxu0 %v784
  %813 = vmatprep.subr.bf16.mxu0 0
  %814 = vmatpush2.bf16.msra.mxu0 0
  %815 = vmatprep.subr.bf16.mxu0 0
  %816 = vmatpush2.bf16.msra.mxu0 0
  %817 = vmatprep.subr.bf16.mxu0 0
  %818 = vmatpush2.bf16.msra.mxu0 0
  %819 = vmatprep.subr.bf16.mxu0 0
  %820 = vmatpush2.bf16.msra.mxu0 0
  %821 = vmatprep.subr.bf16.mxu0 0
  %822 = vmatpush2.bf16.msra.mxu0 0
  %823 = vmatprep.subr.bf16.mxu0 0
  %824 = vmatpush2.bf16.msra.mxu0 0
  %825 = vmatprep.subr.bf16.mxu0 0
  %826 = vmatpush2.bf16.msra.mxu0 0
  %827 = vmatprep.subr.bf16.mxu0 0
  %828 = vmatpush2.bf16.msra.mxu0 0
  %829 = vmatprep.mubr.bf16.mxu0 0
  %830 = vmatmul.mubr.bf16.gmra.mxu0 %v789
  %v831 = vpop.f32.mrf.mxu0
  %v832 = vadd.f32 0.0, %v831
  %v833 = vpop.f32.mrf.mxu0
  %v834 = vpop.f32.mrf.mxu0
  %v835 = vadd.f32 0.0, %v834
  %v836 = vpop.f32.mrf.mxu0
  %837 = vmatprep.mubr.bf16.mxu0 0
  %838 = vmatmul.mubr.bf16.gmra.mxu0 %v792
  %v839 = vpop.f32.mrf.mxu0
  %v840 = vadd.f32 0.0, %v839
  %v841 = vpop.f32.mrf.mxu0
  %v842 = vpop.f32.mrf.mxu0
  %v843 = vpop.f32.mrf.mxu0
  %844 = vdwg.mxu0
  %845 = vrot.lane.b32.xlu0 %v681, 112
  %v846 = vpop.permute.xlu0 %845
  %847 = vrot.lane.b32.xlu0 %v682, 112
  %v848 = vpop.permute.xlu0 %847
  %849 = vrot.lane.b32.xlu0 %v681, 80
  %v850 = vpop.permute.xlu0 %849
  %851 = vrot.lane.b32.xlu0 %v682, 80
  %v852 = vpop.permute.xlu0 %851
  %v854 = vsel %vm325, %v846, 0
  %v857 = vsel %vm325, %v848, 0
  %v860 = vsel %vm325, %v850, 0
  %v863 = vsel %vm325, %v852, 0
  %865 = vmatprep.subr.bf16.mxu0 0
  %866 = vmatpush1.bf16.xpose.msra.mxu0 0
  %867 = vmatprep.subr.bf16.mxu0 0
  %868 = vmatpush1.bf16.xpose.msra.mxu0 0
  %869 = vmatprep.subr.bf16.mxu0 0
  %870 = vmatpush1.bf16.xpose.msra.mxu0 0
  %871 = vmatprep.subr.bf16.mxu0 0
  %872 = vmatpush1.bf16.xpose.msra.mxu0 0
  %873 = vmatprep.subr.bf16.mxu0 0
  %874 = vmatpush1.bf16.xpose.msra.mxu0 0
  %875 = vmatprep.subr.bf16.mxu0 0
  %876 = vmatpush1.bf16.xpose.msra.mxu0 0
  %877 = vmatprep.subr.bf16.mxu0 0
  %878 = vmatpush1.bf16.xpose.msra.mxu0 %v863
  %879 = vmatprep.subr.bf16.mxu0 0
  %880 = vmatpush1.bf16.xpose.msra.mxu0 %v860
  %881 = vmatprep.subr.bf16.mxu0 0
  %882 = vmatpush2.bf16.xpose.msra.mxu0 0
  %883 = vmatprep.subr.bf16.mxu0 0
  %884 = vmatpush2.bf16.xpose.msra.mxu0 0
  %885 = vmatprep.subr.bf16.mxu0 0
  %886 = vmatpush2.bf16.xpose.msra.mxu0 0
  %887 = vmatprep.subr.bf16.mxu0 0
  %888 = vmatpush2.bf16.xpose.msra.mxu0 0
  %889 = vmatprep.subr.bf16.mxu0 0
  %890 = vmatpush2.bf16.xpose.msra.mxu0 0
  %891 = vmatprep.subr.bf16.mxu0 0
  %892 = vmatpush2.bf16.xpose.msra.mxu0 0
  %893 = vmatprep.subr.bf16.mxu0 0
  %894 = vmatpush2.bf16.xpose.msra.mxu0 0
  %895 = vmatprep.subr.bf16.mxu0 0
  %896 = vmatpush2.bf16.xpose.msra.mxu0 0
  %897 = vmatprep.mubr.bf16.mxu0 0
  %898 = vmatmul.mubr.bf16.gmra.mxu0 %v854
  %v899 = vpop.f32.mrf.mxu0
  %v900 = vadd.f32 0.0, %v899
  %v901 = vpop.f32.mrf.mxu0
  %v902 = vpop.f32.mrf.mxu0
  %v903 = vadd.f32 0.0, %v902
  %v904 = vpop.f32.mrf.mxu0
  %905 = vmatprep.mubr.bf16.mxu0 0
  %906 = vmatmul.mubr.bf16.gmra.mxu0 %v857
  %v907 = vpop.f32.mrf.mxu0
  %v908 = vadd.f32 0.0, %v907
  %v909 = vpop.f32.mrf.mxu0
  %v910 = vpop.f32.mrf.mxu0
  %v911 = vpop.f32.mrf.mxu0
  %912 = vdwg.mxu0
  %v913 = vsel %vm386, %v900, -inf
  %914 = vmax.xlane.f32.xlu0 %v913
  %v915 = vpop.xlane.xlu0 %914
  %v916 = vsel %vm386, %v903, -inf
  %917 = vmax.xlane.f32.xlu0 %v916
  %v918 = vpop.xlane.xlu0 %917
  %v919 = vsel %vm393, %v908, -inf
  %920 = vmax.xlane.f32.xlu0 %v919
  %v921 = vpop.xlane.xlu0 %920
  %v922 = vsub.f32 %v900, %v915
  %v923 = vsub.f32 %v903, %v918
  %v924 = vsub.f32 %v908, %v921
  %v925 = vmul.f32 %v922, 1.442695
  %v926 = vpow.pop %v925
  %v927 = vmul.f32 %v923, 1.442695
  %v928 = vpow.pop %v927
  %v929 = vmul.f32 %v924, 1.442695
  %v930 = vpow.pop %v929
  %v931 = vsel %vm386, %v926, 0.0
  %932 = vadd.xlane.f32.xlu0 %v931
  %v933 = vpop.xlane.xlu0 %932
  %v934 = vsel %vm386, %v928, 0.0
  %935 = vadd.xlane.f32.xlu0 %v934
  %v936 = vpop.xlane.xlu0 %935
  %v937 = vsel %vm393, %v930, 0.0
  %938 = vadd.xlane.f32.xlu0 %v937
  %v939 = vpop.xlane.xlu0 %938
  %v940 = vrcp.pop %v933
  %v941 = vrcp.pop %v936
  %v942 = vrcp.pop %v939
  %v943 = vmul.f32 %v926, %v940
  %v944 = vmul.f32 %v928, %v941
  %v945 = vmul.f32 %v930, %v942
  %v946 = vpack.c.bf16 %v944, %v943
  %v947 = vpack.c.bf16 %v945, %v945
  %948 = vrot.lane.b32.xlu0 %v681, 48
  %v949 = vpop.permute.xlu0 %948
  %950 = vrot.lane.b32.xlu0 %v682, 48
  %v951 = vpop.permute.xlu0 %950
  %v954 = vsel %vm386, %v946, 0
  %v957 = vsel %vm386, %v947, 0
  %v960 = vand.u32 %v951, %v435
  %962 = vmatprep.subr.bf16.mxu0 0
  %963 = vmatpush1.bf16.msra.mxu0 0
  %964 = vmatprep.subr.bf16.mxu0 0
  %965 = vmatpush1.bf16.msra.mxu0 0
  %966 = vmatprep.subr.bf16.mxu0 0
  %967 = vmatpush1.bf16.msra.mxu0 0
  %968 = vmatprep.subr.bf16.mxu0 0
  %969 = vmatpush1.bf16.msra.mxu0 0
  %970 = vmatprep.subr.bf16.mxu0 0
  %971 = vmatpush1.bf16.msra.mxu0 0
  %972 = vmatprep.subr.bf16.mxu0 0
  %973 = vmatpush1.bf16.msra.mxu0 0
  %974 = vmatprep.subr.bf16.mxu0 0
  %975 = vmatpush1.bf16.msra.mxu0 %v960
  %976 = vmatprep.subr.bf16.mxu0 0
  %977 = vmatpush1.bf16.msra.mxu0 %v949
  %978 = vmatprep.subr.bf16.mxu0 0
  %979 = vmatpush2.bf16.msra.mxu0 0
  %980 = vmatprep.subr.bf16.mxu0 0
  %981 = vmatpush2.bf16.msra.mxu0 0
  %982 = vmatprep.subr.bf16.mxu0 0
  %983 = vmatpush2.bf16.msra.mxu0 0
  %984 = vmatprep.subr.bf16.mxu0 0
  %985 = vmatpush2.bf16.msra.mxu0 0
  %986 = vmatprep.subr.bf16.mxu0 0
  %987 = vmatpush2.bf16.msra.mxu0 0
  %988 = vmatprep.subr.bf16.mxu0 0
  %989 = vmatpush2.bf16.msra.mxu0 0
  %990 = vmatprep.subr.bf16.mxu0 0
  %991 = vmatpush2.bf16.msra.mxu0 0
  %992 = vmatprep.subr.bf16.mxu0 0
  %993 = vmatpush2.bf16.msra.mxu0 0
  %994 = vmatprep.mubr.bf16.mxu0 0
  %995 = vmatmul.mubr.bf16.gmra.mxu0 %v954
  %v996 = vpop.f32.mrf.mxu0
  %v997 = vadd.f32 0.0, %v996
  %v998 = vpop.f32.mrf.mxu0
  %v999 = vpop.f32.mrf.mxu0
  %v1000 = vadd.f32 0.0, %v999
  %v1001 = vpop.f32.mrf.mxu0
  %1002 = vmatprep.mubr.bf16.mxu0 0
  %1003 = vmatmul.mubr.bf16.gmra.mxu0 %v957
  %v1004 = vpop.f32.mrf.mxu0
  %v1005 = vadd.f32 0.0, %v1004
  %v1006 = vpop.f32.mrf.mxu0
  %v1007 = vpop.f32.mrf.mxu0
  %v1008 = vpop.f32.mrf.mxu0
  %1009 = vdwg.mxu0
  %1013 = vrot.lane.b32.xlu0 %v997, 16
  %v1014 = vpop.permute.xlu0 %1013
  %1015 = vrot.lane.b32.xlu0 %v1000, 16
  %v1016 = vpop.permute.xlu0 %1015
  %1017 = vrot.lane.b32.xlu0 %v1005, 16
  %v1018 = vpop.permute.xlu0 %1017
  %v1022 = vsel %vm325, %v832, %v1014
  %v1023 = vsel %vm325, %v835, %v1016
  %v1024 = vsel %vm325, %v840, %v1018
  %v1028 = vrot.slane %v1022, 7
  %v1029 = vrot.slane %v1023, 7
  %v1030 = vsel %vm159, %v1028, %v1029
  %v1031 = vrot.slane %v1024, 7
  %v1032 = vsel %vm159, %v1029, %v1031
  %v1036 = vsel %vm159, %v666, %v1028
  %v1037 = vld [vmem:[%s1 + $0xd8] sm:$0xff]
  %v1038 = vld [vmem:[%s1 + $0xe0] sm:$0xff]
  %v1039 = vld [vmem:[%s1 + $0xe8] sm:$0xff]
  %v1040 = vld [vmem:[%s1 + $0xf0] sm:$0xff]
  %v1041 = vpack.c.bf16 %v665, %v664
  %v1042 = vpack.c.bf16 %v1030, %v1036
  %v1043 = vpack.c.bf16 %v1032, %v1032
  %v1044 = vpack.c.bf16 %v1038, %v1037
  %v1045 = vpack.c.bf16 %v1040, %v1039
  %v1047 = vsel %vm179, %v1041, 0
  %v1050 = vsel %vm179, %v1042, 0
  %v1053 = vsel %vm179, %v1043, 0
  %1055 = vmatprep.subr.bf16.mxu0 0
  %1056 = vmatpush1.bf16.msra.mxu0 0
  %1057 = vmatprep.subr.bf16.mxu0 0
  %1058 = vmatpush1.bf16.msra.mxu0 0
  %1059 = vmatprep.subr.bf16.mxu0 0
  %1060 = vmatpush1.bf16.msra.mxu0 0
  %1061 = vmatprep.subr.bf16.mxu0 0
  %1062 = vmatpush1.bf16.msra.mxu0 0
  %1063 = vmatprep.subr.bf16.mxu0 0
  %1064 = vmatpush1.bf16.msra.mxu0 0
  %1065 = vmatprep.subr.bf16.mxu0 0
  %1066 = vmatpush1.bf16.msra.mxu0 0
  %1067 = vmatprep.subr.bf16.mxu0 0
  %1068 = vmatpush1.bf16.msra.mxu0 %v1045
  %1069 = vmatprep.subr.bf16.mxu0 0
  %1070 = vmatpush1.bf16.msra.mxu0 %v1044
  %1071 = vmatprep.subr.bf16.mxu0 0
  %1072 = vmatpush2.bf16.msra.mxu0 0
  %1073 = vmatprep.subr.bf16.mxu0 0
  %1074 = vmatpush2.bf16.msra.mxu0 0
  %1075 = vmatprep.subr.bf16.mxu0 0
  %1076 = vmatpush2.bf16.msra.mxu0 0
  %1077 = vmatprep.subr.bf16.mxu0 0
  %1078 = vmatpush2.bf16.msra.mxu0 0
  %1079 = vmatprep.subr.bf16.mxu0 0
  %1080 = vmatpush2.bf16.msra.mxu0 0
  %1081 = vmatprep.subr.bf16.mxu0 0
  %1082 = vmatpush2.bf16.msra.mxu0 0
  %1083 = vmatprep.subr.bf16.mxu0 0
  %1084 = vmatpush2.bf16.msra.mxu0 0
  %1085 = vmatprep.subr.bf16.mxu0 0
  %1086 = vmatpush2.bf16.msra.mxu0 0
  %1087 = vmatprep.mubr.bf16.mxu0 0
  %1088 = vmatmul.mubr.bf16.gmra.mxu0 %v1047
  %v1089 = vpop.f32.mrf.mxu0
  %v1090 = vadd.f32 0.0, %v1089
  %v1091 = vpop.f32.mrf.mxu0
  %v1092 = vpop.f32.mrf.mxu0
  %v1093 = vadd.f32 0.0, %v1092
  %v1094 = vpop.f32.mrf.mxu0
  %1095 = vmatprep.mubr.bf16.mxu0 0
  %1096 = vmatmul.mubr.bf16.gmra.mxu0 %v1050
  %v1097 = vpop.f32.mrf.mxu0
  %v1098 = vadd.f32 0.0, %v1097
  %v1099 = vpop.f32.mrf.mxu0
  %v1100 = vpop.f32.mrf.mxu0
  %v1101 = vadd.f32 0.0, %v1100
  %v1102 = vpop.f32.mrf.mxu0
  %1103 = vmatprep.mubr.bf16.mxu0 0
  %1104 = vmatmul.mubr.bf16.gmra.mxu0 %v1053
  %v1105 = vpop.f32.mrf.mxu0
  %v1106 = vadd.f32 0.0, %v1105
  %v1107 = vpop.f32.mrf.mxu0
  %v1108 = vpop.f32.mrf.mxu0
  %v1109 = vpop.f32.mrf.mxu0
  %1110 = vdwg.mxu0
  %v1111 = vadd.f32 %v83, %v1090
  %v1112 = vadd.f32 %v86, %v1093
  %v1113 = vadd.f32 %v168, %v1098
  %v1114 = vadd.f32 %v162, %v1101
  %v1115 = vadd.f32 %v164, %v1106
  %v1116 = vld [vmem:[%s1 + $0xf8] sm:$0x1]
  %v1117 = vlaneseq
  %v1118 = vshrl.u32 %v1117, 7
  %v1119 = vsub.s32 0, %v1118
  %v1120 = vrot.slane %v1116, %v1119
  %v1121 = vadd.f32 %v1111, %v1120
  %v1122 = vadd.f32 %v1112, %v1120
  %v1123 = vadd.f32 %v1113, %v1120
  %v1124 = vadd.f32 %v1114, %v1120
  %v1125 = vadd.f32 %v1115, %v1120
  %v1126 = vsel %vm179, %v1121, 0.0
  %1127 = vadd.xlane.f32.xlu0 %v1126
  %v1128 = vpop.xlane.xlu0 %1127
  %v1129 = vsel %vm179, %v1122, 0.0
  %1130 = vadd.xlane.f32.xlu0 %v1129
  %v1131 = vpop.xlane.xlu0 %1130
  %v1132 = vsel %vm179, %v1123, 0.0
  %1133 = vadd.xlane.f32.xlu0 %v1132
  %v1134 = vpop.xlane.xlu0 %1133
  %v1135 = vsel %vm179, %v1124, 0.0
  %1136 = vadd.xlane.f32.xlu0 %v1135
  %v1137 = vpop.xlane.xlu0 %1136
  %v1138 = vsel %vm192, %v1125, 0.0
  %1139 = vadd.xlane.f32.xlu0 %v1138
  %v1140 = vpop.xlane.xlu0 %1139
  %v1141 = vmul.f32 %v1128, %v196
  %v1142 = vmul.f32 %v1131, %v196
  %v1143 = vmul.f32 %v1134, %v196
  %v1144 = vmul.f32 %v1137, %v196
  %v1145 = vmul.f32 %v1140, %v196
  %v1146 = vsub.f32 %v1121, %v1141
  %v1147 = vsub.f32 %v1122, %v1142
  %v1148 = vsub.f32 %v1123, %v1143
  %v1149 = vsub.f32 %v1124, %v1144
  %v1150 = vsub.f32 %v1125, %v1145
  %v1151 = vmul.f32 %v1146, %v1146
  %v1152 = vmul.f32 %v1147, %v1147
  %v1153 = vmul.f32 %v1148, %v1148
  %v1154 = vmul.f32 %v1149, %v1149
  %v1155 = vmul.f32 %v1150, %v1150
  %v1156 = vsel %vm179, %v1151, 0.0
  %1157 = vadd.xlane.f32.xlu0 %v1156
  %v1158 = vpop.xlane.xlu0 %1157
  %v1159 = vsel %vm179, %v1152, 0.0
  %1160 = vadd.xlane.f32.xlu0 %v1159
  %v1161 = vpop.xlane.xlu0 %1160
  %v1162 = vsel %vm179, %v1153, 0.0
  %1163 = vadd.xlane.f32.xlu0 %v1162
  %v1164 = vpop.xlane.xlu0 %1163
  %v1165 = vsel %vm179, %v1154, 0.0
  %1166 = vadd.xlane.f32.xlu0 %v1165
  %v1167 = vpop.xlane.xlu0 %1166
  %v1168 = vsel %vm192, %v1155, 0.0
  %1169 = vadd.xlane.f32.xlu0 %v1168
  %v1170 = vpop.xlane.xlu0 %1169
  %v1171 = vmul.f32 %v1158, %v196
  %v1172 = vmul.f32 %v1161, %v196
  %v1173 = vmul.f32 %v1164, %v196
  %v1174 = vmul.f32 %v1167, %v196
  %v1175 = vmul.f32 %v1170, %v196
  %v1176 = vadd.f32 %v1171, 1e-06
  %v1177 = vadd.f32 %v1172, 1e-06
  %v1178 = vadd.f32 %v1173, 1e-06
  %v1179 = vadd.f32 %v1174, 1e-06
  %v1180 = vadd.f32 %v1175, 1e-06
  %v1181 = vrsqrt.pop %v1176
  %v1182 = vrsqrt.pop %v1177
  %v1183 = vrsqrt.pop %v1178
  %v1184 = vrsqrt.pop %v1179
  %v1185 = vrsqrt.pop %v1180
  %v1186 = vmul.f32 %v1146, %v1181
  %v1187 = vmul.f32 %v1147, %v1182
  %v1188 = vmul.f32 %v1148, %v1183
  %v1189 = vmul.f32 %v1149, %v1184
  %v1190 = vmul.f32 %v1150, %v1185
  %v1191 = vpack.c.bf16 %v1187, %v1186
  %v1192 = vpack.c.bf16 %v1189, %v1188
  %v1193 = vpack.c.bf16 %v1190, %v1190
  %v1194 = vpack.c.bf16 %v170, %v169
  %v1195 = vpack.c.bf16 %v172, %v171
  %v1197 = vsel %vm179, %v1191, 0
  %v1200 = vsel %vm179, %v1192, 0
  %v1203 = vsel %vm179, %v1193, 0
  %1205 = vmatprep.subr.bf16.mxu0 0
  %1206 = vmatpush1.bf16.msra.mxu0 0
  %1207 = vmatprep.subr.bf16.mxu0 0
  %1208 = vmatpush1.bf16.msra.mxu0 0
  %1209 = vmatprep.subr.bf16.mxu0 0
  %1210 = vmatpush1.bf16.msra.mxu0 0
  %1211 = vmatprep.subr.bf16.mxu0 0
  %1212 = vmatpush1.bf16.msra.mxu0 0
  %1213 = vmatprep.subr.bf16.mxu0 0
  %1214 = vmatpush1.bf16.msra.mxu0 0
  %1215 = vmatprep.subr.bf16.mxu0 0
  %1216 = vmatpush1.bf16.msra.mxu0 0
  %1217 = vmatprep.subr.bf16.mxu0 0
  %1218 = vmatpush1.bf16.msra.mxu0 %v1195
  %1219 = vmatprep.subr.bf16.mxu0 0
  %1220 = vmatpush1.bf16.msra.mxu0 %v1194
  %1221 = vmatprep.subr.bf16.mxu0 0
  %1222 = vmatpush2.bf16.msra.mxu0 0
  %1223 = vmatprep.subr.bf16.mxu0 0
  %1224 = vmatpush2.bf16.msra.mxu0 0
  %1225 = vmatprep.subr.bf16.mxu0 0
  %1226 = vmatpush2.bf16.msra.mxu0 0
  %1227 = vmatprep.subr.bf16.mxu0 0
  %1228 = vmatpush2.bf16.msra.mxu0 0
  %1229 = vmatprep.subr.bf16.mxu0 0
  %1230 = vmatpush2.bf16.msra.mxu0 0
  %1231 = vmatprep.subr.bf16.mxu0 0
  %1232 = vmatpush2.bf16.msra.mxu0 0
  %1233 = vmatprep.subr.bf16.mxu0 0
  %1234 = vmatpush2.bf16.msra.mxu0 0
  %1235 = vmatprep.subr.bf16.mxu0 0
  %1236 = vmatpush2.bf16.msra.mxu0 0
  %1237 = vmatprep.mubr.bf16.mxu0 0
  %1238 = vmatmul.mubr.bf16.gmra.mxu0 %v1197
  %v1239 = vpop.f32.mrf.mxu0
  %v1240 = vadd.f32 %v177, %v1239
  %v1241 = vpop.f32.mrf.mxu0
  %v1242 = vpop.f32.mrf.mxu0
  %v1243 = vadd.f32 %v177, %v1242
  %v1244 = vpop.f32.mrf.mxu0
  %1245 = vmatprep.mubr.bf16.mxu0 0
  %1246 = vmatmul.mubr.bf16.gmra.mxu0 %v1200
  %v1247 = vpop.f32.mrf.mxu0
  %v1248 = vadd.f32 %v177, %v1247
  %v1249 = vpop.f32.mrf.mxu0
  %v1250 = vpop.f32.mrf.mxu0
  %v1251 = vadd.f32 %v177, %v1250
  %v1252 = vpop.f32.mrf.mxu0
  %1253 = vmatprep.mubr.bf16.mxu0 0
  %1254 = vmatmul.mubr.bf16.gmra.mxu0 %v1203
  %v1255 = vpop.f32.mrf.mxu0
  %v1256 = vadd.f32 %v177, %v1255
  %v1257 = vpop.f32.mrf.mxu0
  %v1258 = vpop.f32.mrf.mxu0
  %v1259 = vpop.f32.mrf.mxu0
  %1260 = vdwg.mxu0
  %v1261 = vmul.f32 %v1240, %v1240
  %v1262 = vmul.f32 %v1243, %v1243
  %v1263 = vmul.f32 %v1248, %v1248
  %v1264 = vmul.f32 %v1251, %v1251
  %v1265 = vmul.f32 %v1256, %v1256
  %v1266 = vmul.f32 %v1240, %v1261
  %v1267 = vmul.f32 %v1243, %v1262
  %v1268 = vmul.f32 %v1248, %v1263
  %v1269 = vmul.f32 %v1251, %v1264
  %v1270 = vmul.f32 %v1256, %v1265
  %v1271 = vmul.f32 %v1266, 0.044715
  %v1272 = vmul.f32 %v1267, 0.044715
  %v1273 = vmul.f32 %v1268, 0.044715
  %v1274 = vmul.f32 %v1269, 0.044715
  %v1275 = vmul.f32 %v1270, 0.044715
  %v1276 = vadd.f32 %v1240, %v1271
  %v1277 = vadd.f32 %v1243, %v1272
  %v1278 = vadd.f32 %v1248, %v1273
  %v1279 = vadd.f32 %v1251, %v1274
  %v1280 = vadd.f32 %v1256, %v1275
  %v1281 = vmul.f32 %v1276, 0.7978846
  %v1282 = vmul.f32 %v1277, 0.7978846
  %v1283 = vmul.f32 %v1278, 0.7978846
  %v1284 = vmul.f32 %v1279, 0.7978846
  %v1285 = vmul.f32 %v1280, 0.7978846
  %v1286 = vtanh.pop %v1281
  %v1287 = vtanh.pop %v1282
  %v1288 = vtanh.pop %v1283
  %v1289 = vtanh.pop %v1284
  %v1290 = vtanh.pop %v1285
  %v1291 = vadd.f32 %v1286, 1.0
  %v1292 = vadd.f32 %v1287, 1.0
  %v1293 = vadd.f32 %v1288, 1.0
  %v1294 = vadd.f32 %v1289, 1.0
  %v1295 = vadd.f32 %v1290, 1.0
  %v1296 = vmul.f32 %v1291, 0.5
  %v1297 = vmul.f32 %v1292, 0.5
  %v1298 = vmul.f32 %v1293, 0.5
  %v1299 = vmul.f32 %v1294, 0.5
  %v1300 = vmul.f32 %v1295, 0.5
  %v1301 = vmul.f32 %v1240, %v1296
  %v1302 = vmul.f32 %v1243, %v1297
  %v1303 = vmul.f32 %v1248, %v1298
  %v1304 = vmul.f32 %v1251, %v1299
  %v1305 = vmul.f32 %v1256, %v1300
  %v1306 = vld [vmem:[%s1 + $0x100] sm:$0xff]
  %v1307 = vld [vmem:[%s1 + $0x108] sm:$0xff]
  %v1308 = vld [vmem:[%s1 + $0x110] sm:$0xff]
  %v1309 = vld [vmem:[%s1 + $0x118] sm:$0xff]
  %v1310 = vld [vmem:[%s1 + $0x120] sm:$0xff]
  %v1311 = vld [vmem:[%s1 + $0x128] sm:$0xff]
  %v1312 = vld [vmem:[%s1 + $0x130] sm:$0xff]
  %v1313 = vld [vmem:[%s1 + $0x138] sm:$0xff]
  %v1314 = vld [vmem:[%s1 + $0x140] sm:$0xff]
  %v1315 = vld [vmem:[%s1 + $0x148] sm:$0xff]
  %v1316 = vld [vmem:[%s1 + $0x150] sm:$0xff]
  %v1317 = vld [vmem:[%s1 + $0x158] sm:$0xff]
  %v1318 = vld [vmem:[%s1 + $0x160] sm:$0xff]
  %v1319 = vld [vmem:[%s1 + $0x168] sm:$0xff]
  %v1320 = vld [vmem:[%s1 + $0x170] sm:$0xff]
  %v1321 = vld [vmem:[%s1 + $0x178] sm:$0xff]
  %v1322 = vpack.c.bf16 %v1302, %v1301
  %v1323 = vpack.c.bf16 %v1304, %v1303
  %v1324 = vpack.c.bf16 %v1305, %v1305
  %v1325 = vpack.c.bf16 %v1307, %v1306
  %v1326 = vpack.c.bf16 %v1309, %v1308
  %v1327 = vpack.c.bf16 %v1311, %v1310
  %v1328 = vpack.c.bf16 %v1313, %v1312
  %v1329 = vpack.c.bf16 %v1315, %v1314
  %v1330 = vpack.c.bf16 %v1317, %v1316
  %v1331 = vpack.c.bf16 %v1319, %v1318
  %v1332 = vpack.c.bf16 %v1321, %v1320
  %v1333 = vld [vmem:[%s1 + $0x180] sm:$0x1]
  %v1334 = vlaneseq
  %v1335 = vshrl.u32 %v1334, 7
  %v1336 = vsub.s32 0, %v1335
  %v1337 = vrot.slane %v1333, %v1336
  %1338 = vmatprep.subr.bf16.mxu0 0
  %1339 = vmatpush1.bf16.msra.mxu0 %v1332
  %1340 = vmatprep.subr.bf16.mxu0 0
  %1341 = vmatpush1.bf16.msra.mxu0 %v1331
  %1342 = vmatprep.subr.bf16.mxu0 0
  %1343 = vmatpush1.bf16.msra.mxu0 %v1330
  %1344 = vmatprep.subr.bf16.mxu0 0
  %1345 = vmatpush1.bf16.msra.mxu0 %v1329
  %1346 = vmatprep.subr.bf16.mxu0 0
  %1347 = vmatpush1.bf16.msra.mxu0 %v1328
  %1348 = vmatprep.subr.bf16.mxu0 0
  %1349 = vmatpush1.bf16.msra.mxu0 %v1327
  %1350 = vmatprep.subr.bf16.mxu0 0
  %1351 = vmatpush1.bf16.msra.mxu0 %v1326
  %1352 = vmatprep.subr.bf16.mxu0 0
  %1353 = vmatpush1.bf16.msra.mxu0 %v1325
  %1354 = vmatprep.subr.bf16.mxu0 0
  %1355 = vmatpush2.bf16.msra.mxu0 0
  %1356 = vmatprep.subr.bf16.mxu0 0
  %1357 = vmatpush2.bf16.msra.mxu0 0
  %1358 = vmatprep.subr.bf16.mxu0 0
  %1359 = vmatpush2.bf16.msra.mxu0 0
  %1360 = vmatprep.subr.bf16.mxu0 0
  %1361 = vmatpush2.bf16.msra.mxu0 0
  %1362 = vmatprep.subr.bf16.mxu0 0
  %1363 = vmatpush2.bf16.msra.mxu0 0
  %1364 = vmatprep.subr.bf16.mxu0 0
  %1365 = vmatpush2.bf16.msra.mxu0 0
  %1366 = vmatprep.subr.bf16.mxu0 0
  %1367 = vmatpush2.bf16.msra.mxu0 0
  %1368 = vmatprep.subr.bf16.mxu0 0
  %1369 = vmatpush2.bf16.msra.mxu0 0
  %1370 = vmatprep.mubr.bf16.mxu0 0
  %1371 = vmatmul.mubr.bf16.gmra.mxu0 %v1322
  %v1372 = vpop.f32.mrf.mxu0
  %v1373 = vadd.f32 %v1337, %v1372
  %v1374 = vpop.f32.mrf.mxu0
  %v1375 = vpop.f32.mrf.mxu0
  %v1376 = vadd.f32 %v1337, %v1375
  %v1377 = vpop.f32.mrf.mxu0
  %1378 = vmatprep.mubr.bf16.mxu0 0
  %1379 = vmatmul.mubr.bf16.gmra.mxu0 %v1323
  %v1380 = vpop.f32.mrf.mxu0
  %v1381 = vadd.f32 %v1337, %v1380
  %v1382 = vpop.f32.mrf.mxu0
  %v1383 = vpop.f32.mrf.mxu0
  %v1384 = vadd.f32 %v1337, %v1383
  %v1385 = vpop.f32.mrf.mxu0
  %1386 = vmatprep.mubr.bf16.mxu0 0
  %1387 = vmatmul.mubr.bf16.gmra.mxu0 %v1324
  %v1388 = vpop.f32.mrf.mxu0
  %v1389 = vadd.f32 %v1337, %v1388
  %v1390 = vpop.f32.mrf.mxu0
  %v1391 = vpop.f32.mrf.mxu0
  %v1392 = vpop.f32.mrf.mxu0
  %1393 = vdwg.mxu0
  %v1394 = vadd.f32 %v1121, %v1373
  %v1395 = vadd.f32 %v1122, %v1376
  %v1396 = vadd.f32 %v1123, %v1381
  %v1397 = vadd.f32 %v1124, %v1384
  %v1398 = vadd.f32 %v1125, %v1389
  %v1399 = vld [vmem:[%s2 + $0x50] sm:$0xff]
  %v1400 = vld [vmem:[%s2 + $0x60] sm:$0xff]
  %v1401 = vld [vmem:[%s2 + $0x70] sm:$0xff]
  %v1402 = vld [vmem:[%s2 + $0x80] sm:$0xff]
  %v1403 = vld [vmem:[%s2 + $0x58] sm:$0xff]
  %v1404 = vld [vmem:[%s2 + $0x68] sm:$0xff]
  %v1405 = vld [vmem:[%s2 + $0x78] sm:$0xff]
  %v1406 = vld [vmem:[%s2 + $0x88] sm:$0xff]
  %v1407 = vld [vmem:[%s2 + $0x90] ss:$0 sm:$0xff]
  %v1408 = vld [vmem:[%s2 + $0x98] ss:$0 sm:$0xff]
  %v1409 = vsel %vm179, %v1394, 0.0
  %1410 = vadd.xlane.f32.xlu0 %v1409
  %v1411 = vpop.xlane.xlu0 %1410
  %v1412 = vsel %vm179, %v1395, 0.0
  %1413 = vadd.xlane.f32.xlu0 %v1412
  %v1414 = vpop.xlane.xlu0 %1413
  %v1415 = vsel %vm179, %v1396, 0.0
  %1416 = vadd.xlane.f32.xlu0 %v1415
  %v1417 = vpop.xlane.xlu0 %1416
  %v1418 = vsel %vm179, %v1397, 0.0
  %1419 = vadd.xlane.f32.xlu0 %v1418
  %v1420 = vpop.xlane.xlu0 %1419
  %v1421 = vsel %vm192, %v1398, 0.0
  %1422 = vadd.xlane.f32.xlu0 %v1421
  %v1423 = vpop.xlane.xlu0 %1422
  %v1424 = vmul.f32 %v1411, %v196
  %v1425 = vmul.f32 %v1414, %v196
  %v1426 = vmul.f32 %v1417, %v196
  %v1427 = vmul.f32 %v1420, %v196
  %v1428 = vmul.f32 %v1423, %v196
  %v1429 = vsub.f32 %v1394, %v1424
  %v1430 = vsub.f32 %v1395, %v1425
  %v1431 = vsub.f32 %v1396, %v1426
  %v1432 = vsub.f32 %v1397, %v1427
  %v1433 = vsub.f32 %v1398, %v1428
  %v1434 = vmul.f32 %v1429, %v1429
  %v1435 = vmul.f32 %v1430, %v1430
  %v1436 = vmul.f32 %v1431, %v1431
  %v1437 = vmul.f32 %v1432, %v1432
  %v1438 = vmul.f32 %v1433, %v1433
  %v1439 = vsel %vm179, %v1434, 0.0
  %1440 = vadd.xlane.f32.xlu0 %v1439
  %v1441 = vpop.xlane.xlu0 %1440
  %v1442 = vsel %vm179, %v1435, 0.0
  %1443 = vadd.xlane.f32.xlu0 %v1442
  %v1444 = vpop.xlane.xlu0 %1443
  %v1445 = vsel %vm179, %v1436, 0.0
  %1446 = vadd.xlane.f32.xlu0 %v1445
  %v1447 = vpop.xlane.xlu0 %1446
  %v1448 = vsel %vm179, %v1437, 0.0
  %1449 = vadd.xlane.f32.xlu0 %v1448
  %v1450 = vpop.xlane.xlu0 %1449
  %v1451 = vsel %vm192, %v1438, 0.0
  %1452 = vadd.xlane.f32.xlu0 %v1451
  %v1453 = vpop.xlane.xlu0 %1452
  %v1454 = vmul.f32 %v1441, %v196
  %v1455 = vmul.f32 %v1444, %v196
  %v1456 = vmul.f32 %v1447, %v196
  %v1457 = vmul.f32 %v1450, %v196
  %v1458 = vmul.f32 %v1453, %v196
  %v1459 = vadd.f32 %v1454, 1e-06
  %v1460 = vadd.f32 %v1455, 1e-06
  %v1461 = vadd.f32 %v1456, 1e-06
  %v1462 = vadd.f32 %v1457, 1e-06
  %v1463 = vadd.f32 %v1458, 1e-06
  %v1464 = vrsqrt.pop %v1459
  %v1465 = vrsqrt.pop %v1460
  %v1466 = vrsqrt.pop %v1461
  %v1467 = vrsqrt.pop %v1462
  %v1468 = vrsqrt.pop %v1463
  %v1469 = vmul.f32 %v1429, %v1464
  %v1470 = vmul.f32 %v1430, %v1465
  %v1471 = vmul.f32 %v1431, %v1466
  %v1472 = vmul.f32 %v1432, %v1467
  %v1473 = vmul.f32 %v1433, %v1468
  %v1474 = vpack.c.bf16 %v1470, %v1469
  %v1475 = vpack.c.bf16 %v1472, %v1471
  %v1476 = vpack.c.bf16 %v1473, %v1473
  %v1477 = vpack.c.bf16 %v1404, %v1403
  %v1478 = vpack.c.bf16 %v1406, %v1405
  %v1480 = vsel %vm179, %v1474, 0
  %v1483 = vsel %vm179, %v1475, 0
  %v1486 = vsel %vm179, %v1476, 0
  %1488 = vmatprep.subr.bf16.mxu0 0
  %1489 = vmatpush1.bf16.msra.mxu0 0
  %1490 = vmatprep.subr.bf16.mxu0 0
  %1491 = vmatpush1.bf16.msra.mxu0 0
  %1492 = vmatprep.subr.bf16.mxu0 0
  %1493 = vmatpush1.bf16.msra.mxu0 0
  %1494 = vmatprep.subr.bf16.mxu0 0
  %1495 = vmatpush1.bf16.msra.mxu0 0
  %1496 = vmatprep.subr.bf16.mxu0 0
  %1497 = vmatpush1.bf16.msra.mxu0 0
  %1498 = vmatprep.subr.bf16.mxu0 0
  %1499 = vmatpush1.bf16.msra.mxu0 0
  %1500 = vmatprep.subr.bf16.mxu0 0
  %1501 = vmatpush1.bf16.msra.mxu0 %v1478
  %1502 = vmatprep.subr.bf16.mxu0 0
  %1503 = vmatpush1.bf16.msra.mxu0 %v1477
  %1504 = vmatprep.subr.bf16.mxu0 0
  %1505 = vmatpush2.bf16.msra.mxu0 0
  %1506 = vmatprep.subr.bf16.mxu0 0
  %1507 = vmatpush2.bf16.msra.mxu0 0
  %1508 = vmatprep.subr.bf16.mxu0 0
  %1509 = vmatpush2.bf16.msra.mxu0 0
  %1510 = vmatprep.subr.bf16.mxu0 0
  %1511 = vmatpush2.bf16.msra.mxu0 0
  %1512 = vmatprep.subr.bf16.mxu0 0
  %1513 = vmatpush2.bf16.msra.mxu0 0
  %1514 = vmatprep.subr.bf16.mxu0 0
  %1515 = vmatpush2.bf16.msra.mxu0 0
  %1516 = vmatprep.subr.bf16.mxu0 0
  %1517 = vmatpush2.bf16.msra.mxu0 0
  %1518 = vmatprep.subr.bf16.mxu0 0
  %1519 = vmatpush2.bf16.msra.mxu0 0
  %1520 = vmatprep.mubr.bf16.mxu0 0
  %1521 = vmatmul.mubr.bf16.gmra.mxu0 %v1480
  %v1522 = vpop.f32.mrf.mxu0
  %v1523 = vadd.f32 %v1408, %v1522
  %v1524 = vpop.f32.mrf.mxu0
  %v1525 = vpop.f32.mrf.mxu0
  %v1526 = vadd.f32 %v1408, %v1525
  %v1527 = vpop.f32.mrf.mxu0
  %1528 = vmatprep.mubr.bf16.mxu0 0
  %1529 = vmatmul.mubr.bf16.gmra.mxu0 %v1483
  %v1530 = vpop.f32.mrf.mxu0
  %v1531 = vadd.f32 %v1408, %v1530
  %v1532 = vpop.f32.mrf.mxu0
  %v1533 = vpop.f32.mrf.mxu0
  %v1534 = vadd.f32 %v1408, %v1533
  %v1535 = vpop.f32.mrf.mxu0
  %1536 = vmatprep.mubr.bf16.mxu0 0
  %1537 = vmatmul.mubr.bf16.gmra.mxu0 %v1486
  %v1538 = vpop.f32.mrf.mxu0
  %v1539 = vadd.f32 %v1408, %v1538
  %v1540 = vpop.f32.mrf.mxu0
  %v1541 = vpop.f32.mrf.mxu0
  %v1542 = vpop.f32.mrf.mxu0
  %1543 = vdwg.mxu0
  %v1544 = vpack.c.bf16 %v1526, %v1523
  %v1545 = vpack.c.bf16 %v1531, %v1531
  %1548 = vrot.lane.b32.xlu0 %v1544, 96
  %v1549 = vpop.permute.xlu0 %1548
  %1550 = vrot.lane.b32.xlu0 %v1545, 96
  %v1551 = vpop.permute.xlu0 %1550
  %v1553 = vsel %vm325, %v1544, 0
  %v1556 = vsel %vm325, %v1545, 0
  %v1559 = vsel %vm325, %v1549, 0
  %v1562 = vsel %vm325, %v1551, 0
  %1564 = vmatprep.subr.bf16.mxu0 0
  %1565 = vmatpush1.bf16.xpose.msra.mxu0 0
  %1566 = vmatprep.subr.bf16.mxu0 0
  %1567 = vmatpush1.bf16.xpose.msra.mxu0 0
  %1568 = vmatprep.subr.bf16.mxu0 0
  %1569 = vmatpush1.bf16.xpose.msra.mxu0 0
  %1570 = vmatprep.subr.bf16.mxu0 0
  %1571 = vmatpush1.bf16.xpose.msra.mxu0 0
  %1572 = vmatprep.subr.bf16.mxu0 0
  %1573 = vmatpush1.bf16.xpose.msra.mxu0 0
  %1574 = vmatprep.subr.bf16.mxu0 0
  %1575 = vmatpush1.bf16.xpose.msra.mxu0 0
  %1576 = vmatprep.subr.bf16.mxu0 0
  %1577 = vmatpush1.bf16.xpose.msra.mxu0 %v1562
  %1578 = vmatprep.subr.bf16.mxu0 0
  %1579 = vmatpush1.bf16.xpose.msra.mxu0 %v1559
  %1580 = vmatprep.subr.bf16.mxu0 0
  %1581 = vmatpush2.bf16.xpose.msra.mxu0 0
  %1582 = vmatprep.subr.bf16.mxu0 0
  %1583 = vmatpush2.bf16.xpose.msra.mxu0 0
  %1584 = vmatprep.subr.bf16.mxu0 0
  %1585 = vmatpush2.bf16.xpose.msra.mxu0 0
  %1586 = vmatprep.subr.bf16.mxu0 0
  %1587 = vmatpush2.bf16.xpose.msra.mxu0 0
  %1588 = vmatprep.subr.bf16.mxu0 0
  %1589 = vmatpush2.bf16.xpose.msra.mxu0 0
  %1590 = vmatprep.subr.bf16.mxu0 0
  %1591 = vmatpush2.bf16.xpose.msra.mxu0 0
  %1592 = vmatprep.subr.bf16.mxu0 0
  %1593 = vmatpush2.bf16.xpose.msra.mxu0 0
  %1594 = vmatprep.subr.bf16.mxu0 0
  %1595 = vmatpush2.bf16.xpose.msra.mxu0 0
  %1596 = vmatprep.mubr.bf16.mxu0 0
  %1597 = vmatmul.mubr.bf16.gmra.mxu0 %v1553
  %v1598 = vpop.f32.mrf.mxu0
  %v1599 = vadd.f32 0.0, %v1598
  %v1600 = vpop.f32.mrf.mxu0
  %v1601 = vpop.f32.mrf.mxu0
  %v1602 = vadd.f32 0.0, %v1601
  %v1603 = vpop.f32.mrf.mxu0
  %1604 = vmatprep.mubr.bf16.mxu0 0
  %1605 = vmatmul.mubr.bf16.gmra.mxu0 %v1556
  %v1606 = vpop.f32.mrf.mxu0
  %v1607 = vadd.f32 0.0, %v1606
  %v1608 = vpop.f32.mrf.mxu0
  %v1609 = vpop.f32.mrf.mxu0
  %v1610 = vpop.f32.mrf.mxu0
  %1611 = vdwg.mxu0
  %v1612 = vsel %vm386, %v1599, -inf
  %1613 = vmax.xlane.f32.xlu0 %v1612
  %v1614 = vpop.xlane.xlu0 %1613
  %v1615 = vsel %vm386, %v1602, -inf
  %1616 = vmax.xlane.f32.xlu0 %v1615
  %v1617 = vpop.xlane.xlu0 %1616
  %v1618 = vsel %vm393, %v1607, -inf
  %1619 = vmax.xlane.f32.xlu0 %v1618
  %v1620 = vpop.xlane.xlu0 %1619
  %v1621 = vsub.f32 %v1599, %v1614
  %v1622 = vsub.f32 %v1602, %v1617
  %v1623 = vsub.f32 %v1607, %v1620
  %v1624 = vmul.f32 %v1621, 1.442695
  %v1625 = vpow.pop %v1624
  %v1626 = vmul.f32 %v1622, 1.442695
  %v1627 = vpow.pop %v1626
  %v1628 = vmul.f32 %v1623, 1.442695
  %v1629 = vpow.pop %v1628
  %v1630 = vsel %vm386, %v1625, 0.0
  %1631 = vadd.xlane.f32.xlu0 %v1630
  %v1632 = vpop.xlane.xlu0 %1631
  %v1633 = vsel %vm386, %v1627, 0.0
  %1634 = vadd.xlane.f32.xlu0 %v1633
  %v1635 = vpop.xlane.xlu0 %1634
  %v1636 = vsel %vm393, %v1629, 0.0
  %1637 = vadd.xlane.f32.xlu0 %v1636
  %v1638 = vpop.xlane.xlu0 %1637
  %v1639 = vrcp.pop %v1632
  %v1640 = vrcp.pop %v1635
  %v1641 = vrcp.pop %v1638
  %v1642 = vmul.f32 %v1625, %v1639
  %v1643 = vmul.f32 %v1627, %v1640
  %v1644 = vmul.f32 %v1629, %v1641
  %v1645 = vpack.c.bf16 %v1643, %v1642
  %v1646 = vpack.c.bf16 %v1644, %v1644
  %1647 = vrot.lane.b32.xlu0 %v1544, 64
  %v1648 = vpop.permute.xlu0 %1647
  %1649 = vrot.lane.b32.xlu0 %v1545, 64
  %v1650 = vpop.permute.xlu0 %1649
  %v1653 = vsel %vm386, %v1645, 0
  %v1656 = vsel %vm386, %v1646, 0
  %v1659 = vand.u32 %v1650, %v435
  %1661 = vmatprep.subr.bf16.mxu0 0
  %1662 = vmatpush1.bf16.msra.mxu0 0
  %1663 = vmatprep.subr.bf16.mxu0 0
  %1664 = vmatpush1.bf16.msra.mxu0 0
  %1665 = vmatprep.subr.bf16.mxu0 0
  %1666 = vmatpush1.bf16.msra.mxu0 0
  %1667 = vmatprep.subr.bf16.mxu0 0
  %1668 = vmatpush1.bf16.msra.mxu0 0
  %1669 = vmatprep.subr.bf16.mxu0 0
  %1670 = vmatpush1.bf16.msra.mxu0 0
  %1671 = vmatprep.subr.bf16.mxu0 0
  %1672 = vmatpush1.bf16.msra.mxu0 0
  %1673 = vmatprep.subr.bf16.mxu0 0
  %1674 = vmatpush1.bf16.msra.mxu0 %v1659
  %1675 = vmatprep.subr.bf16.mxu0 0
  %1676 = vmatpush1.bf16.msra.mxu0 %v1648
  %1677 = vmatprep.subr.bf16.mxu0 0
  %1678 = vmatpush2.bf16.msra.mxu0 0
  %1679 = vmatprep.subr.bf16.mxu0 0
  %1680 = vmatpush2.bf16.msra.mxu0 0
  %1681 = vmatprep.subr.bf16.mxu0 0
  %1682 = vmatpush2.bf16.msra.mxu0 0
  %1683 = vmatprep.subr.bf16.mxu0 0
  %1684 = vmatpush2.bf16.msra.mxu0 0
  %1685 = vmatprep.subr.bf16.mxu0 0
  %1686 = vmatpush2.bf16.msra.mxu0 0
  %1687 = vmatprep.subr.bf16.mxu0 0
  %1688 = vmatpush2.bf16.msra.mxu0 0
  %1689 = vmatprep.subr.bf16.mxu0 0
  %1690 = vmatpush2.bf16.msra.mxu0 0
  %1691 = vmatprep.subr.bf16.mxu0 0
  %1692 = vmatpush2.bf16.msra.mxu0 0
  %1693 = vmatprep.mubr.bf16.mxu0 0
  %1694 = vmatmul.mubr.bf16.gmra.mxu0 %v1653
  %v1695 = vpop.f32.mrf.mxu0
  %v1696 = vadd.f32 0.0, %v1695
  %v1697 = vpop.f32.mrf.mxu0
  %v1698 = vpop.f32.mrf.mxu0
  %v1699 = vadd.f32 0.0, %v1698
  %v1700 = vpop.f32.mrf.mxu0
  %1701 = vmatprep.mubr.bf16.mxu0 0
  %1702 = vmatmul.mubr.bf16.gmra.mxu0 %v1656
  %v1703 = vpop.f32.mrf.mxu0
  %v1704 = vadd.f32 0.0, %v1703
  %v1705 = vpop.f32.mrf.mxu0
  %v1706 = vpop.f32.mrf.mxu0
  %v1707 = vpop.f32.mrf.mxu0
  %1708 = vdwg.mxu0
  %1709 = vrot.lane.b32.xlu0 %v1544, 112
  %v1710 = vpop.permute.xlu0 %1709
  %1711 = vrot.lane.b32.xlu0 %v1545, 112
  %v1712 = vpop.permute.xlu0 %1711
  %1713 = vrot.lane.b32.xlu0 %v1544, 80
  %v1714 = vpop.permute.xlu0 %1713
  %1715 = vrot.lane.b32.xlu0 %v1545, 80
  %v1716 = vpop.permute.xlu0 %1715
  %v1718 = vsel %vm325, %v1710, 0
  %v1721 = vsel %vm325, %v1712, 0
  %v1724 = vsel %vm325, %v1714, 0
  %v1727 = vsel %vm325, %v1716, 0
  %1729 = vmatprep.subr.bf16.mxu0 0
  %1730 = vmatpush1.bf16.xpose.msra.mxu0 0
  %1731 = vmatprep.subr.bf16.mxu0 0
  %1732 = vmatpush1.bf16.xpose.msra.mxu0 0
  %1733 = vmatprep.subr.bf16.mxu0 0
  %1734 = vmatpush1.bf16.xpose.msra.mxu0 0
  %1735 = vmatprep.subr.bf16.mxu0 0
  %1736 = vmatpush1.bf16.xpose.msra.mxu0 0
  %1737 = vmatprep.subr.bf16.mxu0 0
  %1738 = vmatpush1.bf16.xpose.msra.mxu0 0
  %1739 = vmatprep.subr.bf16.mxu0 0
  %1740 = vmatpush1.bf16.xpose.msra.mxu0 0
  %1741 = vmatprep.subr.bf16.mxu0 0
  %1742 = vmatpush1.bf16.xpose.msra.mxu0 %v1727
  %1743 = vmatprep.subr.bf16.mxu0 0
  %1744 = vmatpush1.bf16.xpose.msra.mxu0 %v1724
  %1745 = vmatprep.subr.bf16.mxu0 0
  %1746 = vmatpush2.bf16.xpose.msra.mxu0 0
  %1747 = vmatprep.subr.bf16.mxu0 0
  %1748 = vmatpush2.bf16.xpose.msra.mxu0 0
  %1749 = vmatprep.subr.bf16.mxu0 0
  %1750 = vmatpush2.bf16.xpose.msra.mxu0 0
  %1751 = vmatprep.subr.bf16.mxu0 0
  %1752 = vmatpush2.bf16.xpose.msra.mxu0 0
  %1753 = vmatprep.subr.bf16.mxu0 0
  %1754 = vmatpush2.bf16.xpose.msra.mxu0 0
  %1755 = vmatprep.subr.bf16.mxu0 0
  %1756 = vmatpush2.bf16.xpose.msra.mxu0 0
  %1757 = vmatprep.subr.bf16.mxu0 0
  %1758 = vmatpush2.bf16.xpose.msra.mxu0 0
  %1759 = vmatprep.subr.bf16.mxu0 0
  %1760 = vmatpush2.bf16.xpose.msra.mxu0 0
  %1761 = vmatprep.mubr.bf16.mxu0 0
  %1762 = vmatmul.mubr.bf16.gmra.mxu0 %v1718
  %v1763 = vpop.f32.mrf.mxu0
  %v1764 = vadd.f32 0.0, %v1763
  %v1765 = vpop.f32.mrf.mxu0
  %v1766 = vpop.f32.mrf.mxu0
  %v1767 = vadd.f32 0.0, %v1766
  %v1768 = vpop.f32.mrf.mxu0
  %1769 = vmatprep.mubr.bf16.mxu0 0
  %1770 = vmatmul.mubr.bf16.gmra.mxu0 %v1721
  %v1771 = vpop.f32.mrf.mxu0
  %v1772 = vadd.f32 0.0, %v1771
  %v1773 = vpop.f32.mrf.mxu0
  %v1774 = vpop.f32.mrf.mxu0
  %v1775 = vpop.f32.mrf.mxu0
  %1776 = vdwg.mxu0
  %v1777 = vsel %vm386, %v1764, -inf
  %1778 = vmax.xlane.f32.xlu0 %v1777
  %v1779 = vpop.xlane.xlu0 %1778
  %v1780 = vsel %vm386, %v1767, -inf
  %1781 = vmax.xlane.f32.xlu0 %v1780
  %v1782 = vpop.xlane.xlu0 %1781
  %v1783 = vsel %vm393, %v1772, -inf
  %1784 = vmax.xlane.f32.xlu0 %v1783
  %v1785 = vpop.xlane.xlu0 %1784
  %v1786 = vsub.f32 %v1764, %v1779
  %v1787 = vsub.f32 %v1767, %v1782
  %v1788 = vsub.f32 %v1772, %v1785
  %v1789 = vmul.f32 %v1786, 1.442695
  %v1790 = vpow.pop %v1789
  %v1791 = vmul.f32 %v1787, 1.442695
  %v1792 = vpow.pop %v1791
  %v1793 = vmul.f32 %v1788, 1.442695
  %v1794 = vpow.pop %v1793
  %v1795 = vsel %vm386, %v1790, 0.0
  %1796 = vadd.xlane.f32.xlu0 %v1795
  %v1797 = vpop.xlane.xlu0 %1796
  %v1798 = vsel %vm386, %v1792, 0.0
  %1799 = vadd.xlane.f32.xlu0 %v1798
  %v1800 = vpop.xlane.xlu0 %1799
  %v1801 = vsel %vm393, %v1794, 0.0
  %1802 = vadd.xlane.f32.xlu0 %v1801
  %v1803 = vpop.xlane.xlu0 %1802
  %v1804 = vrcp.pop %v1797
  %v1805 = vrcp.pop %v1800
  %v1806 = vrcp.pop %v1803
  %v1807 = vmul.f32 %v1790, %v1804
  %v1808 = vmul.f32 %v1792, %v1805
  %v1809 = vmul.f32 %v1794, %v1806
  %v1810 = vpack.c.bf16 %v1808, %v1807
  %v1811 = vpack.c.bf16 %v1809, %v1809
  %1812 = vrot.lane.b32.xlu0 %v1544, 48
  %v1813 = vpop.permute.xlu0 %1812
  %1814 = vrot.lane.b32.xlu0 %v1545, 48
  %v1815 = vpop.permute.xlu0 %1814
  %v1818 = vsel %vm386, %v1810, 0
  %v1821 = vsel %vm386, %v1811, 0
  %v1824 = vand.u32 %v1815, %v435
  %1826 = vmatprep.subr.bf16.mxu0 0
  %1827 = vmatpush1.bf16.msra.mxu0 0
  %1828 = vmatprep.subr.bf16.mxu0 0
  %1829 = vmatpush1.bf16.msra.mxu0 0
  %1830 = vmatprep.subr.bf16.mxu0 0
  %1831 = vmatpush1.bf16.msra.mxu0 0
  %1832 = vmatprep.subr.bf16.mxu0 0
  %1833 = vmatpush1.bf16.msra.mxu0 0
  %1834 = vmatprep.subr.bf16.mxu0 0
  %1835 = vmatpush1.bf16.msra.mxu0 0
  %1836 = vmatprep.subr.bf16.mxu0 0
  %1837 = vmatpush1.bf16.msra.mxu0 0
  %1838 = vmatprep.subr.bf16.mxu0 0
  %1839 = vmatpush1.bf16.msra.mxu0 %v1824
  %1840 = vmatprep.subr.bf16.mxu0 0
  %1841 = vmatpush1.bf16.msra.mxu0 %v1813
  %1842 = vmatprep.subr.bf16.mxu0 0
  %1843 = vmatpush2.bf16.msra.mxu0 0
  %1844 = vmatprep.subr.bf16.mxu0 0
  %1845 = vmatpush2.bf16.msra.mxu0 0
  %1846 = vmatprep.subr.bf16.mxu0 0
  %1847 = vmatpush2.bf16.msra.mxu0 0
  %1848 = vmatprep.subr.bf16.mxu0 0
  %1849 = vmatpush2.bf16.msra.mxu0 0
  %1850 = vmatprep.subr.bf16.mxu0 0
  %1851 = vmatpush2.bf16.msra.mxu0 0
  %1852 = vmatprep.subr.bf16.mxu0 0
  %1853 = vmatpush2.bf16.msra.mxu0 0
  %1854 = vmatprep.subr.bf16.mxu0 0
  %1855 = vmatpush2.bf16.msra.mxu0 0
  %1856 = vmatprep.subr.bf16.mxu0 0
  %1857 = vmatpush2.bf16.msra.mxu0 0
  %1858 = vmatprep.mubr.bf16.mxu0 0
  %1859 = vmatmul.mubr.bf16.gmra.mxu0 %v1818
  %v1860 = vpop.f32.mrf.mxu0
  %v1861 = vadd.f32 0.0, %v1860
  %v1862 = vpop.f32.mrf.mxu0
  %v1863 = vpop.f32.mrf.mxu0
  %v1864 = vadd.f32 0.0, %v1863
  %v1865 = vpop.f32.mrf.mxu0
  %1866 = vmatprep.mubr.bf16.mxu0 0
  %1867 = vmatmul.mubr.bf16.gmra.mxu0 %v1821
  %v1868 = vpop.f32.mrf.mxu0
  %v1869 = vadd.f32 0.0, %v1868
  %v1870 = vpop.f32.mrf.mxu0
  %v1871 = vpop.f32.mrf.mxu0
  %v1872 = vpop.f32.mrf.mxu0
  %1873 = vdwg.mxu0
  %1877 = vrot.lane.b32.xlu0 %v1861, 16
  %v1878 = vpop.permute.xlu0 %1877
  %1879 = vrot.lane.b32.xlu0 %v1864, 16
  %v1880 = vpop.permute.xlu0 %1879
  %1881 = vrot.lane.b32.xlu0 %v1869, 16
  %v1882 = vpop.permute.xlu0 %1881
  %v1886 = vsel %vm325, %v1696, %v1878
  %v1887 = vsel %vm325, %v1699, %v1880
  %v1888 = vsel %vm325, %v1704, %v1882
  %v1889 = vpack.c.bf16 %v1534, %v1531
  %v1890 = vpack.c.bf16 %v1539, %v1539
  %v1892 = vshrl.u32 %v1889, 16
  %v1894 = vshll.u32 %v1889, 16
  %v1896 = vrot.slane %v1894, 1
  %v1897 = vor.u32 %v1892, %v1896
  %v1899 = vshll.u32 %v1890, 16
  %v1901 = vrot.slane %v1899, 1
  %v1902 = vsel %vm669, %v1897, %v1901
  %v1903 = vshrl.u32 %v1890, 16
  %1905 = vrot.lane.b32.xlu0 %v1902, 96
  %v1906 = vpop.permute.xlu0 %1905
  %1907 = vrot.lane.b32.xlu0 %v1903, 96
  %v1908 = vpop.permute.xlu0 %1907
  %v1910 = vsel %vm325, %v1902, 0
  %v1913 = vsel %vm325, %v1903, 0
  %v1916 = vsel %vm325, %v1906, 0
  %v1919 = vsel %vm325, %v1908, 0
  %1921 = vmatprep.subr.bf16.mxu0 0
  %1922 = vmatpush1.bf16.xpose.msra.mxu0 0
  %1923 = vmatprep.subr.bf16.mxu0 0
  %1924 = vmatpush1.bf16.xpose.msra.mxu0 0
  %1925 = vmatprep.subr.bf16.mxu0 0
  %1926 = vmatpush1.bf16.xpose.msra.mxu0 0
  %1927 = vmatprep.subr.bf16.mxu0 0
  %1928 = vmatpush1.bf16.xpose.msra.mxu0 0
  %1929 = vmatprep.subr.bf16.mxu0 0
  %1930 = vmatpush1.bf16.xpose.msra.mxu0 0
  %1931 = vmatprep.subr.bf16.mxu0 0
  %1932 = vmatpush1.bf16.xpose.msra.mxu0 0
  %1933 = vmatprep.subr.bf16.mxu0 0
  %1934 = vmatpush1.bf16.xpose.msra.mxu0 %v1919
  %1935 = vmatprep.subr.bf16.mxu0 0
  %1936 = vmatpush1.bf16.xpose.msra.mxu0 %v1916
  %1937 = vmatprep.subr.bf16.mxu0 0
  %1938 = vmatpush2.bf16.xpose.msra.mxu0 0
  %1939 = vmatprep.subr.bf16.mxu0 0
  %1940 = vmatpush2.bf16.xpose.msra.mxu0 0
  %1941 = vmatprep.subr.bf16.mxu0 0
  %1942 = vmatpush2.bf16.xpose.msra.mxu0 0
  %1943 = vmatprep.subr.bf16.mxu0 0
  %1944 = vmatpush2.bf16.xpose.msra.mxu0 0
  %1945 = vmatprep.subr.bf16.mxu0 0
  %1946 = vmatpush2.bf16.xpose.msra.mxu0 0
  %1947 = vmatprep.subr.bf16.mxu0 0
  %1948 = vmatpush2.bf16.xpose.msra.mxu0 0
  %1949 = vmatprep.subr.bf16.mxu0 0
  %1950 = vmatpush2.bf16.xpose.msra.mxu0 0
  %1951 = vmatprep.subr.bf16.mxu0 0
  %1952 = vmatpush2.bf16.xpose.msra.mxu0 0
  %1953 = vmatprep.mubr.bf16.mxu0 0
  %1954 = vmatmul.mubr.bf16.gmra.mxu0 %v1910
  %v1955 = vpop.f32.mrf.mxu0
  %v1956 = vadd.f32 0.0, %v1955
  %v1957 = vpop.f32.mrf.mxu0
  %v1958 = vpop.f32.mrf.mxu0
  %v1959 = vadd.f32 0.0, %v1958
  %v1960 = vpop.f32.mrf.mxu0
  %1961 = vmatprep.mubr.bf16.mxu0 0
  %1962 = vmatmul.mubr.bf16.gmra.mxu0 %v1913
  %v1963 = vpop.f32.mrf.mxu0
  %v1964 = vadd.f32 0.0, %v1963
  %v1965 = vpop.f32.mrf.mxu0
  %v1966 = vpop.f32.mrf.mxu0
  %v1967 = vpop.f32.mrf.mxu0
  %1968 = vdwg.mxu0
  %v1969 = vsel %vm386, %v1956, -inf
  %1970 = vmax.xlane.f32.xlu0 %v1969
  %v1971 = vpop.xlane.xlu0 %1970
  %v1972 = vsel %vm386, %v1959, -inf
  %1973 = vmax.xlane.f32.xlu0 %v1972
  %v1974 = vpop.xlane.xlu0 %1973
  %v1975 = vsel %vm393, %v1964, -inf
  %1976 = vmax.xlane.f32.xlu0 %v1975
  %v1977 = vpop.xlane.xlu0 %1976
  %v1978 = vsub.f32 %v1956, %v1971
  %v1979 = vsub.f32 %v1959, %v1974
  %v1980 = vsub.f32 %v1964, %v1977
  %v1981 = vmul.f32 %v1978, 1.442695
  %v1982 = vpow.pop %v1981
  %v1983 = vmul.f32 %v1979, 1.442695
  %v1984 = vpow.pop %v1983
  %v1985 = vmul.f32 %v1980, 1.442695
  %v1986 = vpow.pop %v1985
  %v1987 = vsel %vm386, %v1982, 0.0
  %1988 = vadd.xlane.f32.xlu0 %v1987
  %v1989 = vpop.xlane.xlu0 %1988
  %v1990 = vsel %vm386, %v1984, 0.0
  %1991 = vadd.xlane.f32.xlu0 %v1990
  %v1992 = vpop.xlane.xlu0 %1991
  %v1993 = vsel %vm393, %v1986, 0.0
  %1994 = vadd.xlane.f32.xlu0 %v1993
  %v1995 = vpop.xlane.xlu0 %1994
  %v1996 = vrcp.pop %v1989
  %v1997 = vrcp.pop %v1992
  %v1998 = vrcp.pop %v1995
  %v1999 = vmul.f32 %v1982, %v1996
  %v2000 = vmul.f32 %v1984, %v1997
  %v2001 = vmul.f32 %v1986, %v1998
  %v2002 = vpack.c.bf16 %v2000, %v1999
  %v2003 = vpack.c.bf16 %v2001, %v2001
  %2004 = vrot.lane.b32.xlu0 %v1902, 64
  %v2005 = vpop.permute.xlu0 %2004
  %2006 = vrot.lane.b32.xlu0 %v1903, 64
  %v2007 = vpop.permute.xlu0 %2006
  %v2010 = vsel %vm386, %v2002, 0
  %v2013 = vsel %vm386, %v2003, 0
  %v2016 = vand.u32 %v2007, %v435
  %2018 = vmatprep.subr.bf16.mxu0 0
  %2019 = vmatpush1.bf16.msra.mxu0 0
  %2020 = vmatprep.subr.bf16.mxu0 0
  %2021 = vmatpush1.bf16.msra.mxu0 0
  %2022 = vmatprep.subr.bf16.mxu0 0
  %2023 = vmatpush1.bf16.msra.mxu0 0
  %2024 = vmatprep.subr.bf16.mxu0 0
  %2025 = vmatpush1.bf16.msra.mxu0 0
  %2026 = vmatprep.subr.bf16.mxu0 0
  %2027 = vmatpush1.bf16.msra.mxu0 0
  %2028 = vmatprep.subr.bf16.mxu0 0
  %2029 = vmatpush1.bf16.msra.mxu0 0
  %2030 = vmatprep.subr.bf16.mxu0 0
  %2031 = vmatpush1.bf16.msra.mxu0 %v2016
  %2032 = vmatprep.subr.bf16.mxu0 0
  %2033 = vmatpush1.bf16.msra.mxu0 %v2005
  %2034 = vmatprep.subr.bf16.mxu0 0
  %2035 = vmatpush2.bf16.msra.mxu0 0
  %2036 = vmatprep.subr.bf16.mxu0 0
  %2037 = vmatpush2.bf16.msra.mxu0 0
  %2038 = vmatprep.subr.bf16.mxu0 0
  %2039 = vmatpush2.bf16.msra.mxu0 0
  %2040 = vmatprep.subr.bf16.mxu0 0
  %2041 = vmatpush2.bf16.msra.mxu0 0
  %2042 = vmatprep.subr.bf16.mxu0 0
  %2043 = vmatpush2.bf16.msra.mxu0 0
  %2044 = vmatprep.subr.bf16.mxu0 0
  %2045 = vmatpush2.bf16.msra.mxu0 0
  %2046 = vmatprep.subr.bf16.mxu0 0
  %2047 = vmatpush2.bf16.msra.mxu0 0
  %2048 = vmatprep.subr.bf16.mxu0 0
  %2049 = vmatpush2.bf16.msra.mxu0 0
  %2050 = vmatprep.mubr.bf16.mxu0 0
  %2051 = vmatmul.mubr.bf16.gmra.mxu0 %v2010
  %v2052 = vpop.f32.mrf.mxu0
  %v2053 = vadd.f32 0.0, %v2052
  %v2054 = vpop.f32.mrf.mxu0
  %v2055 = vpop.f32.mrf.mxu0
  %v2056 = vadd.f32 0.0, %v2055
  %v2057 = vpop.f32.mrf.mxu0
  %2058 = vmatprep.mubr.bf16.mxu0 0
  %2059 = vmatmul.mubr.bf16.gmra.mxu0 %v2013
  %v2060 = vpop.f32.mrf.mxu0
  %v2061 = vadd.f32 0.0, %v2060
  %v2062 = vpop.f32.mrf.mxu0
  %v2063 = vpop.f32.mrf.mxu0
  %v2064 = vpop.f32.mrf.mxu0
  %2065 = vdwg.mxu0
  %2066 = vrot.lane.b32.xlu0 %v1902, 112
  %v2067 = vpop.permute.xlu0 %2066
  %2068 = vrot.lane.b32.xlu0 %v1903, 112
  %v2069 = vpop.permute.xlu0 %2068
  %2070 = vrot.lane.b32.xlu0 %v1902, 80
  %v2071 = vpop.permute.xlu0 %2070
  %2072 = vrot.lane.b32.xlu0 %v1903, 80
  %v2073 = vpop.permute.xlu0 %2072
  %v2075 = vsel %vm325, %v2067, 0
  %v2078 = vsel %vm325, %v2069, 0
  %v2081 = vsel %vm325, %v2071, 0
  %v2084 = vsel %vm325, %v2073, 0
  %2086 = vmatprep.subr.bf16.mxu0 0
  %2087 = vmatpush1.bf16.xpose.msra.mxu0 0
  %2088 = vmatprep.subr.bf16.mxu0 0
  %2089 = vmatpush1.bf16.xpose.msra.mxu0 0
  %2090 = vmatprep.subr.bf16.mxu0 0
  %2091 = vmatpush1.bf16.xpose.msra.mxu0 0
  %2092 = vmatprep.subr.bf16.mxu0 0
  %2093 = vmatpush1.bf16.xpose.msra.mxu0 0
  %2094 = vmatprep.subr.bf16.mxu0 0
  %2095 = vmatpush1.bf16.xpose.msra.mxu0 0
  %2096 = vmatprep.subr.bf16.mxu0 0
  %2097 = vmatpush1.bf16.xpose.msra.mxu0 0
  %2098 = vmatprep.subr.bf16.mxu0 0
  %2099 = vmatpush1.bf16.xpose.msra.mxu0 %v2084
  %2100 = vmatprep.subr.bf16.mxu0 0
  %2101 = vmatpush1.bf16.xpose.msra.mxu0 %v2081
  %2102 = vmatprep.subr.bf16.mxu0 0
  %2103 = vmatpush2.bf16.xpose.msra.mxu0 0
  %2104 = vmatprep.subr.bf16.mxu0 0
  %2105 = vmatpush2.bf16.xpose.msra.mxu0 0
  %2106 = vmatprep.subr.bf16.mxu0 0
  %2107 = vmatpush2.bf16.xpose.msra.mxu0 0
  %2108 = vmatprep.subr.bf16.mxu0 0
  %2109 = vmatpush2.bf16.xpose.msra.mxu0 0
  %2110 = vmatprep.subr.bf16.mxu0 0
  %2111 = vmatpush2.bf16.xpose.msra.mxu0 0
  %2112 = vmatprep.subr.bf16.mxu0 0
  %2113 = vmatpush2.bf16.xpose.msra.mxu0 0
  %2114 = vmatprep.subr.bf16.mxu0 0
  %2115 = vmatpush2.bf16.xpose.msra.mxu0 0
  %2116 = vmatprep.subr.bf16.mxu0 0
  %2117 = vmatpush2.bf16.xpose.msra.mxu0 0
  %2118 = vmatprep.mubr.bf16.mxu0 0
  %2119 = vmatmul.mubr.bf16.gmra.mxu0 %v2075
  %v2120 = vpop.f32.mrf.mxu0
  %v2121 = vadd.f32 0.0, %v2120
  %v2122 = vpop.f32.mrf.mxu0
  %v2123 = vpop.f32.mrf.mxu0
  %v2124 = vadd.f32 0.0, %v2123
  %v2125 = vpop.f32.mrf.mxu0
  %2126 = vmatprep.mubr.bf16.mxu0 0
  %2127 = vmatmul.mubr.bf16.gmra.mxu0 %v2078
  %v2128 = vpop.f32.mrf.mxu0
  %v2129 = vadd.f32 0.0, %v2128
  %v2130 = vpop.f32.mrf.mxu0
  %v2131 = vpop.f32.mrf.mxu0
  %v2132 = vpop.f32.mrf.mxu0
  %2133 = vdwg.mxu0
  %v2134 = vsel %vm386, %v2121, -inf
  %2135 = vmax.xlane.f32.xlu0 %v2134
  %v2136 = vpop.xlane.xlu0 %2135
  %v2137 = vsel %vm386, %v2124, -inf
  %2138 = vmax.xlane.f32.xlu0 %v2137
  %v2139 = vpop.xlane.xlu0 %2138
  %v2140 = vsel %vm393, %v2129, -inf
  %2141 = vmax.xlane.f32.xlu0 %v2140
  %v2142 = vpop.xlane.xlu0 %2141
  %v2143 = vsub.f32 %v2121, %v2136
  %v2144 = vsub.f32 %v2124, %v2139
  %v2145 = vsub.f32 %v2129, %v2142
  %v2146 = vmul.f32 %v2143, 1.442695
  %v2147 = vpow.pop %v2146
  %v2148 = vmul.f32 %v2144, 1.442695
  %v2149 = vpow.pop %v2148
  %v2150 = vmul.f32 %v2145, 1.442695
  %v2151 = vpow.pop %v2150
  %v2152 = vsel %vm386, %v2147, 0.0
  %2153 = vadd.xlane.f32.xlu0 %v2152
  %v2154 = vpop.xlane.xlu0 %2153
  %v2155 = vsel %vm386, %v2149, 0.0
  %2156 = vadd.xlane.f32.xlu0 %v2155
  %v2157 = vpop.xlane.xlu0 %2156
  %v2158 = vsel %vm393, %v2151, 0.0
  %2159 = vadd.xlane.f32.xlu0 %v2158
  %v2160 = vpop.xlane.xlu0 %2159
  %v2161 = vrcp.pop %v2154
  %v2162 = vrcp.pop %v2157
  %v2163 = vrcp.pop %v2160
  %v2164 = vmul.f32 %v2147, %v2161
  %v2165 = vmul.f32 %v2149, %v2162
  %v2166 = vmul.f32 %v2151, %v2163
  %v2167 = vpack.c.bf16 %v2165, %v2164
  %v2168 = vpack.c.bf16 %v2166, %v2166
  %2169 = vrot.lane.b32.xlu0 %v1902, 48
  %v2170 = vpop.permute.xlu0 %2169
  %2171 = vrot.lane.b32.xlu0 %v1903, 48
  %v2172 = vpop.permute.xlu0 %2171
  %v2175 = vsel %vm386, %v2167, 0
  %v2178 = vsel %vm386, %v2168, 0
  %v2181 = vand.u32 %v2172, %v435
  %2183 = vmatprep.subr.bf16.mxu0 0
  %2184 = vmatpush1.bf16.msra.mxu0 0
  %2185 = vmatprep.subr.bf16.mxu0 0
  %2186 = vmatpush1.bf16.msra.mxu0 0
  %2187 = vmatprep.subr.bf16.mxu0 0
  %2188 = vmatpush1.bf16.msra.mxu0 0
  %2189 = vmatprep.subr.bf16.mxu0 0
  %2190 = vmatpush1.bf16.msra.mxu0 0
  %2191 = vmatprep.subr.bf16.mxu0 0
  %2192 = vmatpush1.bf16.msra.mxu0 0
  %2193 = vmatprep.subr.bf16.mxu0 0
  %2194 = vmatpush1.bf16.msra.mxu0 0
  %2195 = vmatprep.subr.bf16.mxu0 0
  %2196 = vmatpush1.bf16.msra.mxu0 %v2181
  %2197 = vmatprep.subr.bf16.mxu0 0
  %2198 = vmatpush1.bf16.msra.mxu0 %v2170
  %2199 = vmatprep.subr.bf16.mxu0 0
  %2200 = vmatpush2.bf16.msra.mxu0 0
  %2201 = vmatprep.subr.bf16.mxu0 0
  %2202 = vmatpush2.bf16.msra.mxu0 0
  %2203 = vmatprep.subr.bf16.mxu0 0
  %2204 = vmatpush2.bf16.msra.mxu0 0
  %2205 = vmatprep.subr.bf16.mxu0 0
  %2206 = vmatpush2.bf16.msra.mxu0 0
  %2207 = vmatprep.subr.bf16.mxu0 0
  %2208 = vmatpush2.bf16.msra.mxu0 0
  %2209 = vmatprep.subr.bf16.mxu0 0
  %2210 = vmatpush2.bf16.msra.mxu0 0
  %2211 = vmatprep.subr.bf16.mxu0 0
  %2212 = vmatpush2.bf16.msra.mxu0 0
  %2213 = vmatprep.subr.bf16.mxu0 0
  %2214 = vmatpush2.bf16.msra.mxu0 0
  %2215 = vmatprep.mubr.bf16.mxu0 0
  %2216 = vmatmul.mubr.bf16.gmra.mxu0 %v2175
  %v2217 = vpop.f32.mrf.mxu0
  %v2218 = vadd.f32 0.0, %v2217
  %v2219 = vpop.f32.mrf.mxu0
  %v2220 = vpop.f32.mrf.mxu0
  %v2221 = vadd.f32 0.0, %v2220
  %v2222 = vpop.f32.mrf.mxu0
  %2223 = vmatprep.mubr.bf16.mxu0 0
  %2224 = vmatmul.mubr.bf16.gmra.mxu0 %v2178
  %v2225 = vpop.f32.mrf.mxu0
  %v2226 = vadd.f32 0.0, %v2225
  %v2227 = vpop.f32.mrf.mxu0
  %v2228 = vpop.f32.mrf.mxu0
  %v2229 = vpop.f32.mrf.mxu0
  %2230 = vdwg.mxu0
  %2234 = vrot.lane.b32.xlu0 %v2218, 16
  %v2235 = vpop.permute.xlu0 %2234
  %2236 = vrot.lane.b32.xlu0 %v2221, 16
  %v2237 = vpop.permute.xlu0 %2236
  %2238 = vrot.lane.b32.xlu0 %v2226, 16
  %v2239 = vpop.permute.xlu0 %2238
  %v2243 = vsel %vm325, %v2053, %v2235
  %v2244 = vsel %vm325, %v2056, %v2237
  %v2245 = vsel %vm325, %v2061, %v2239
  %v2249 = vrot.slane %v2243, 7
  %v2250 = vrot.slane %v2244, 7
  %v2251 = vsel %vm159, %v2249, %v2250
  %v2252 = vrot.slane %v2245, 7
  %v2253 = vsel %vm159, %v2250, %v2252
  %v2257 = vsel %vm159, %v1888, %v2249
  %v2258 = vld [vmem:[%s1 + $0x188] sm:$0xff]
  %v2259 = vld [vmem:[%s1 + $0x190] sm:$0xff]
  %v2260 = vld [vmem:[%s1 + $0x198] sm:$0xff]
  %v2261 = vld [vmem:[%s1 + $0x1a0] sm:$0xff]
  %v2262 = vpack.c.bf16 %v1887, %v1886
  %v2263 = vpack.c.bf16 %v2251, %v2257
  %v2264 = vpack.c.bf16 %v2253, %v2253
  %v2265 = vpack.c.bf16 %v2259, %v2258
  %v2266 = vpack.c.bf16 %v2261, %v2260
  %v2268 = vsel %vm179, %v2262, 0
  %v2271 = vsel %vm179, %v2263, 0
  %v2274 = vsel %vm179, %v2264, 0
  %2276 = vmatprep.subr.bf16.mxu0 0
  %2277 = vmatpush1.bf16.msra.mxu0 0
  %2278 = vmatprep.subr.bf16.mxu0 0
  %2279 = vmatpush1.bf16.msra.mxu0 0
  %2280 = vmatprep.subr.bf16.mxu0 0
  %2281 = vmatpush1.bf16.msra.mxu0 0
  %2282 = vmatprep.subr.bf16.mxu0 0
  %2283 = vmatpush1.bf16.msra.mxu0 0
  %2284 = vmatprep.subr.bf16.mxu0 0
  %2285 = vmatpush1.bf16.msra.mxu0 0
  %2286 = vmatprep.subr.bf16.mxu0 0
  %2287 = vmatpush1.bf16.msra.mxu0 0
  %2288 = vmatprep.subr.bf16.mxu0 0
  %2289 = vmatpush1.bf16.msra.mxu0 %v2266
  %2290 = vmatprep.subr.bf16.mxu0 0
  %2291 = vmatpush1.bf16.msra.mxu0 %v2265
  %2292 = vmatprep.subr.bf16.mxu0 0
  %2293 = vmatpush2.bf16.msra.mxu0 0
  %2294 = vmatprep.subr.bf16.mxu0 0
  %2295 = vmatpush2.bf16.msra.mxu0 0
  %2296 = vmatprep.subr.bf16.mxu0 0
  %2297 = vmatpush2.bf16.msra.mxu0 0
  %2298 = vmatprep.subr.bf16.mxu0 0
  %2299 = vmatpush2.bf16.msra.mxu0 0
  %2300 = vmatprep.subr.bf16.mxu0 0
  %2301 = vmatpush2.bf16.msra.mxu0 0
  %2302 = vmatprep.subr.bf16.mxu0 0
  %2303 = vmatpush2.bf16.msra.mxu0 0
  %2304 = vmatprep.subr.bf16.mxu0 0
  %2305 = vmatpush2.bf16.msra.mxu0 0
  %2306 = vmatprep.subr.bf16.mxu0 0
  %2307 = vmatpush2.bf16.msra.mxu0 0
  %2308 = vmatprep.mubr.bf16.mxu0 0
  %2309 = vmatmul.mubr.bf16.gmra.mxu0 %v2268
  %v2310 = vpop.f32.mrf.mxu0
  %v2311 = vadd.f32 0.0, %v2310
  %v2312 = vpop.f32.mrf.mxu0
  %v2313 = vpop.f32.mrf.mxu0
  %v2314 = vadd.f32 0.0, %v2313
  %v2315 = vpop.f32.mrf.mxu0
  %2316 = vmatprep.mubr.bf16.mxu0 0
  %2317 = vmatmul.mubr.bf16.gmra.mxu0 %v2271
  %v2318 = vpop.f32.mrf.mxu0
  %v2319 = vadd.f32 0.0, %v2318
  %v2320 = vpop.f32.mrf.mxu0
  %v2321 = vpop.f32.mrf.mxu0
  %v2322 = vadd.f32 0.0, %v2321
  %v2323 = vpop.f32.mrf.mxu0
  %2324 = vmatprep.mubr.bf16.mxu0 0
  %2325 = vmatmul.mubr.bf16.gmra.mxu0 %v2274
  %v2326 = vpop.f32.mrf.mxu0
  %v2327 = vadd.f32 0.0, %v2326
  %v2328 = vpop.f32.mrf.mxu0
  %v2329 = vpop.f32.mrf.mxu0
  %v2330 = vpop.f32.mrf.mxu0
  %2331 = vdwg.mxu0
  %v2332 = vadd.f32 %v1394, %v2311
  %v2333 = vadd.f32 %v1395, %v2314
  %v2334 = vadd.f32 %v1396, %v2319
  %v2335 = vadd.f32 %v1397, %v2322
  %v2336 = vadd.f32 %v1398, %v2327
  %v2337 = vld [vmem:[%s1 + $0x1a8] sm:$0x1]
  %v2338 = vlaneseq
  %v2339 = vshrl.u32 %v2338, 7
  %v2340 = vsub.s32 0, %v2339
  %v2341 = vrot.slane %v2337, %v2340
  %v2342 = vadd.f32 %v2332, %v2341
  %v2343 = vadd.f32 %v2333, %v2341
  %v2344 = vadd.f32 %v2334, %v2341
  %v2345 = vadd.f32 %v2335, %v2341
  %v2346 = vadd.f32 %v2336, %v2341
  %v2347 = vsel %vm179, %v2342, 0.0
  %2348 = vadd.xlane.f32.xlu0 %v2347
  %v2349 = vpop.xlane.xlu0 %2348
  %v2350 = vsel %vm179, %v2343, 0.0
  %2351 = vadd.xlane.f32.xlu0 %v2350
  %v2352 = vpop.xlane.xlu0 %2351
  %v2353 = vsel %vm179, %v2344, 0.0
  %2354 = vadd.xlane.f32.xlu0 %v2353
  %v2355 = vpop.xlane.xlu0 %2354
  %v2356 = vsel %vm179, %v2345, 0.0
  %2357 = vadd.xlane.f32.xlu0 %v2356
  %v2358 = vpop.xlane.xlu0 %2357
  %v2359 = vsel %vm192, %v2346, 0.0
  %2360 = vadd.xlane.f32.xlu0 %v2359
  %v2361 = vpop.xlane.xlu0 %2360
  %v2362 = vmul.f32 %v2349, %v196
  %v2363 = vmul.f32 %v2352, %v196
  %v2364 = vmul.f32 %v2355, %v196
  %v2365 = vmul.f32 %v2358, %v196
  %v2366 = vmul.f32 %v2361, %v196
  %v2367 = vsub.f32 %v2342, %v2362
  %v2368 = vsub.f32 %v2343, %v2363
  %v2369 = vsub.f32 %v2344, %v2364
  %v2370 = vsub.f32 %v2345, %v2365
  %v2371 = vsub.f32 %v2346, %v2366
  %v2372 = vmul.f32 %v2367, %v2367
  %v2373 = vmul.f32 %v2368, %v2368
  %v2374 = vmul.f32 %v2369, %v2369
  %v2375 = vmul.f32 %v2370, %v2370
  %v2376 = vmul.f32 %v2371, %v2371
  %v2377 = vsel %vm179, %v2372, 0.0
  %2378 = vadd.xlane.f32.xlu0 %v2377
  %v2379 = vpop.xlane.xlu0 %2378
  %v2380 = vsel %vm179, %v2373, 0.0
  %2381 = vadd.xlane.f32.xlu0 %v2380
  %v2382 = vpop.xlane.xlu0 %2381
  %v2383 = vsel %vm179, %v2374, 0.0
  %2384 = vadd.xlane.f32.xlu0 %v2383
  %v2385 = vpop.xlane.xlu0 %2384
  %v2386 = vsel %vm179, %v2375, 0.0
  %2387 = vadd.xlane.f32.xlu0 %v2386
  %v2388 = vpop.xlane.xlu0 %2387
  %v2389 = vsel %vm192, %v2376, 0.0
  %2390 = vadd.xlane.f32.xlu0 %v2389
  %v2391 = vpop.xlane.xlu0 %2390
  %v2392 = vmul.f32 %v2379, %v196
  %v2393 = vmul.f32 %v2382, %v196
  %v2394 = vmul.f32 %v2385, %v196
  %v2395 = vmul.f32 %v2388, %v196
  %v2396 = vmul.f32 %v2391, %v196
  %v2397 = vadd.f32 %v2392, 1e-06
  %v2398 = vadd.f32 %v2393, 1e-06
  %v2399 = vadd.f32 %v2394, 1e-06
  %v2400 = vadd.f32 %v2395, 1e-06
  %v2401 = vadd.f32 %v2396, 1e-06
  %v2402 = vrsqrt.pop %v2397
  %v2403 = vrsqrt.pop %v2398
  %v2404 = vrsqrt.pop %v2399
  %v2405 = vrsqrt.pop %v2400
  %v2406 = vrsqrt.pop %v2401
  %v2407 = vmul.f32 %v2367, %v2402
  %v2408 = vmul.f32 %v2368, %v2403
  %v2409 = vmul.f32 %v2369, %v2404
  %v2410 = vmul.f32 %v2370, %v2405
  %v2411 = vmul.f32 %v2371, %v2406
  %v2412 = vpack.c.bf16 %v2408, %v2407
  %v2413 = vpack.c.bf16 %v2410, %v2409
  %v2414 = vpack.c.bf16 %v2411, %v2411
  %v2415 = vpack.c.bf16 %v1400, %v1399
  %v2416 = vpack.c.bf16 %v1402, %v1401
  %v2418 = vsel %vm179, %v2412, 0
  %v2421 = vsel %vm179, %v2413, 0
  %v2424 = vsel %vm179, %v2414, 0
  %2426 = vmatprep.subr.bf16.mxu0 0
  %2427 = vmatpush1.bf16.msra.mxu0 0
  %2428 = vmatprep.subr.bf16.mxu0 0
  %2429 = vmatpush1.bf16.msra.mxu0 0
  %2430 = vmatprep.subr.bf16.mxu0 0
  %2431 = vmatpush1.bf16.msra.mxu0 0
  %2432 = vmatprep.subr.bf16.mxu0 0
  %2433 = vmatpush1.bf16.msra.mxu0 0
  %2434 = vmatprep.subr.bf16.mxu0 0
  %2435 = vmatpush1.bf16.msra.mxu0 0
  %2436 = vmatprep.subr.bf16.mxu0 0
  %2437 = vmatpush1.bf16.msra.mxu0 0
  %2438 = vmatprep.subr.bf16.mxu0 0
  %2439 = vmatpush1.bf16.msra.mxu0 %v2416
  %2440 = vmatprep.subr.bf16.mxu0 0
  %2441 = vmatpush1.bf16.msra.mxu0 %v2415
  %2442 = vmatprep.subr.bf16.mxu0 0
  %2443 = vmatpush2.bf16.msra.mxu0 0
  %2444 = vmatprep.subr.bf16.mxu0 0
  %2445 = vmatpush2.bf16.msra.mxu0 0
  %2446 = vmatprep.subr.bf16.mxu0 0
  %2447 = vmatpush2.bf16.msra.mxu0 0
  %2448 = vmatprep.subr.bf16.mxu0 0
  %2449 = vmatpush2.bf16.msra.mxu0 0
  %2450 = vmatprep.subr.bf16.mxu0 0
  %2451 = vmatpush2.bf16.msra.mxu0 0
  %2452 = vmatprep.subr.bf16.mxu0 0
  %2453 = vmatpush2.bf16.msra.mxu0 0
  %2454 = vmatprep.subr.bf16.mxu0 0
  %2455 = vmatpush2.bf16.msra.mxu0 0
  %2456 = vmatprep.subr.bf16.mxu0 0
  %2457 = vmatpush2.bf16.msra.mxu0 0
  %2458 = vmatprep.mubr.bf16.mxu0 0
  %2459 = vmatmul.mubr.bf16.gmra.mxu0 %v2418
  %v2460 = vpop.f32.mrf.mxu0
  %v2461 = vadd.f32 %v1407, %v2460
  %v2462 = vpop.f32.mrf.mxu0
  %v2463 = vpop.f32.mrf.mxu0
  %v2464 = vadd.f32 %v1407, %v2463
  %v2465 = vpop.f32.mrf.mxu0
  %2466 = vmatprep.mubr.bf16.mxu0 0
  %2467 = vmatmul.mubr.bf16.gmra.mxu0 %v2421
  %v2468 = vpop.f32.mrf.mxu0
  %v2469 = vadd.f32 %v1407, %v2468
  %v2470 = vpop.f32.mrf.mxu0
  %v2471 = vpop.f32.mrf.mxu0
  %v2472 = vadd.f32 %v1407, %v2471
  %v2473 = vpop.f32.mrf.mxu0
  %2474 = vmatprep.mubr.bf16.mxu0 0
  %2475 = vmatmul.mubr.bf16.gmra.mxu0 %v2424
  %v2476 = vpop.f32.mrf.mxu0
  %v2477 = vadd.f32 %v1407, %v2476
  %v2478 = vpop.f32.mrf.mxu0
  %v2479 = vpop.f32.mrf.mxu0
  %v2480 = vpop.f32.mrf.mxu0
  %2481 = vdwg.mxu0
  %v2482 = vmul.f32 %v2461, %v2461
  %v2483 = vmul.f32 %v2464, %v2464
  %v2484 = vmul.f32 %v2469, %v2469
  %v2485 = vmul.f32 %v2472, %v2472
  %v2486 = vmul.f32 %v2477, %v2477
  %v2487 = vmul.f32 %v2461, %v2482
  %v2488 = vmul.f32 %v2464, %v2483
  %v2489 = vmul.f32 %v2469, %v2484
  %v2490 = vmul.f32 %v2472, %v2485
  %v2491 = vmul.f32 %v2477, %v2486
  %v2492 = vmul.f32 %v2487, 0.044715
  %v2493 = vmul.f32 %v2488, 0.044715
  %v2494 = vmul.f32 %v2489, 0.044715
  %v2495 = vmul.f32 %v2490, 0.044715
  %v2496 = vmul.f32 %v2491, 0.044715
  %v2497 = vadd.f32 %v2461, %v2492
  %v2498 = vadd.f32 %v2464, %v2493
  %v2499 = vadd.f32 %v2469, %v2494
  %v2500 = vadd.f32 %v2472, %v2495
  %v2501 = vadd.f32 %v2477, %v2496
  %v2502 = vmul.f32 %v2497, 0.7978846
  %v2503 = vmul.f32 %v2498, 0.7978846
  %v2504 = vmul.f32 %v2499, 0.7978846
  %v2505 = vmul.f32 %v2500, 0.7978846
  %v2506 = vmul.f32 %v2501, 0.7978846
  %v2507 = vtanh.pop %v2502
  %v2508 = vtanh.pop %v2503
  %v2509 = vtanh.pop %v2504
  %v2510 = vtanh.pop %v2505
  %v2511 = vtanh.pop %v2506
  %v2512 = vadd.f32 %v2507, 1.0
  %v2513 = vadd.f32 %v2508, 1.0
  %v2514 = vadd.f32 %v2509, 1.0
  %v2515 = vadd.f32 %v2510, 1.0
  %v2516 = vadd.f32 %v2511, 1.0
  %v2517 = vmul.f32 %v2512, 0.5
  %v2518 = vmul.f32 %v2513, 0.5
  %v2519 = vmul.f32 %v2514, 0.5
  %v2520 = vmul.f32 %v2515, 0.5
  %v2521 = vmul.f32 %v2516, 0.5
  %v2522 = vmul.f32 %v2461, %v2517
  %v2523 = vmul.f32 %v2464, %v2518
  %v2524 = vmul.f32 %v2469, %v2519
  %v2525 = vmul.f32 %v2472, %v2520
  %v2526 = vmul.f32 %v2477, %v2521
  %v2527 = vld [vmem:[%s1 + $0x1b0] sm:$0xff]
  %v2528 = vld [vmem:[%s1 + $0x1b8] sm:$0xff]
  %v2529 = vld [vmem:[%s1 + $0x1c0] sm:$0xff]
  %v2530 = vld [vmem:[%s1 + $0x1c8] sm:$0xff]
  %v2531 = vld [vmem:[%s1 + $0x1d0] sm:$0xff]
  %v2532 = vld [vmem:[%s1 + $0x1d8] sm:$0xff]
  %v2533 = vld [vmem:[%s1 + $0x1e0] sm:$0xff]
  %v2534 = vld [vmem:[%s1 + $0x1e8] sm:$0xff]
  %v2535 = vld [vmem:[%s1 + $0x1f0] sm:$0xff]
  %v2536 = vld [vmem:[%s1 + $0x1f8] sm:$0xff]
  %v2537 = vld [vmem:[%s1 + $0x200] sm:$0xff]
  %v2538 = vld [vmem:[%s1 + $0x208] sm:$0xff]
  %v2539 = vld [vmem:[%s1 + $0x210] sm:$0xff]
  %v2540 = vld [vmem:[%s1 + $0x218] sm:$0xff]
  %v2541 = vld [vmem:[%s1 + $0x220] sm:$0xff]
  %v2542 = vld [vmem:[%s1 + $0x228] sm:$0xff]
  %v2543 = vpack.c.bf16 %v2523, %v2522
  %v2544 = vpack.c.bf16 %v2525, %v2524
  %v2545 = vpack.c.bf16 %v2526, %v2526
  %v2546 = vpack.c.bf16 %v2528, %v2527
  %v2547 = vpack.c.bf16 %v2530, %v2529
  %v2548 = vpack.c.bf16 %v2532, %v2531
  %v2549 = vpack.c.bf16 %v2534, %v2533
  %v2550 = vpack.c.bf16 %v2536, %v2535
  %v2551 = vpack.c.bf16 %v2538, %v2537
  %v2552 = vpack.c.bf16 %v2540, %v2539
  %v2553 = vpack.c.bf16 %v2542, %v2541
  %v2554 = vld [vmem:[%s1 + $0x230] sm:$0x1]
  %v2555 = vlaneseq
  %v2556 = vshrl.u32 %v2555, 7
  %v2557 = vsub.s32 0, %v2556
  %v2558 = vrot.slane %v2554, %v2557
  %2559 = vmatprep.subr.bf16.mxu0 0
  %2560 = vmatpush1.bf16.msra.mxu0 %v2553
  %2561 = vmatprep.subr.bf16.mxu0 0
  %2562 = vmatpush1.bf16.msra.mxu0 %v2552
  %2563 = vmatprep.subr.bf16.mxu0 0
  %2564 = vmatpush1.bf16.msra.mxu0 %v2551
  %2565 = vmatprep.subr.bf16.mxu0 0
  %2566 = vmatpush1.bf16.msra.mxu0 %v2550
  %2567 = vmatprep.subr.bf16.mxu0 0
  %2568 = vmatpush1.bf16.msra.mxu0 %v2549
  %2569 = vmatprep.subr.bf16.mxu0 0
  %2570 = vmatpush1.bf16.msra.mxu0 %v2548
  %2571 = vmatprep.subr.bf16.mxu0 0
  %2572 = vmatpush1.bf16.msra.mxu0 %v2547
  %2573 = vmatprep.subr.bf16.mxu0 0
  %2574 = vmatpush1.bf16.msra.mxu0 %v2546
  %2575 = vmatprep.subr.bf16.mxu0 0
  %2576 = vmatpush2.bf16.msra.mxu0 0
  %2577 = vmatprep.subr.bf16.mxu0 0
  %2578 = vmatpush2.bf16.msra.mxu0 0
  %2579 = vmatprep.subr.bf16.mxu0 0
  %2580 = vmatpush2.bf16.msra.mxu0 0
  %2581 = vmatprep.subr.bf16.mxu0 0
  %2582 = vmatpush2.bf16.msra.mxu0 0
  %2583 = vmatprep.subr.bf16.mxu0 0
  %2584 = vmatpush2.bf16.msra.mxu0 0
  %2585 = vmatprep.subr.bf16.mxu0 0
  %2586 = vmatpush2.bf16.msra.mxu0 0
  %2587 = vmatprep.subr.bf16.mxu0 0
  %2588 = vmatpush2.bf16.msra.mxu0 0
  %2589 = vmatprep.subr.bf16.mxu0 0
  %2590 = vmatpush2.bf16.msra.mxu0 0
  %2591 = vmatprep.mubr.bf16.mxu0 0
  %2592 = vmatmul.mubr.bf16.gmra.mxu0 %v2543
  %v2593 = vpop.f32.mrf.mxu0
  %v2594 = vadd.f32 %v2558, %v2593
  %v2595 = vpop.f32.mrf.mxu0
  %v2596 = vpop.f32.mrf.mxu0
  %v2597 = vadd.f32 %v2558, %v2596
  %v2598 = vpop.f32.mrf.mxu0
  %2599 = vmatprep.mubr.bf16.mxu0 0
  %2600 = vmatmul.mubr.bf16.gmra.mxu0 %v2544
  %v2601 = vpop.f32.mrf.mxu0
  %v2602 = vadd.f32 %v2558, %v2601
  %v2603 = vpop.f32.mrf.mxu0
  %v2604 = vpop.f32.mrf.mxu0
  %v2605 = vadd.f32 %v2558, %v2604
  %v2606 = vpop.f32.mrf.mxu0
  %2607 = vmatprep.mubr.bf16.mxu0 0
  %2608 = vmatmul.mubr.bf16.gmra.mxu0 %v2545
  %v2609 = vpop.f32.mrf.mxu0
  %v2610 = vadd.f32 %v2558, %v2609
  %v2611 = vpop.f32.mrf.mxu0
  %v2612 = vpop.f32.mrf.mxu0
  %v2613 = vpop.f32.mrf.mxu0
  %2614 = vdwg.mxu0
  %v2615 = vadd.f32 %v2342, %v2594
  %v2616 = vadd.f32 %v2343, %v2597
  %v2617 = vadd.f32 %v2344, %v2602
  %v2618 = vadd.f32 %v2345, %v2605
  %v2619 = vadd.f32 %v2346, %v2610
  %v2620 = vsel %vm179, %v2615, 0.0
  %2621 = vadd.xlane.f32.xlu0 %v2620
  %v2622 = vpop.xlane.xlu0 %2621
  %v2623 = vsel %vm179, %v2616, 0.0
  %2624 = vadd.xlane.f32.xlu0 %v2623
  %v2625 = vpop.xlane.xlu0 %2624
  %v2626 = vsel %vm179, %v2617, 0.0
  %2627 = vadd.xlane.f32.xlu0 %v2626
  %v2628 = vpop.xlane.xlu0 %2627
  %v2629 = vsel %vm179, %v2618, 0.0
  %2630 = vadd.xlane.f32.xlu0 %v2629
  %v2631 = vpop.xlane.xlu0 %2630
  %v2632 = vsel %vm192, %v2619, 0.0
  %2633 = vadd.xlane.f32.xlu0 %v2632
  %v2634 = vpop.xlane.xlu0 %2633
  %v2635 = vmul.f32 %v2622, %v196
  %v2636 = vmul.f32 %v2625, %v196
  %v2637 = vmul.f32 %v2628, %v196
  %v2638 = vmul.f32 %v2631, %v196
  %v2639 = vmul.f32 %v2634, %v196
  %v2640 = vsub.f32 %v2615, %v2635
  %v2641 = vsub.f32 %v2616, %v2636
  %v2642 = vsub.f32 %v2617, %v2637
  %v2643 = vsub.f32 %v2618, %v2638
  %v2644 = vsub.f32 %v2619, %v2639
  %v2645 = vmul.f32 %v2640, %v2640
  %v2646 = vmul.f32 %v2641, %v2641
  %v2647 = vmul.f32 %v2642, %v2642
  %v2648 = vmul.f32 %v2643, %v2643
  %v2649 = vmul.f32 %v2644, %v2644
  %v2650 = vsel %vm179, %v2645, 0.0
  %2651 = vadd.xlane.f32.xlu0 %v2650
  %v2652 = vpop.xlane.xlu0 %2651
  %v2653 = vsel %vm179, %v2646, 0.0
  %2654 = vadd.xlane.f32.xlu0 %v2653
  %v2655 = vpop.xlane.xlu0 %2654
  %v2656 = vsel %vm179, %v2647, 0.0
  %2657 = vadd.xlane.f32.xlu0 %v2656
  %v2658 = vpop.xlane.xlu0 %2657
  %v2659 = vsel %vm179, %v2648, 0.0
  %2660 = vadd.xlane.f32.xlu0 %v2659
  %v2661 = vpop.xlane.xlu0 %2660
  %v2662 = vsel %vm192, %v2649, 0.0
  %2663 = vadd.xlane.f32.xlu0 %v2662
  %v2664 = vpop.xlane.xlu0 %2663
  %v2665 = vmul.f32 %v2652, %v196
  %v2666 = vmul.f32 %v2655, %v196
  %v2667 = vmul.f32 %v2658, %v196
  %v2668 = vmul.f32 %v2661, %v196
  %v2669 = vmul.f32 %v2664, %v196
  %v2670 = vadd.f32 %v2665, 1e-06
  %v2671 = vadd.f32 %v2666, 1e-06
  %v2672 = vadd.f32 %v2667, 1e-06
  %v2673 = vadd.f32 %v2668, 1e-06
  %v2674 = vadd.f32 %v2669, 1e-06
  %v2675 = vrsqrt.pop %v2670
  %v2676 = vrsqrt.pop %v2671
  %v2677 = vrsqrt.pop %v2672
  %v2678 = vrsqrt.pop %v2673
  %v2679 = vrsqrt.pop %v2674
  %v2680 = vmul.f32 %v2640, %v2675
  %v2681 = vmul.f32 %v2641, %v2676
  %v2682 = vmul.f32 %v2642, %v2677
  %v2683 = vmul.f32 %v2643, %v2678
  %v2684 = vmul.f32 %v2644, %v2679
  %v2685 = vld [vmem:[%s1 + $0x58] sm:$0xff]
  %v2686 = vld [vmem:[%s1 + $0x60] sm:$0xff]
  %v2687 = vld [vmem:[%s1 + $0x68] sm:$0xff]
  %v2688 = vld [vmem:[%s1 + $0x70] sm:$0xff]
  %v2689 = vpack.c.bf16 %v2681, %v2680
  %v2690 = vpack.c.bf16 %v2683, %v2682
  %v2691 = vpack.c.bf16 %v2684, %v2684
  %v2692 = vpack.c.bf16 %v2686, %v2685
  %v2693 = vpack.c.bf16 %v2688, %v2687
  %v2694 = vld [vmem:[%s1 + $0x78] sm:$0x1]
  %v2695 = vlaneseq
  %v2696 = vshrl.u32 %v2695, 7
  %v2697 = vsub.s32 0, %v2696
  %v2698 = vrot.slane %v2694, %v2697
  %v2700 = vsel %vm179, %v2689, 0
  %v2703 = vsel %vm179, %v2690, 0
  %v2706 = vsel %vm179, %v2691, 0
  %2708 = vmatprep.subr.bf16.mxu0 0
  %2709 = vmatpush1.bf16.msra.mxu0 0
  %2710 = vmatprep.subr.bf16.mxu0 0
  %2711 = vmatpush1.bf16.msra.mxu0 0
  %2712 = vmatprep.subr.bf16.mxu0 0
  %2713 = vmatpush1.bf16.msra.mxu0 0
  %2714 = vmatprep.subr.bf16.mxu0 0
  %2715 = vmatpush1.bf16.msra.mxu0 0
  %2716 = vmatprep.subr.bf16.mxu0 0
  %2717 = vmatpush1.bf16.msra.mxu0 0
  %2718 = vmatprep.subr.bf16.mxu0 0
  %2719 = vmatpush1.bf16.msra.mxu0 0
  %2720 = vmatprep.subr.bf16.mxu0 0
  %2721 = vmatpush1.bf16.msra.mxu0 %v2693
  %2722 = vmatprep.subr.bf16.mxu0 0
  %2723 = vmatpush1.bf16.msra.mxu0 %v2692
  %2724 = vmatprep.subr.bf16.mxu0 0
  %2725 = vmatpush2.bf16.msra.mxu0 0
  %2726 = vmatprep.subr.bf16.mxu0 0
  %2727 = vmatpush2.bf16.msra.mxu0 0
  %2728 = vmatprep.subr.bf16.mxu0 0
  %2729 = vmatpush2.bf16.msra.mxu0 0
  %2730 = vmatprep.subr.bf16.mxu0 0
  %2731 = vmatpush2.bf16.msra.mxu0 0
  %2732 = vmatprep.subr.bf16.mxu0 0
  %2733 = vmatpush2.bf16.msra.mxu0 0
  %2734 = vmatprep.subr.bf16.mxu0 0
  %2735 = vmatpush2.bf16.msra.mxu0 0
  %2736 = vmatprep.subr.bf16.mxu0 0
  %2737 = vmatpush2.bf16.msra.mxu0 0
  %2738 = vmatprep.subr.bf16.mxu0 0
  %2739 = vmatpush2.bf16.msra.mxu0 0
  %2740 = vmatprep.mubr.bf16.mxu0 0
  %2741 = vmatmul.mubr.bf16.gmra.mxu0 %v2700
  %v2742 = vpop.f32.mrf.mxu0
  %v2743 = vadd.f32 %v2698, %v2742
  %v2744 = vpop.f32.mrf.mxu0
  %v2745 = vpop.f32.mrf.mxu0
  %v2746 = vadd.f32 %v2698, %v2745
  %v2747 = vpop.f32.mrf.mxu0
  %2748 = vmatprep.mubr.bf16.mxu0 0
  %2749 = vmatmul.mubr.bf16.gmra.mxu0 %v2703
  %v2750 = vpop.f32.mrf.mxu0
  %v2751 = vadd.f32 %v2698, %v2750
  %v2752 = vpop.f32.mrf.mxu0
  %v2753 = vpop.f32.mrf.mxu0
  %v2754 = vadd.f32 %v2698, %v2753
  %v2755 = vpop.f32.mrf.mxu0
  %2756 = vmatprep.mubr.bf16.mxu0 0
  %2757 = vmatmul.mubr.bf16.gmra.mxu0 %v2706
  %v2758 = vpop.f32.mrf.mxu0
  %v2759 = vadd.f32 %v2698, %v2758
  %v2760 = vpop.f32.mrf.mxu0
  %v2761 = vpop.f32.mrf.mxu0
  %v2762 = vpop.f32.mrf.mxu0
  %2763 = vdwg.mxu0
  %v2764 = vld [vmem:[%s1 + $0x80] sm:$0xf]
  %vm2768 = vcmask 1042432
  %v2769 = vrot.slane %v2751, 5
  %v2770 = vrot.slane %v2754, 5
  %v2771 = vsel %vm2768, %v2769, %v2770
  %v2772 = vrot.slane %v2759, 5
  %v2773 = vsel %vm2768, %v2770, %v2772
  %v2778 = vrot.slane %v2764, 4
  %vm2780 = vcmask 1043456
  %v2781 = vsel %vm2780, %v2764, %v2769
  %v2782 = vsel %vm2780, %v2773, %v2778
  %v2783 = vld [vmem:[%s2 + $0xa0] sm:$0xff]
  %v2784 = vld [vmem:[%s2 + $0xb0] sm:$0xff]
  %v2785 = vld [vmem:[%s2 + $0xc0] sm:$0xff]
  %v2786 = vld [vmem:[%s2 + $0xd0] sm:$0xff]
  %v2787 = vld [vmem:[%s2 + $0xa8] sm:$0xff]
  %v2788 = vld [vmem:[%s2 + $0xb8] sm:$0xff]
  %v2789 = vld [vmem:[%s2 + $0xc8] sm:$0xff]
  %v2790 = vld [vmem:[%s2 + $0xd8] sm:$0xff]
  %v2791 = vld [vmem:[%s2 + $0xe0] ss:$0 sm:$0xff]
  %v2792 = vld [vmem:[%s2 + $0xe8] ss:$0 sm:$0xff]
  %v2793 = vsel %vm179, %v2743, 0.0
  %2794 = vadd.xlane.f32.xlu0 %v2793
  %v2795 = vpop.xlane.xlu0 %2794
  %v2796 = vsel %vm179, %v2746, 0.0
  %2797 = vadd.xlane.f32.xlu0 %v2796
  %v2798 = vpop.xlane.xlu0 %2797
  %v2799 = vsel %vm179, %v2781, 0.0
  %2800 = vadd.xlane.f32.xlu0 %v2799
  %v2801 = vpop.xlane.xlu0 %2800
  %v2802 = vsel %vm179, %v2771, 0.0
  %2803 = vadd.xlane.f32.xlu0 %v2802
  %v2804 = vpop.xlane.xlu0 %2803
  %v2805 = vsel %vm179, %v2782, 0.0
  %2806 = vadd.xlane.f32.xlu0 %v2805
  %v2807 = vpop.xlane.xlu0 %2806
  %v2808 = vmul.f32 %v2795, %v196
  %v2809 = vmul.f32 %v2798, %v196
  %v2810 = vmul.f32 %v2801, %v196
  %v2811 = vmul.f32 %v2804, %v196
  %v2812 = vmul.f32 %v2807, %v196
  %v2813 = vsub.f32 %v2743, %v2808
  %v2814 = vsub.f32 %v2746, %v2809
  %v2815 = vsub.f32 %v2781, %v2810
  %v2816 = vsub.f32 %v2771, %v2811
  %v2817 = vsub.f32 %v2782, %v2812
  %v2818 = vmul.f32 %v2813, %v2813
  %v2819 = vmul.f32 %v2814, %v2814
  %v2820 = vmul.f32 %v2815, %v2815
  %v2821 = vmul.f32 %v2816, %v2816
  %v2822 = vmul.f32 %v2817, %v2817
  %v2823 = vsel %vm179, %v2818, 0.0
  %2824 = vadd.xlane.f32.xlu0 %v2823
  %v2825 = vpop.xlane.xlu0 %2824
  %v2826 = vsel %vm179, %v2819, 0.0
  %2827 = vadd.xlane.f32.xlu0 %v2826
  %v2828 = vpop.xlane.xlu0 %2827
  %v2829 = vsel %vm179, %v2820, 0.0
  %2830 = vadd.xlane.f32.xlu0 %v2829
  %v2831 = vpop.xlane.xlu0 %2830
  %v2832 = vsel %vm179, %v2821, 0.0
  %2833 = vadd.xlane.f32.xlu0 %v2832
  %v2834 = vpop.xlane.xlu0 %2833
  %v2835 = vsel %vm179, %v2822, 0.0
  %2836 = vadd.xlane.f32.xlu0 %v2835
  %v2837 = vpop.xlane.xlu0 %2836
  %v2838 = vmul.f32 %v2825, %v196
  %v2839 = vmul.f32 %v2828, %v196
  %v2840 = vmul.f32 %v2831, %v196
  %v2841 = vmul.f32 %v2834, %v196
  %v2842 = vmul.f32 %v2837, %v196
  %v2843 = vadd.f32 %v2838, 1e-06
  %v2844 = vadd.f32 %v2839, 1e-06
  %v2845 = vadd.f32 %v2840, 1e-06
  %v2846 = vadd.f32 %v2841, 1e-06
  %v2847 = vadd.f32 %v2842, 1e-06
  %v2848 = vrsqrt.pop %v2843
  %v2849 = vrsqrt.pop %v2844
  %v2850 = vrsqrt.pop %v2845
  %v2851 = vrsqrt.pop %v2846
  %v2852 = vrsqrt.pop %v2847
  %v2853 = vmul.f32 %v2813, %v2848
  %v2854 = vmul.f32 %v2814, %v2849
  %v2855 = vmul.f32 %v2815, %v2850
  %v2856 = vmul.f32 %v2816, %v2851
  %v2857 = vmul.f32 %v2817, %v2852
  %v2858 = vpack.c.bf16 %v2854, %v2853
  %v2859 = vpack.c.bf16 %v2856, %v2855
  %v2860 = vpack.c.bf16 %v2857, %v2857
  %v2861 = vpack.c.bf16 %v2788, %v2787
  %v2862 = vpack.c.bf16 %v2790, %v2789
  %v2864 = vsel %vm179, %v2858, 0
  %v2867 = vsel %vm179, %v2859, 0
  %v2870 = vsel %vm179, %v2860, 0
  %2872 = vmatprep.subr.bf16.mxu0 0
  %2873 = vmatpush1.bf16.msra.mxu0 0
  %2874 = vmatprep.subr.bf16.mxu0 0
  %2875 = vmatpush1.bf16.msra.mxu0 0
  %2876 = vmatprep.subr.bf16.mxu0 0
  %2877 = vmatpush1.bf16.msra.mxu0 0
  %2878 = vmatprep.subr.bf16.mxu0 0
  %2879 = vmatpush1.bf16.msra.mxu0 0
  %2880 = vmatprep.subr.bf16.mxu0 0
  %2881 = vmatpush1.bf16.msra.mxu0 0
  %2882 = vmatprep.subr.bf16.mxu0 0
  %2883 = vmatpush1.bf16.msra.mxu0 0
  %2884 = vmatprep.subr.bf16.mxu0 0
  %2885 = vmatpush1.bf16.msra.mxu0 %v2862
  %2886 = vmatprep.subr.bf16.mxu0 0
  %2887 = vmatpush1.bf16.msra.mxu0 %v2861
  %2888 = vmatprep.subr.bf16.mxu0 0
  %2889 = vmatpush2.bf16.msra.mxu0 0
  %2890 = vmatprep.subr.bf16.mxu0 0
  %2891 = vmatpush2.bf16.msra.mxu0 0
  %2892 = vmatprep.subr.bf16.mxu0 0
  %2893 = vmatpush2.bf16.msra.mxu0 0
  %2894 = vmatprep.subr.bf16.mxu0 0
  %2895 = vmatpush2.bf16.msra.mxu0 0
  %2896 = vmatprep.subr.bf16.mxu0 0
  %2897 = vmatpush2.bf16.msra.mxu0 0
  %2898 = vmatprep.subr.bf16.mxu0 0
  %2899 = vmatpush2.bf16.msra.mxu0 0
  %2900 = vmatprep.subr.bf16.mxu0 0
  %2901 = vmatpush2.bf16.msra.mxu0 0
  %2902 = vmatprep.subr.bf16.mxu0 0
  %2903 = vmatpush2.bf16.msra.mxu0 0
  %2904 = vmatprep.mubr.bf16.mxu0 0
  %2905 = vmatmul.mubr.bf16.gmra.mxu0 %v2864
  %v2906 = vpop.f32.mrf.mxu0
  %v2907 = vadd.f32 %v2792, %v2906
  %v2908 = vpop.f32.mrf.mxu0
  %v2909 = vpop.f32.mrf.mxu0
  %v2910 = vadd.f32 %v2792, %v2909
  %v2911 = vpop.f32.mrf.mxu0
  %2912 = vmatprep.mubr.bf16.mxu0 0
  %2913 = vmatmul.mubr.bf16.gmra.mxu0 %v2867
  %v2914 = vpop.f32.mrf.mxu0
  %v2915 = vadd.f32 %v2792, %v2914
  %v2916 = vpop.f32.mrf.mxu0
  %v2917 = vpop.f32.mrf.mxu0
  %v2918 = vadd.f32 %v2792, %v2917
  %v2919 = vpop.f32.mrf.mxu0
  %2920 = vmatprep.mubr.bf16.mxu0 0
  %2921 = vmatmul.mubr.bf16.gmra.mxu0 %v2870
  %v2922 = vpop.f32.mrf.mxu0
  %v2923 = vadd.f32 %v2792, %v2922
  %v2924 = vpop.f32.mrf.mxu0
  %v2925 = vpop.f32.mrf.mxu0
  %v2926 = vpop.f32.mrf.mxu0
  %2927 = vdwg.mxu0
  %v2928 = vpack.c.bf16 %v2910, %v2907
  %v2929 = vpack.c.bf16 %v2915, %v2915
  %2932 = vrot.lane.b32.xlu0 %v2928, 96
  %v2933 = vpop.permute.xlu0 %2932
  %2934 = vrot.lane.b32.xlu0 %v2929, 96
  %v2935 = vpop.permute.xlu0 %2934
  %v2937 = vsel %vm325, %v2928, 0
  %v2940 = vsel %vm325, %v2929, 0
  %v2943 = vsel %vm325, %v2933, 0
  %v2946 = vsel %vm325, %v2935, 0
  %2948 = vmatprep.subr.bf16.mxu0 0
  %2949 = vmatpush1.bf16.xpose.msra.mxu0 0
  %2950 = vmatprep.subr.bf16.mxu0 0
  %2951 = vmatpush1.bf16.xpose.msra.mxu0 0
  %2952 = vmatprep.subr.bf16.mxu0 0
  %2953 = vmatpush1.bf16.xpose.msra.mxu0 0
  %2954 = vmatprep.subr.bf16.mxu0 0
  %2955 = vmatpush1.bf16.xpose.msra.mxu0 0
  %2956 = vmatprep.subr.bf16.mxu0 0
  %2957 = vmatpush1.bf16.xpose.msra.mxu0 0
  %2958 = vmatprep.subr.bf16.mxu0 0
  %2959 = vmatpush1.bf16.xpose.msra.mxu0 0
  %2960 = vmatprep.subr.bf16.mxu0 0
  %2961 = vmatpush1.bf16.xpose.msra.mxu0 %v2946
  %2962 = vmatprep.subr.bf16.mxu0 0
  %2963 = vmatpush1.bf16.xpose.msra.mxu0 %v2943
  %2964 = vmatprep.subr.bf16.mxu0 0
  %2965 = vmatpush2.bf16.xpose.msra.mxu0 0
  %2966 = vmatprep.subr.bf16.mxu0 0
  %2967 = vmatpush2.bf16.xpose.msra.mxu0 0
  %2968 = vmatprep.subr.bf16.mxu0 0
  %2969 = vmatpush2.bf16.xpose.msra.mxu0 0
  %2970 = vmatprep.subr.bf16.mxu0 0
  %2971 = vmatpush2.bf16.xpose.msra.mxu0 0
  %2972 = vmatprep.subr.bf16.mxu0 0
  %2973 = vmatpush2.bf16.xpose.msra.mxu0 0
  %2974 = vmatprep.subr.bf16.mxu0 0
  %2975 = vmatpush2.bf16.xpose.msra.mxu0 0
  %2976 = vmatprep.subr.bf16.mxu0 0
  %2977 = vmatpush2.bf16.xpose.msra.mxu0 0
  %2978 = vmatprep.subr.bf16.mxu0 0
  %2979 = vmatpush2.bf16.xpose.msra.mxu0 0
  %2980 = vmatprep.mubr.bf16.mxu0 0
  %2981 = vmatmul.mubr.bf16.gmra.mxu0 %v2937
  %v2982 = vpop.f32.mrf.mxu0
  %v2983 = vadd.f32 0.0, %v2982
  %v2984 = vpop.f32.mrf.mxu0
  %v2985 = vpop.f32.mrf.mxu0
  %v2986 = vadd.f32 0.0, %v2985
  %v2987 = vpop.f32.mrf.mxu0
  %2988 = vmatprep.mubr.bf16.mxu0 0
  %2989 = vmatmul.mubr.bf16.gmra.mxu0 %v2940
  %v2990 = vpop.f32.mrf.mxu0
  %v2991 = vadd.f32 0.0, %v2990
  %v2992 = vpop.f32.mrf.mxu0
  %v2993 = vpop.f32.mrf.mxu0
  %v2994 = vpop.f32.mrf.mxu0
  %2995 = vdwg.mxu0
  %vm2996 = vcmask 162816
  %v2997 = vsel %vm2996, %v2983, -inf
  %2998 = vmax.xlane.f32.xlu0 %v2997
  %v2999 = vpop.xlane.xlu0 %2998
  %v3000 = vsel %vm2996, %v2986, -inf
  %3001 = vmax.xlane.f32.xlu0 %v3000
  %v3002 = vpop.xlane.xlu0 %3001
  %vm3003 = vcmask 158720
  %v3004 = vsel %vm3003, %v2991, -inf
  %3005 = vmax.xlane.f32.xlu0 %v3004
  %v3006 = vpop.xlane.xlu0 %3005
  %v3007 = vsub.f32 %v2983, %v2999
  %v3008 = vsub.f32 %v2986, %v3002
  %v3009 = vsub.f32 %v2991, %v3006
  %v3010 = vmul.f32 %v3007, 1.442695
  %v3011 = vpow.pop %v3010
  %v3012 = vmul.f32 %v3008, 1.442695
  %v3013 = vpow.pop %v3012
  %v3014 = vmul.f32 %v3009, 1.442695
  %v3015 = vpow.pop %v3014
  %v3016 = vsel %vm2996, %v3011, 0.0
  %3017 = vadd.xlane.f32.xlu0 %v3016
  %v3018 = vpop.xlane.xlu0 %3017
  %v3019 = vsel %vm2996, %v3013, 0.0
  %3020 = vadd.xlane.f32.xlu0 %v3019
  %v3021 = vpop.xlane.xlu0 %3020
  %v3022 = vsel %vm3003, %v3015, 0.0
  %3023 = vadd.xlane.f32.xlu0 %v3022
  %v3024 = vpop.xlane.xlu0 %3023
  %v3025 = vrcp.pop %v3018
  %v3026 = vrcp.pop %v3021
  %v3027 = vrcp.pop %v3024
  %v3028 = vmul.f32 %v3011, %v3025
  %v3029 = vmul.f32 %v3013, %v3026
  %v3030 = vmul.f32 %v3015, %v3027
  %v3031 = vpack.c.bf16 %v3029, %v3028
  %v3032 = vpack.c.bf16 %v3030, %v3030
  %3033 = vrot.lane.b32.xlu0 %v2928, 64
  %v3034 = vpop.permute.xlu0 %3033
  %3035 = vrot.lane.b32.xlu0 %v2929, 64
  %v3036 = vpop.permute.xlu0 %3035
  %v3039 = vsel %vm2996, %v3031, 0
  %v3042 = vsel %vm2996, %v3032, 0
  %vm3044 = vcmask 1041408
  %v3046 = vsel %vm3044, %v3036, 0
  %3048 = vmatprep.subr.bf16.mxu0 0
  %3049 = vmatpush1.bf16.msra.mxu0 0
  %3050 = vmatprep.subr.bf16.mxu0 0
  %3051 = vmatpush1.bf16.msra.mxu0 0
  %3052 = vmatprep.subr.bf16.mxu0 0
  %3053 = vmatpush1.bf16.msra.mxu0 0
  %3054 = vmatprep.subr.bf16.mxu0 0
  %3055 = vmatpush1.bf16.msra.mxu0 0
  %3056 = vmatprep.subr.bf16.mxu0 0
  %3057 = vmatpush1.bf16.msra.mxu0 0
  %3058 = vmatprep.subr.bf16.mxu0 0
  %3059 = vmatpush1.bf16.msra.mxu0 0
  %3060 = vmatprep.subr.bf16.mxu0 0
  %3061 = vmatpush1.bf16.msra.mxu0 %v3046
  %3062 = vmatprep.subr.bf16.mxu0 0
  %3063 = vmatpush1.bf16.msra.mxu0 %v3034
  %3064 = vmatprep.subr.bf16.mxu0 0
  %3065 = vmatpush2.bf16.msra.mxu0 0
  %3066 = vmatprep.subr.bf16.mxu0 0
  %3067 = vmatpush2.bf16.msra.mxu0 0
  %3068 = vmatprep.subr.bf16.mxu0 0
  %3069 = vmatpush2.bf16.msra.mxu0 0
  %3070 = vmatprep.subr.bf16.mxu0 0
  %3071 = vmatpush2.bf16.msra.mxu0 0
  %3072 = vmatprep.subr.bf16.mxu0 0
  %3073 = vmatpush2.bf16.msra.mxu0 0
  %3074 = vmatprep.subr.bf16.mxu0 0
  %3075 = vmatpush2.bf16.msra.mxu0 0
  %3076 = vmatprep.subr.bf16.mxu0 0
  %3077 = vmatpush2.bf16.msra.mxu0 0
  %3078 = vmatprep.subr.bf16.mxu0 0
  %3079 = vmatpush2.bf16.msra.mxu0 0
  %3080 = vmatprep.mubr.bf16.mxu0 0
  %3081 = vmatmul.mubr.bf16.gmra.mxu0 %v3039
  %v3082 = vpop.f32.mrf.mxu0
  %v3083 = vadd.f32 0.0, %v3082
  %v3084 = vpop.f32.mrf.mxu0
  %v3085 = vpop.f32.mrf.mxu0
  %v3086 = vadd.f32 0.0, %v3085
  %v3087 = vpop.f32.mrf.mxu0
  %3088 = vmatprep.mubr.bf16.mxu0 0
  %3089 = vmatmul.mubr.bf16.gmra.mxu0 %v3042
  %v3090 = vpop.f32.mrf.mxu0
  %v3091 = vadd.f32 0.0, %v3090
  %v3092 = vpop.f32.mrf.mxu0
  %v3093 = vpop.f32.mrf.mxu0
  %v3094 = vpop.f32.mrf.mxu0
  %3095 = vdwg.mxu0
  %3096 = vrot.lane.b32.xlu0 %v2928, 112
  %v3097 = vpop.permute.xlu0 %3096
  %3098 = vrot.lane.b32.xlu0 %v2929, 112
  %v3099 = vpop.permute.xlu0 %3098
  %3100 = vrot.lane.b32.xlu0 %v2928, 80
  %v3101 = vpop.permute.xlu0 %3100
  %3102 = vrot.lane.b32.xlu0 %v2929, 80
  %v3103 = vpop.permute.xlu0 %3102
  %v3105 = vsel %vm325, %v3097, 0
  %v3108 = vsel %vm325, %v3099, 0
  %v3111 = vsel %vm325, %v3101, 0
  %v3114 = vsel %vm325, %v3103, 0
  %3116 = vmatprep.subr.bf16.mxu0 0
  %3117 = vmatpush1.bf16.xpose.msra.mxu0 0
  %3118 = vmatprep.subr.bf16.mxu0 0
  %3119 = vmatpush1.bf16.xpose.msra.mxu0 0
  %3120 = vmatprep.subr.bf16.mxu0 0
  %3121 = vmatpush1.bf16.xpose.msra.mxu0 0
  %3122 = vmatprep.subr.bf16.mxu0 0
  %3123 = vmatpush1.bf16.xpose.msra.mxu0 0
  %3124 = vmatprep.subr.bf16.mxu0 0
  %3125 = vmatpush1.bf16.xpose.msra.mxu0 0
  %3126 = vmatprep.subr.bf16.mxu0 0
  %3127 = vmatpush1.bf16.xpose.msra.mxu0 0
  %3128 = vmatprep.subr.bf16.mxu0 0
  %3129 = vmatpush1.bf16.xpose.msra.mxu0 %v3114
  %3130 = vmatprep.subr.bf16.mxu0 0
  %3131 = vmatpush1.bf16.xpose.msra.mxu0 %v3111
  %3132 = vmatprep.subr.bf16.mxu0 0
  %3133 = vmatpush2.bf16.xpose.msra.mxu0 0
  %3134 = vmatprep.subr.bf16.mxu0 0
  %3135 = vmatpush2.bf16.xpose.msra.mxu0 0
  %3136 = vmatprep.subr.bf16.mxu0 0
  %3137 = vmatpush2.bf16.xpose.msra.mxu0 0
  %3138 = vmatprep.subr.bf16.mxu0 0
  %3139 = vmatpush2.bf16.xpose.msra.mxu0 0
  %3140 = vmatprep.subr.bf16.mxu0 0
  %3141 = vmatpush2.bf16.xpose.msra.mxu0 0
  %3142 = vmatprep.subr.bf16.mxu0 0
  %3143 = vmatpush2.bf16.xpose.msra.mxu0 0
  %3144 = vmatprep.subr.bf16.mxu0 0
  %3145 = vmatpush2.bf16.xpose.msra.mxu0 0
  %3146 = vmatprep.subr.bf16.mxu0 0
  %3147 = vmatpush2.bf16.xpose.msra.mxu0 0
  %3148 = vmatprep.mubr.bf16.mxu0 0
  %3149 = vmatmul.mubr.bf16.gmra.mxu0 %v3105
  %v3150 = vpop.f32.mrf.mxu0
  %v3151 = vadd.f32 0.0, %v3150
  %v3152 = vpop.f32.mrf.mxu0
  %v3153 = vpop.f32.mrf.mxu0
  %v3154 = vadd.f32 0.0, %v3153
  %v3155 = vpop.f32.mrf.mxu0
  %3156 = vmatprep.mubr.bf16.mxu0 0
  %3157 = vmatmul.mubr.bf16.gmra.mxu0 %v3108
  %v3158 = vpop.f32.mrf.mxu0
  %v3159 = vadd.f32 0.0, %v3158
  %v3160 = vpop.f32.mrf.mxu0
  %v3161 = vpop.f32.mrf.mxu0
  %v3162 = vpop.f32.mrf.mxu0
  %3163 = vdwg.mxu0
  %v3164 = vsel %vm2996, %v3151, -inf
  %3165 = vmax.xlane.f32.xlu0 %v3164
  %v3166 = vpop.xlane.xlu0 %3165
  %v3167 = vsel %vm2996, %v3154, -inf
  %3168 = vmax.xlane.f32.xlu0 %v3167
  %v3169 = vpop.xlane.xlu0 %3168
  %v3170 = vsel %vm3003, %v3159, -inf
  %3171 = vmax.xlane.f32.xlu0 %v3170
  %v3172 = vpop.xlane.xlu0 %3171
  %v3173 = vsub.f32 %v3151, %v3166
  %v3174 = vsub.f32 %v3154, %v3169
  %v3175 = vsub.f32 %v3159, %v3172
  %v3176 = vmul.f32 %v3173, 1.442695
  %v3177 = vpow.pop %v3176
  %v3178 = vmul.f32 %v3174, 1.442695
  %v3179 = vpow.pop %v3178
  %v3180 = vmul.f32 %v3175, 1.442695
  %v3181 = vpow.pop %v3180
  %v3182 = vsel %vm2996, %v3177, 0.0
  %3183 = vadd.xlane.f32.xlu0 %v3182
  %v3184 = vpop.xlane.xlu0 %3183
  %v3185 = vsel %vm2996, %v3179, 0.0
  %3186 = vadd.xlane.f32.xlu0 %v3185
  %v3187 = vpop.xlane.xlu0 %3186
  %v3188 = vsel %vm3003, %v3181, 0.0
  %3189 = vadd.xlane.f32.xlu0 %v3188
  %v3190 = vpop.xlane.xlu0 %3189
  %v3191 = vrcp.pop %v3184
  %v3192 = vrcp.pop %v3187
  %v3193 = vrcp.pop %v3190
  %v3194 = vmul.f32 %v3177, %v3191
  %v3195 = vmul.f32 %v3179, %v3192
  %v3196 = vmul.f32 %v3181, %v3193
  %v3197 = vpack.c.bf16 %v3195, %v3194
  %v3198 = vpack.c.bf16 %v3196, %v3196
  %3199 = vrot.lane.b32.xlu0 %v2928, 48
  %v3200 = vpop.permute.xlu0 %3199
  %3201 = vrot.lane.b32.xlu0 %v2929, 48
  %v3202 = vpop.permute.xlu0 %3201
  %v3205 = vsel %vm2996, %v3197, 0
  %v3208 = vsel %vm2996, %v3198, 0
  %v3211 = vsel %vm3044, %v3202, 0
  %3213 = vmatprep.subr.bf16.mxu0 0
  %3214 = vmatpush1.bf16.msra.mxu0 0
  %3215 = vmatprep.subr.bf16.mxu0 0
  %3216 = vmatpush1.bf16.msra.mxu0 0
  %3217 = vmatprep.subr.bf16.mxu0 0
  %3218 = vmatpush1.bf16.msra.mxu0 0
  %3219 = vmatprep.subr.bf16.mxu0 0
  %3220 = vmatpush1.bf16.msra.mxu0 0
  %3221 = vmatprep.subr.bf16.mxu0 0
  %3222 = vmatpush1.bf16.msra.mxu0 0
  %3223 = vmatprep.subr.bf16.mxu0 0
  %3224 = vmatpush1.bf16.msra.mxu0 0
  %3225 = vmatprep.subr.bf16.mxu0 0
  %3226 = vmatpush1.bf16.msra.mxu0 %v3211
  %3227 = vmatprep.subr.bf16.mxu0 0
  %3228 = vmatpush1.bf16.msra.mxu0 %v3200
  %3229 = vmatprep.subr.bf16.mxu0 0
  %3230 = vmatpush2.bf16.msra.mxu0 0
  %3231 = vmatprep.subr.bf16.mxu0 0
  %3232 = vmatpush2.bf16.msra.mxu0 0
  %3233 = vmatprep.subr.bf16.mxu0 0
  %3234 = vmatpush2.bf16.msra.mxu0 0
  %3235 = vmatprep.subr.bf16.mxu0 0
  %3236 = vmatpush2.bf16.msra.mxu0 0
  %3237 = vmatprep.subr.bf16.mxu0 0
  %3238 = vmatpush2.bf16.msra.mxu0 0
  %3239 = vmatprep.subr.bf16.mxu0 0
  %3240 = vmatpush2.bf16.msra.mxu0 0
  %3241 = vmatprep.subr.bf16.mxu0 0
  %3242 = vmatpush2.bf16.msra.mxu0 0
  %3243 = vmatprep.subr.bf16.mxu0 0
  %3244 = vmatpush2.bf16.msra.mxu0 0
  %3245 = vmatprep.mubr.bf16.mxu0 0
  %3246 = vmatmul.mubr.bf16.gmra.mxu0 %v3205
  %v3247 = vpop.f32.mrf.mxu0
  %v3248 = vadd.f32 0.0, %v3247
  %v3249 = vpop.f32.mrf.mxu0
  %v3250 = vpop.f32.mrf.mxu0
  %v3251 = vadd.f32 0.0, %v3250
  %v3252 = vpop.f32.mrf.mxu0
  %3253 = vmatprep.mubr.bf16.mxu0 0
  %3254 = vmatmul.mubr.bf16.gmra.mxu0 %v3208
  %v3255 = vpop.f32.mrf.mxu0
  %v3256 = vadd.f32 0.0, %v3255
  %v3257 = vpop.f32.mrf.mxu0
  %v3258 = vpop.f32.mrf.mxu0
  %v3259 = vpop.f32.mrf.mxu0
  %3260 = vdwg.mxu0
  %3264 = vrot.lane.b32.xlu0 %v3248, 16
  %v3265 = vpop.permute.xlu0 %3264
  %3266 = vrot.lane.b32.xlu0 %v3251, 16
  %v3267 = vpop.permute.xlu0 %3266
  %3268 = vrot.lane.b32.xlu0 %v3256, 16
  %v3269 = vpop.permute.xlu0 %3268
  %v3273 = vsel %vm325, %v3083, %v3265
  %v3274 = vsel %vm325, %v3086, %v3267
  %v3275 = vsel %vm325, %v3091, %v3269
  %v3276 = vpack.c.bf16 %v2918, %v2915
  %v3277 = vpack.c.bf16 %v2923, %v2923
  %vm3280 = vcmask 1045504
  %v3281 = vrot.slane %v3276, 2
  %v3282 = vrot.slane %v3277, 2
  %v3283 = vsel %vm3280, %v3281, %v3282
  %3284 = vrot.lane.b32.xlu0 %v3283, 96
  %v3285 = vpop.permute.xlu0 %3284
  %3286 = vrot.lane.b32.xlu0 %v3282, 96
  %v3287 = vpop.permute.xlu0 %3286
  %v3289 = vsel %vm325, %v3283, 0
  %v3292 = vsel %vm325, %v3282, 0
  %v3295 = vsel %vm325, %v3285, 0
  %v3298 = vsel %vm325, %v3287, 0
  %3300 = vmatprep.subr.bf16.mxu0 0
  %3301 = vmatpush1.bf16.xpose.msra.mxu0 0
  %3302 = vmatprep.subr.bf16.mxu0 0
  %3303 = vmatpush1.bf16.xpose.msra.mxu0 0
  %3304 = vmatprep.subr.bf16.mxu0 0
  %3305 = vmatpush1.bf16.xpose.msra.mxu0 0
  %3306 = vmatprep.subr.bf16.mxu0 0
  %3307 = vmatpush1.bf16.xpose.msra.mxu0 0
  %3308 = vmatprep.subr.bf16.mxu0 0
  %3309 = vmatpush1.bf16.xpose.msra.mxu0 0
  %3310 = vmatprep.subr.bf16.mxu0 0
  %3311 = vmatpush1.bf16.xpose.msra.mxu0 0
  %3312 = vmatprep.subr.bf16.mxu0 0
  %3313 = vmatpush1.bf16.xpose.msra.mxu0 %v3298
  %3314 = vmatprep.subr.bf16.mxu0 0
  %3315 = vmatpush1.bf16.xpose.msra.mxu0 %v3295
  %3316 = vmatprep.subr.bf16.mxu0 0
  %3317 = vmatpush2.bf16.xpose.msra.mxu0 0
  %3318 = vmatprep.subr.bf16.mxu0 0
  %3319 = vmatpush2.bf16.xpose.msra.mxu0 0
  %3320 = vmatprep.subr.bf16.mxu0 0
  %3321 = vmatpush2.bf16.xpose.msra.mxu0 0
  %3322 = vmatprep.subr.bf16.mxu0 0
  %3323 = vmatpush2.bf16.xpose.msra.mxu0 0
  %3324 = vmatprep.subr.bf16.mxu0 0
  %3325 = vmatpush2.bf16.xpose.msra.mxu0 0
  %3326 = vmatprep.subr.bf16.mxu0 0
  %3327 = vmatpush2.bf16.xpose.msra.mxu0 0
  %3328 = vmatprep.subr.bf16.mxu0 0
  %3329 = vmatpush2.bf16.xpose.msra.mxu0 0
  %3330 = vmatprep.subr.bf16.mxu0 0
  %3331 = vmatpush2.bf16.xpose.msra.mxu0 0
  %3332 = vmatprep.mubr.bf16.mxu0 0
  %3333 = vmatmul.mubr.bf16.gmra.mxu0 %v3289
  %v3334 = vpop.f32.mrf.mxu0
  %v3335 = vadd.f32 0.0, %v3334
  %v3336 = vpop.f32.mrf.mxu0
  %v3337 = vpop.f32.mrf.mxu0
  %v3338 = vadd.f32 0.0, %v3337
  %v3339 = vpop.f32.mrf.mxu0
  %3340 = vmatprep.mubr.bf16.mxu0 0
  %3341 = vmatmul.mubr.bf16.gmra.mxu0 %v3292
  %v3342 = vpop.f32.mrf.mxu0
  %v3343 = vadd.f32 0.0, %v3342
  %v3344 = vpop.f32.mrf.mxu0
  %v3345 = vpop.f32.mrf.mxu0
  %v3346 = vpop.f32.mrf.mxu0
  %3347 = vdwg.mxu0
  %v3348 = vsel %vm2996, %v3335, -inf
  %3349 = vmax.xlane.f32.xlu0 %v3348
  %v3350 = vpop.xlane.xlu0 %3349
  %v3351 = vsel %vm2996, %v3338, -inf
  %3352 = vmax.xlane.f32.xlu0 %v3351
  %v3353 = vpop.xlane.xlu0 %3352
  %v3354 = vsel %vm3003, %v3343, -inf
  %3355 = vmax.xlane.f32.xlu0 %v3354
  %v3356 = vpop.xlane.xlu0 %3355
  %v3357 = vsub.f32 %v3335, %v3350
  %v3358 = vsub.f32 %v3338, %v3353
  %v3359 = vsub.f32 %v3343, %v3356
  %v3360 = vmul.f32 %v3357, 1.442695
  %v3361 = vpow.pop %v3360
  %v3362 = vmul.f32 %v3358, 1.442695
  %v3363 = vpow.pop %v3362
  %v3364 = vmul.f32 %v3359, 1.442695
  %v3365 = vpow.pop %v3364
  %v3366 = vsel %vm2996, %v3361, 0.0
  %3367 = vadd.xlane.f32.xlu0 %v3366
  %v3368 = vpop.xlane.xlu0 %3367
  %v3369 = vsel %vm2996, %v3363, 0.0
  %3370 = vadd.xlane.f32.xlu0 %v3369
  %v3371 = vpop.xlane.xlu0 %3370
  %v3372 = vsel %vm3003, %v3365, 0.0
  %3373 = vadd.xlane.f32.xlu0 %v3372
  %v3374 = vpop.xlane.xlu0 %3373
  %v3375 = vrcp.pop %v3368
  %v3376 = vrcp.pop %v3371
  %v3377 = vrcp.pop %v3374
  %v3378 = vmul.f32 %v3361, %v3375
  %v3379 = vmul.f32 %v3363, %v3376
  %v3380 = vmul.f32 %v3365, %v3377
  %v3381 = vpack.c.bf16 %v3379, %v3378
  %v3382 = vpack.c.bf16 %v3380, %v3380
  %3383 = vrot.lane.b32.xlu0 %v3283, 64
  %v3384 = vpop.permute.xlu0 %3383
  %3385 = vrot.lane.b32.xlu0 %v3282, 64
  %v3386 = vpop.permute.xlu0 %3385
  %v3389 = vsel %vm2996, %v3381, 0
  %v3392 = vsel %vm2996, %v3382, 0
  %v3395 = vsel %vm3044, %v3386, 0
  %3397 = vmatprep.subr.bf16.mxu0 0
  %3398 = vmatpush1.bf16.msra.mxu0 0
  %3399 = vmatprep.subr.bf16.mxu0 0
  %3400 = vmatpush1.bf16.msra.mxu0 0
  %3401 = vmatprep.subr.bf16.mxu0 0
  %3402 = vmatpush1.bf16.msra.mxu0 0
  %3403 = vmatprep.subr.bf16.mxu0 0
  %3404 = vmatpush1.bf16.msra.mxu0 0
  %3405 = vmatprep.subr.bf16.mxu0 0
  %3406 = vmatpush1.bf16.msra.mxu0 0
  %3407 = vmatprep.subr.bf16.mxu0 0
  %3408 = vmatpush1.bf16.msra.mxu0 0
  %3409 = vmatprep.subr.bf16.mxu0 0
  %3410 = vmatpush1.bf16.msra.mxu0 %v3395
  %3411 = vmatprep.subr.bf16.mxu0 0
  %3412 = vmatpush1.bf16.msra.mxu0 %v3384
  %3413 = vmatprep.subr.bf16.mxu0 0
  %3414 = vmatpush2.bf16.msra.mxu0 0
  %3415 = vmatprep.subr.bf16.mxu0 0
  %3416 = vmatpush2.bf16.msra.mxu0 0
  %3417 = vmatprep.subr.bf16.mxu0 0
  %3418 = vmatpush2.bf16.msra.mxu0 0
  %3419 = vmatprep.subr.bf16.mxu0 0
  %3420 = vmatpush2.bf16.msra.mxu0 0
  %3421 = vmatprep.subr.bf16.mxu0 0
  %3422 = vmatpush2.bf16.msra.mxu0 0
  %3423 = vmatprep.subr.bf16.mxu0 0
  %3424 = vmatpush2.bf16.msra.mxu0 0
  %3425 = vmatprep.subr.bf16.mxu0 0
  %3426 = vmatpush2.bf16.msra.mxu0 0
  %3427 = vmatprep.subr.bf16.mxu0 0
  %3428 = vmatpush2.bf16.msra.mxu0 0
  %3429 = vmatprep.mubr.bf16.mxu0 0
  %3430 = vmatmul.mubr.bf16.gmra.mxu0 %v3389
  %v3431 = vpop.f32.mrf.mxu0
  %v3432 = vadd.f32 0.0, %v3431
  %v3433 = vpop.f32.mrf.mxu0
  %v3434 = vpop.f32.mrf.mxu0
  %v3435 = vadd.f32 0.0, %v3434
  %v3436 = vpop.f32.mrf.mxu0
  %3437 = vmatprep.mubr.bf16.mxu0 0
  %3438 = vmatmul.mubr.bf16.gmra.mxu0 %v3392
  %v3439 = vpop.f32.mrf.mxu0
  %v3440 = vadd.f32 0.0, %v3439
  %v3441 = vpop.f32.mrf.mxu0
  %v3442 = vpop.f32.mrf.mxu0
  %v3443 = vpop.f32.mrf.mxu0
  %3444 = vdwg.mxu0
  %3445 = vrot.lane.b32.xlu0 %v3283, 112
  %v3446 = vpop.permute.xlu0 %3445
  %3447 = vrot.lane.b32.xlu0 %v3282, 112
  %v3448 = vpop.permute.xlu0 %3447
  %3449 = vrot.lane.b32.xlu0 %v3283, 80
  %v3450 = vpop.permute.xlu0 %3449
  %3451 = vrot.lane.b32.xlu0 %v3282, 80
  %v3452 = vpop.permute.xlu0 %3451
  %v3454 = vsel %vm325, %v3446, 0
  %v3457 = vsel %vm325, %v3448, 0
  %v3460 = vsel %vm325, %v3450, 0
  %v3463 = vsel %vm325, %v3452, 0
  %3465 = vmatprep.subr.bf16.mxu0 0
  %3466 = vmatpush1.bf16.xpose.msra.mxu0 0
  %3467 = vmatprep.subr.bf16.mxu0 0
  %3468 = vmatpush1.bf16.xpose.msra.mxu0 0
  %3469 = vmatprep.subr.bf16.mxu0 0
  %3470 = vmatpush1.bf16.xpose.msra.mxu0 0
  %3471 = vmatprep.subr.bf16.mxu0 0
  %3472 = vmatpush1.bf16.xpose.msra.mxu0 0
  %3473 = vmatprep.subr.bf16.mxu0 0
  %3474 = vmatpush1.bf16.xpose.msra.mxu0 0
  %3475 = vmatprep.subr.bf16.mxu0 0
  %3476 = vmatpush1.bf16.xpose.msra.mxu0 0
  %3477 = vmatprep.subr.bf16.mxu0 0
  %3478 = vmatpush1.bf16.xpose.msra.mxu0 %v3463
  %3479 = vmatprep.subr.bf16.mxu0 0
  %3480 = vmatpush1.bf16.xpose.msra.mxu0 %v3460
  %3481 = vmatprep.subr.bf16.mxu0 0
  %3482 = vmatpush2.bf16.xpose.msra.mxu0 0
  %3483 = vmatprep.subr.bf16.mxu0 0
  %3484 = vmatpush2.bf16.xpose.msra.mxu0 0
  %3485 = vmatprep.subr.bf16.mxu0 0
  %3486 = vmatpush2.bf16.xpose.msra.mxu0 0
  %3487 = vmatprep.subr.bf16.mxu0 0
  %3488 = vmatpush2.bf16.xpose.msra.mxu0 0
  %3489 = vmatprep.subr.bf16.mxu0 0
  %3490 = vmatpush2.bf16.xpose.msra.mxu0 0
  %3491 = vmatprep.subr.bf16.mxu0 0
  %3492 = vmatpush2.bf16.xpose.msra.mxu0 0
  %3493 = vmatprep.subr.bf16.mxu0 0
  %3494 = vmatpush2.bf16.xpose.msra.mxu0 0
  %3495 = vmatprep.subr.bf16.mxu0 0
  %3496 = vmatpush2.bf16.xpose.msra.mxu0 0
  %3497 = vmatprep.mubr.bf16.mxu0 0
  %3498 = vmatmul.mubr.bf16.gmra.mxu0 %v3454
  %v3499 = vpop.f32.mrf.mxu0
  %v3500 = vadd.f32 0.0, %v3499
  %v3501 = vpop.f32.mrf.mxu0
  %v3502 = vpop.f32.mrf.mxu0
  %v3503 = vadd.f32 0.0, %v3502
  %v3504 = vpop.f32.mrf.mxu0
  %3505 = vmatprep.mubr.bf16.mxu0 0
  %3506 = vmatmul.mubr.bf16.gmra.mxu0 %v3457
  %v3507 = vpop.f32.mrf.mxu0
  %v3508 = vadd.f32 0.0, %v3507
  %v3509 = vpop.f32.mrf.mxu0
  %v3510 = vpop.f32.mrf.mxu0
  %v3511 = vpop.f32.mrf.mxu0
  %3512 = vdwg.mxu0
  %v3513 = vsel %vm2996, %v3500, -inf
  %3514 = vmax.xlane.f32.xlu0 %v3513
  %v3515 = vpop.xlane.xlu0 %3514
  %v3516 = vsel %vm2996, %v3503, -inf
  %3517 = vmax.xlane.f32.xlu0 %v3516
  %v3518 = vpop.xlane.xlu0 %3517
  %v3519 = vsel %vm3003, %v3508, -inf
  %3520 = vmax.xlane.f32.xlu0 %v3519
  %v3521 = vpop.xlane.xlu0 %3520
  %v3522 = vsub.f32 %v3500, %v3515
  %v3523 = vsub.f32 %v3503, %v3518
  %v3524 = vsub.f32 %v3508, %v3521
  %v3525 = vmul.f32 %v3522, 1.442695
  %v3526 = vpow.pop %v3525
  %v3527 = vmul.f32 %v3523, 1.442695
  %v3528 = vpow.pop %v3527
  %v3529 = vmul.f32 %v3524, 1.442695
  %v3530 = vpow.pop %v3529
  %v3531 = vsel %vm2996, %v3526, 0.0
  %3532 = vadd.xlane.f32.xlu0 %v3531
  %v3533 = vpop.xlane.xlu0 %3532
  %v3534 = vsel %vm2996, %v3528, 0.0
  %3535 = vadd.xlane.f32.xlu0 %v3534
  %v3536 = vpop.xlane.xlu0 %3535
  %v3537 = vsel %vm3003, %v3530, 0.0
  %3538 = vadd.xlane.f32.xlu0 %v3537
  %v3539 = vpop.xlane.xlu0 %3538
  %v3540 = vrcp.pop %v3533
  %v3541 = vrcp.pop %v3536
  %v3542 = vrcp.pop %v3539
  %v3543 = vmul.f32 %v3526, %v3540
  %v3544 = vmul.f32 %v3528, %v3541
  %v3545 = vmul.f32 %v3530, %v3542
  %v3546 = vpack.c.bf16 %v3544, %v3543
  %v3547 = vpack.c.bf16 %v3545, %v3545
  %3548 = vrot.lane.b32.xlu0 %v3283, 48
  %v3549 = vpop.permute.xlu0 %3548
  %3550 = vrot.lane.b32.xlu0 %v3282, 48
  %v3551 = vpop.permute.xlu0 %3550
  %v3554 = vsel %vm2996, %v3546, 0
  %v3557 = vsel %vm2996, %v3547, 0
  %v3560 = vsel %vm3044, %v3551, 0
  %3562 = vmatprep.subr.bf16.mxu0 0
  %3563 = vmatpush1.bf16.msra.mxu0 0
  %3564 = vmatprep.subr.bf16.mxu0 0
  %3565 = vmatpush1.bf16.msra.mxu0 0
  %3566 = vmatprep.subr.bf16.mxu0 0
  %3567 = vmatpush1.bf16.msra.mxu0 0
  %3568 = vmatprep.subr.bf16.mxu0 0
  %3569 = vmatpush1.bf16.msra.mxu0 0
  %3570 = vmatprep.subr.bf16.mxu0 0
  %3571 = vmatpush1.bf16.msra.mxu0 0
  %3572 = vmatprep.subr.bf16.mxu0 0
  %3573 = vmatpush1.bf16.msra.mxu0 0
  %3574 = vmatprep.subr.bf16.mxu0 0
  %3575 = vmatpush1.bf16.msra.mxu0 %v3560
  %3576 = vmatprep.subr.bf16.mxu0 0
  %3577 = vmatpush1.bf16.msra.mxu0 %v3549
  %3578 = vmatprep.subr.bf16.mxu0 0
  %3579 = vmatpush2.bf16.msra.mxu0 0
  %3580 = vmatprep.subr.bf16.mxu0 0
  %3581 = vmatpush2.bf16.msra.mxu0 0
  %3582 = vmatprep.subr.bf16.mxu0 0
  %3583 = vmatpush2.bf16.msra.mxu0 0
  %3584 = vmatprep.subr.bf16.mxu0 0
  %3585 = vmatpush2.bf16.msra.mxu0 0
  %3586 = vmatprep.subr.bf16.mxu0 0
  %3587 = vmatpush2.bf16.msra.mxu0 0
  %3588 = vmatprep.subr.bf16.mxu0 0
  %3589 = vmatpush2.bf16.msra.mxu0 0
  %3590 = vmatprep.subr.bf16.mxu0 0
  %3591 = vmatpush2.bf16.msra.mxu0 0
  %3592 = vmatprep.subr.bf16.mxu0 0
  %3593 = vmatpush2.bf16.msra.mxu0 0
  %3594 = vmatprep.mubr.bf16.mxu0 0
  %3595 = vmatmul.mubr.bf16.gmra.mxu0 %v3554
  %v3596 = vpop.f32.mrf.mxu0
  %v3597 = vadd.f32 0.0, %v3596
  %v3598 = vpop.f32.mrf.mxu0
  %v3599 = vpop.f32.mrf.mxu0
  %v3600 = vadd.f32 0.0, %v3599
  %v3601 = vpop.f32.mrf.mxu0
  %3602 = vmatprep.mubr.bf16.mxu0 0
  %3603 = vmatmul.mubr.bf16.gmra.mxu0 %v3557
  %v3604 = vpop.f32.mrf.mxu0
  %v3605 = vadd.f32 0.0, %v3604
  %v3606 = vpop.f32.mrf.mxu0
  %v3607 = vpop.f32.mrf.mxu0
  %v3608 = vpop.f32.mrf.mxu0
  %3609 = vdwg.mxu0
  %3613 = vrot.lane.b32.xlu0 %v3597, 16
  %v3614 = vpop.permute.xlu0 %3613
  %3615 = vrot.lane.b32.xlu0 %v3600, 16
  %v3616 = vpop.permute.xlu0 %3615
  %3617 = vrot.lane.b32.xlu0 %v3605, 16
  %v3618 = vpop.permute.xlu0 %3617
  %v3622 = vsel %vm325, %v3432, %v3614
  %v3623 = vsel %vm325, %v3435, %v3616
  %v3624 = vsel %vm325, %v3440, %v3618
  %v3628 = vrot.slane %v3622, 4
  %v3629 = vrot.slane %v3623, 4
  %v3630 = vsel %vm2780, %v3628, %v3629
  %v3631 = vrot.slane %v3624, 4
  %v3632 = vsel %vm2780, %v3629, %v3631
  %v3636 = vsel %vm2780, %v3275, %v3628
  %v3637 = vld [vmem:[%s1 + $0x238] sm:$0xff]
  %v3638 = vld [vmem:[%s1 + $0x240] sm:$0xff]
  %v3639 = vld [vmem:[%s1 + $0x248] sm:$0xff]
  %v3640 = vld [vmem:[%s1 + $0x250] sm:$0xff]
  %v3641 = vpack.c.bf16 %v3274, %v3273
  %v3642 = vpack.c.bf16 %v3630, %v3636
  %v3643 = vpack.c.bf16 %v3632, %v3632
  %v3644 = vpack.c.bf16 %v3638, %v3637
  %v3645 = vpack.c.bf16 %v3640, %v3639
  %v3647 = vsel %vm179, %v3641, 0
  %v3650 = vsel %vm179, %v3642, 0
  %v3653 = vsel %vm179, %v3643, 0
  %3655 = vmatprep.subr.bf16.mxu0 0
  %3656 = vmatpush1.bf16.msra.mxu0 0
  %3657 = vmatprep.subr.bf16.mxu0 0
  %3658 = vmatpush1.bf16.msra.mxu0 0
  %3659 = vmatprep.subr.bf16.mxu0 0
  %3660 = vmatpush1.bf16.msra.mxu0 0
  %3661 = vmatprep.subr.bf16.mxu0 0
  %3662 = vmatpush1.bf16.msra.mxu0 0
  %3663 = vmatprep.subr.bf16.mxu0 0
  %3664 = vmatpush1.bf16.msra.mxu0 0
  %3665 = vmatprep.subr.bf16.mxu0 0
  %3666 = vmatpush1.bf16.msra.mxu0 0
  %3667 = vmatprep.subr.bf16.mxu0 0
  %3668 = vmatpush1.bf16.msra.mxu0 %v3645
  %3669 = vmatprep.subr.bf16.mxu0 0
  %3670 = vmatpush1.bf16.msra.mxu0 %v3644
  %3671 = vmatprep.subr.bf16.mxu0 0
  %3672 = vmatpush2.bf16.msra.mxu0 0
  %3673 = vmatprep.subr.bf16.mxu0 0
  %3674 = vmatpush2.bf16.msra.mxu0 0
  %3675 = vmatprep.subr.bf16.mxu0 0
  %3676 = vmatpush2.bf16.msra.mxu0 0
  %3677 = vmatprep.subr.bf16.mxu0 0
  %3678 = vmatpush2.bf16.msra.mxu0 0
  %3679 = vmatprep.subr.bf16.mxu0 0
  %3680 = vmatpush2.bf16.msra.mxu0 0
  %3681 = vmatprep.subr.bf16.mxu0 0
  %3682 = vmatpush2.bf16.msra.mxu0 0
  %3683 = vmatprep.subr.bf16.mxu0 0
  %3684 = vmatpush2.bf16.msra.mxu0 0
  %3685 = vmatprep.subr.bf16.mxu0 0
  %3686 = vmatpush2.bf16.msra.mxu0 0
  %3687 = vmatprep.mubr.bf16.mxu0 0
  %3688 = vmatmul.mubr.bf16.gmra.mxu0 %v3647
  %v3689 = vpop.f32.mrf.mxu0
  %v3690 = vadd.f32 0.0, %v3689
  %v3691 = vpop.f32.mrf.mxu0
  %v3692 = vpop.f32.mrf.mxu0
  %v3693 = vadd.f32 0.0, %v3692
  %v3694 = vpop.f32.mrf.mxu0
  %3695 = vmatprep.mubr.bf16.mxu0 0
  %3696 = vmatmul.mubr.bf16.gmra.mxu0 %v3650
  %v3697 = vpop.f32.mrf.mxu0
  %v3698 = vadd.f32 0.0, %v3697
  %v3699 = vpop.f32.mrf.mxu0
  %v3700 = vpop.f32.mrf.mxu0
  %v3701 = vadd.f32 0.0, %v3700
  %v3702 = vpop.f32.mrf.mxu0
  %3703 = vmatprep.mubr.bf16.mxu0 0
  %3704 = vmatmul.mubr.bf16.gmra.mxu0 %v3653
  %v3705 = vpop.f32.mrf.mxu0
  %v3706 = vadd.f32 0.0, %v3705
  %v3707 = vpop.f32.mrf.mxu0
  %v3708 = vpop.f32.mrf.mxu0
  %v3709 = vpop.f32.mrf.mxu0
  %3710 = vdwg.mxu0
  %v3711 = vadd.f32 %v2743, %v3690
  %v3712 = vadd.f32 %v2746, %v3693
  %v3713 = vadd.f32 %v2781, %v3698
  %v3714 = vadd.f32 %v2771, %v3701
  %v3715 = vadd.f32 %v2782, %v3706
  %v3716 = vld [vmem:[%s1 + $0x258] sm:$0x1]
  %v3717 = vlaneseq
  %v3718 = vshrl.u32 %v3717, 7
  %v3719 = vsub.s32 0, %v3718
  %v3720 = vrot.slane %v3716, %v3719
  %v3721 = vadd.f32 %v3711, %v3720
  %v3722 = vadd.f32 %v3712, %v3720
  %v3723 = vadd.f32 %v3713, %v3720
  %v3724 = vadd.f32 %v3714, %v3720
  %v3725 = vadd.f32 %v3715, %v3720
  %v3726 = vsel %vm179, %v3721, 0.0
  %3727 = vadd.xlane.f32.xlu0 %v3726
  %v3728 = vpop.xlane.xlu0 %3727
  %v3729 = vsel %vm179, %v3722, 0.0
  %3730 = vadd.xlane.f32.xlu0 %v3729
  %v3731 = vpop.xlane.xlu0 %3730
  %v3732 = vsel %vm179, %v3723, 0.0
  %3733 = vadd.xlane.f32.xlu0 %v3732
  %v3734 = vpop.xlane.xlu0 %3733
  %v3735 = vsel %vm179, %v3724, 0.0
  %3736 = vadd.xlane.f32.xlu0 %v3735
  %v3737 = vpop.xlane.xlu0 %3736
  %v3738 = vsel %vm179, %v3725, 0.0
  %3739 = vadd.xlane.f32.xlu0 %v3738
  %v3740 = vpop.xlane.xlu0 %3739
  %v3741 = vmul.f32 %v3728, %v196
  %v3742 = vmul.f32 %v3731, %v196
  %v3743 = vmul.f32 %v3734, %v196
  %v3744 = vmul.f32 %v3737, %v196
  %v3745 = vmul.f32 %v3740, %v196
  %v3746 = vsub.f32 %v3721, %v3741
  %v3747 = vsub.f32 %v3722, %v3742
  %v3748 = vsub.f32 %v3723, %v3743
  %v3749 = vsub.f32 %v3724, %v3744
  %v3750 = vsub.f32 %v3725, %v3745
  %v3751 = vmul.f32 %v3746, %v3746
  %v3752 = vmul.f32 %v3747, %v3747
  %v3753 = vmul.f32 %v3748, %v3748
  %v3754 = vmul.f32 %v3749, %v3749
  %v3755 = vmul.f32 %v3750, %v3750
  %v3756 = vsel %vm179, %v3751, 0.0
  %3757 = vadd.xlane.f32.xlu0 %v3756
  %v3758 = vpop.xlane.xlu0 %3757
  %v3759 = vsel %vm179, %v3752, 0.0
  %3760 = vadd.xlane.f32.xlu0 %v3759
  %v3761 = vpop.xlane.xlu0 %3760
  %v3762 = vsel %vm179, %v3753, 0.0
  %3763 = vadd.xlane.f32.xlu0 %v3762
  %v3764 = vpop.xlane.xlu0 %3763
  %v3765 = vsel %vm179, %v3754, 0.0
  %3766 = vadd.xlane.f32.xlu0 %v3765
  %v3767 = vpop.xlane.xlu0 %3766
  %v3768 = vsel %vm179, %v3755, 0.0
  %3769 = vadd.xlane.f32.xlu0 %v3768
  %v3770 = vpop.xlane.xlu0 %3769
  %v3771 = vmul.f32 %v3758, %v196
  %v3772 = vmul.f32 %v3761, %v196
  %v3773 = vmul.f32 %v3764, %v196
  %v3774 = vmul.f32 %v3767, %v196
  %v3775 = vmul.f32 %v3770, %v196
  %v3776 = vadd.f32 %v3771, 1e-06
  %v3777 = vadd.f32 %v3772, 1e-06
  %v3778 = vadd.f32 %v3773, 1e-06
  %v3779 = vadd.f32 %v3774, 1e-06
  %v3780 = vadd.f32 %v3775, 1e-06
  %v3781 = vrsqrt.pop %v3776
  %v3782 = vrsqrt.pop %v3777
  %v3783 = vrsqrt.pop %v3778
  %v3784 = vrsqrt.pop %v3779
  %v3785 = vrsqrt.pop %v3780
  %v3786 = vmul.f32 %v3746, %v3781
  %v3787 = vmul.f32 %v3747, %v3782
  %v3788 = vmul.f32 %v3748, %v3783
  %v3789 = vmul.f32 %v3749, %v3784
  %v3790 = vmul.f32 %v3750, %v3785
  %v3791 = vpack.c.bf16 %v3787, %v3786
  %v3792 = vpack.c.bf16 %v3789, %v3788
  %v3793 = vpack.c.bf16 %v3790, %v3790
  %v3794 = vpack.c.bf16 %v2784, %v2783
  %v3795 = vpack.c.bf16 %v2786, %v2785
  %v3797 = vsel %vm179, %v3791, 0
  %v3800 = vsel %vm179, %v3792, 0
  %v3803 = vsel %vm179, %v3793, 0
  %3805 = vmatprep.subr.bf16.mxu0 0
  %3806 = vmatpush1.bf16.msra.mxu0 0
  %3807 = vmatprep.subr.bf16.mxu0 0
  %3808 = vmatpush1.bf16.msra.mxu0 0
  %3809 = vmatprep.subr.bf16.mxu0 0
  %3810 = vmatpush1.bf16.msra.mxu0 0
  %3811 = vmatprep.subr.bf16.mxu0 0
  %3812 = vmatpush1.bf16.msra.mxu0 0
  %3813 = vmatprep.subr.bf16.mxu0 0
  %3814 = vmatpush1.bf16.msra.mxu0 0
  %3815 = vmatprep.subr.bf16.mxu0 0
  %3816 = vmatpush1.bf16.msra.mxu0 0
  %3817 = vmatprep.subr.bf16.mxu0 0
  %3818 = vmatpush1.bf16.msra.mxu0 %v3795
  %3819 = vmatprep.subr.bf16.mxu0 0
  %3820 = vmatpush1.bf16.msra.mxu0 %v3794
  %3821 = vmatprep.subr.bf16.mxu0 0
  %3822 = vmatpush2.bf16.msra.mxu0 0
  %3823 = vmatprep.subr.bf16.mxu0 0
  %3824 = vmatpush2.bf16.msra.mxu0 0
  %3825 = vmatprep.subr.bf16.mxu0 0
  %3826 = vmatpush2.bf16.msra.mxu0 0
  %3827 = vmatprep.subr.bf16.mxu0 0
  %3828 = vmatpush2.bf16.msra.mxu0 0
  %3829 = vmatprep.subr.bf16.mxu0 0
  %3830 = vmatpush2.bf16.msra.mxu0 0
  %3831 = vmatprep.subr.bf16.mxu0 0
  %3832 = vmatpush2.bf16.msra.mxu0 0
  %3833 = vmatprep.subr.bf16.mxu0 0
  %3834 = vmatpush2.bf16.msra.mxu0 0
  %3835 = vmatprep.subr.bf16.mxu0 0
  %3836 = vmatpush2.bf16.msra.mxu0 0
  %3837 = vmatprep.mubr.bf16.mxu0 0
  %3838 = vmatmul.mubr.bf16.gmra.mxu0 %v3797
  %v3839 = vpop.f32.mrf.mxu0
  %v3840 = vadd.f32 %v2791, %v3839
  %v3841 = vpop.f32.mrf.mxu0
  %v3842 = vpop.f32.mrf.mxu0
  %v3843 = vadd.f32 %v2791, %v3842
  %v3844 = vpop.f32.mrf.mxu0
  %3845 = vmatprep.mubr.bf16.mxu0 0
  %3846 = vmatmul.mubr.bf16.gmra.mxu0 %v3800
  %v3847 = vpop.f32.mrf.mxu0
  %v3848 = vadd.f32 %v2791, %v3847
  %v3849 = vpop.f32.mrf.mxu0
  %v3850 = vpop.f32.mrf.mxu0
  %v3851 = vadd.f32 %v2791, %v3850
  %v3852 = vpop.f32.mrf.mxu0
  %3853 = vmatprep.mubr.bf16.mxu0 0
  %3854 = vmatmul.mubr.bf16.gmra.mxu0 %v3803
  %v3855 = vpop.f32.mrf.mxu0
  %v3856 = vadd.f32 %v2791, %v3855
  %v3857 = vpop.f32.mrf.mxu0
  %v3858 = vpop.f32.mrf.mxu0
  %v3859 = vpop.f32.mrf.mxu0
  %3860 = vdwg.mxu0
  %v3861 = vmul.f32 %v3840, %v3840
  %v3862 = vmul.f32 %v3843, %v3843
  %v3863 = vmul.f32 %v3848, %v3848
  %v3864 = vmul.f32 %v3851, %v3851
  %v3865 = vmul.f32 %v3856, %v3856
  %v3866 = vmul.f32 %v3840, %v3861
  %v3867 = vmul.f32 %v3843, %v3862
  %v3868 = vmul.f32 %v3848, %v3863
  %v3869 = vmul.f32 %v3851, %v3864
  %v3870 = vmul.f32 %v3856, %v3865
  %v3871 = vmul.f32 %v3866, 0.044715
  %v3872 = vmul.f32 %v3867, 0.044715
  %v3873 = vmul.f32 %v3868, 0.044715
  %v3874 = vmul.f32 %v3869, 0.044715
  %v3875 = vmul.f32 %v3870, 0.044715
  %v3876 = vadd.f32 %v3840, %v3871
  %v3877 = vadd.f32 %v3843, %v3872
  %v3878 = vadd.f32 %v3848, %v3873
  %v3879 = vadd.f32 %v3851, %v3874
  %v3880 = vadd.f32 %v3856, %v3875
  %v3881 = vmul.f32 %v3876, 0.7978846
  %v3882 = vmul.f32 %v3877, 0.7978846
  %v3883 = vmul.f32 %v3878, 0.7978846
  %v3884 = vmul.f32 %v3879, 0.7978846
  %v3885 = vmul.f32 %v3880, 0.7978846
  %v3886 = vtanh.pop %v3881
  %v3887 = vtanh.pop %v3882
  %v3888 = vtanh.pop %v3883
  %v3889 = vtanh.pop %v3884
  %v3890 = vtanh.pop %v3885
  %v3891 = vadd.f32 %v3886, 1.0
  %v3892 = vadd.f32 %v3887, 1.0
  %v3893 = vadd.f32 %v3888, 1.0
  %v3894 = vadd.f32 %v3889, 1.0
  %v3895 = vadd.f32 %v3890, 1.0
  %v3896 = vmul.f32 %v3891, 0.5
  %v3897 = vmul.f32 %v3892, 0.5
  %v3898 = vmul.f32 %v3893, 0.5
  %v3899 = vmul.f32 %v3894, 0.5
  %v3900 = vmul.f32 %v3895, 0.5
  %v3901 = vmul.f32 %v3840, %v3896
  %v3902 = vmul.f32 %v3843, %v3897
  %v3903 = vmul.f32 %v3848, %v3898
  %v3904 = vmul.f32 %v3851, %v3899
  %v3905 = vmul.f32 %v3856, %v3900
  %v3906 = vld [vmem:[%s1 + $0x260] sm:$0xff]
  %v3907 = vld [vmem:[%s1 + $0x268] sm:$0xff]
  %v3908 = vld [vmem:[%s1 + $0x270] sm:$0xff]
  %v3909 = vld [vmem:[%s1 + $0x278] sm:$0xff]
  %v3910 = vld [vmem:[%s1 + $0x280] sm:$0xff]
  %v3911 = vld [vmem:[%s1 + $0x288] sm:$0xff]
  %v3912 = vld [vmem:[%s1 + $0x290] sm:$0xff]
  %v3913 = vld [vmem:[%s1 + $0x298] sm:$0xff]
  %v3914 = vld [vmem:[%s1 + $0x2a0] sm:$0xff]
  %v3915 = vld [vmem:[%s1 + $0x2a8] sm:$0xff]
  %v3916 = vld [vmem:[%s1 + $0x2b0] sm:$0xff]
  %v3917 = vld [vmem:[%s1 + $0x2b8] sm:$0xff]
  %v3918 = vld [vmem:[%s1 + $0x2c0] sm:$0xff]
  %v3919 = vld [vmem:[%s1 + $0x2c8] sm:$0xff]
  %v3920 = vld [vmem:[%s1 + $0x2d0] sm:$0xff]
  %v3921 = vld [vmem:[%s1 + $0x2d8] sm:$0xff]
  %v3922 = vpack.c.bf16 %v3902, %v3901
  %v3923 = vpack.c.bf16 %v3904, %v3903
  %v3924 = vpack.c.bf16 %v3905, %v3905
  %v3925 = vpack.c.bf16 %v3907, %v3906
  %v3926 = vpack.c.bf16 %v3909, %v3908
  %v3927 = vpack.c.bf16 %v3911, %v3910
  %v3928 = vpack.c.bf16 %v3913, %v3912
  %v3929 = vpack.c.bf16 %v3915, %v3914
  %v3930 = vpack.c.bf16 %v3917, %v3916
  %v3931 = vpack.c.bf16 %v3919, %v3918
  %v3932 = vpack.c.bf16 %v3921, %v3920
  %v3933 = vld [vmem:[%s1 + $0x2e0] sm:$0x1]
  %v3934 = vlaneseq
  %v3935 = vshrl.u32 %v3934, 7
  %v3936 = vsub.s32 0, %v3935
  %v3937 = vrot.slane %v3933, %v3936
  %3938 = vmatprep.subr.bf16.mxu0 0
  %3939 = vmatpush1.bf16.msra.mxu0 %v3932
  %3940 = vmatprep.subr.bf16.mxu0 0
  %3941 = vmatpush1.bf16.msra.mxu0 %v3931
  %3942 = vmatprep.subr.bf16.mxu0 0
  %3943 = vmatpush1.bf16.msra.mxu0 %v3930
  %3944 = vmatprep.subr.bf16.mxu0 0
  %3945 = vmatpush1.bf16.msra.mxu0 %v3929
  %3946 = vmatprep.subr.bf16.mxu0 0
  %3947 = vmatpush1.bf16.msra.mxu0 %v3928
  %3948 = vmatprep.subr.bf16.mxu0 0
  %3949 = vmatpush1.bf16.msra.mxu0 %v3927
  %3950 = vmatprep.subr.bf16.mxu0 0
  %3951 = vmatpush1.bf16.msra.mxu0 %v3926
  %3952 = vmatprep.subr.bf16.mxu0 0
  %3953 = vmatpush1.bf16.msra.mxu0 %v3925
  %3954 = vmatprep.subr.bf16.mxu0 0
  %3955 = vmatpush2.bf16.msra.mxu0 0
  %3956 = vmatprep.subr.bf16.mxu0 0
  %3957 = vmatpush2.bf16.msra.mxu0 0
  %3958 = vmatprep.subr.bf16.mxu0 0
  %3959 = vmatpush2.bf16.msra.mxu0 0
  %3960 = vmatprep.subr.bf16.mxu0 0
  %3961 = vmatpush2.bf16.msra.mxu0 0
  %3962 = vmatprep.subr.bf16.mxu0 0
  %3963 = vmatpush2.bf16.msra.mxu0 0
  %3964 = vmatprep.subr.bf16.mxu0 0
  %3965 = vmatpush2.bf16.msra.mxu0 0
  %3966 = vmatprep.subr.bf16.mxu0 0
  %3967 = vmatpush2.bf16.msra.mxu0 0
  %3968 = vmatprep.subr.bf16.mxu0 0
  %3969 = vmatpush2.bf16.msra.mxu0 0
  %3970 = vmatprep.mubr.bf16.mxu0 0
  %3971 = vmatmul.mubr.bf16.gmra.mxu0 %v3922
  %v3972 = vpop.f32.mrf.mxu0
  %v3973 = vadd.f32 %v3937, %v3972
  %v3974 = vpop.f32.mrf.mxu0
  %v3975 = vpop.f32.mrf.mxu0
  %v3976 = vadd.f32 %v3937, %v3975
  %v3977 = vpop.f32.mrf.mxu0
  %3978 = vmatprep.mubr.bf16.mxu0 0
  %3979 = vmatmul.mubr.bf16.gmra.mxu0 %v3923
  %v3980 = vpop.f32.mrf.mxu0
  %v3981 = vadd.f32 %v3937, %v3980
  %v3982 = vpop.f32.mrf.mxu0
  %v3983 = vpop.f32.mrf.mxu0
  %v3984 = vadd.f32 %v3937, %v3983
  %v3985 = vpop.f32.mrf.mxu0
  %3986 = vmatprep.mubr.bf16.mxu0 0
  %3987 = vmatmul.mubr.bf16.gmra.mxu0 %v3924
  %v3988 = vpop.f32.mrf.mxu0
  %v3989 = vadd.f32 %v3937, %v3988
  %v3990 = vpop.f32.mrf.mxu0
  %v3991 = vpop.f32.mrf.mxu0
  %v3992 = vpop.f32.mrf.mxu0
  %3993 = vdwg.mxu0
  %v3994 = vadd.f32 %v3721, %v3973
  %v3995 = vadd.f32 %v3722, %v3976
  %v3996 = vadd.f32 %v3723, %v3981
  %v3997 = vadd.f32 %v3724, %v3984
  %v3998 = vadd.f32 %v3725, %v3989
  %v3999 = vsel %vm179, %v3994, 0.0
  %4000 = vadd.xlane.f32.xlu0 %v3999
  %v4001 = vpop.xlane.xlu0 %4000
  %v4002 = vsel %vm179, %v3995, 0.0
  %4003 = vadd.xlane.f32.xlu0 %v4002
  %v4004 = vpop.xlane.xlu0 %4003
  %v4005 = vsel %vm179, %v3996, 0.0
  %4006 = vadd.xlane.f32.xlu0 %v4005
  %v4007 = vpop.xlane.xlu0 %4006
  %v4008 = vsel %vm179, %v3997, 0.0
  %4009 = vadd.xlane.f32.xlu0 %v4008
  %v4010 = vpop.xlane.xlu0 %4009
  %v4011 = vsel %vm179, %v3998, 0.0
  %4012 = vadd.xlane.f32.xlu0 %v4011
  %v4013 = vpop.xlane.xlu0 %4012
  %v4014 = vmul.f32 %v4001, %v196
  %v4015 = vmul.f32 %v4004, %v196
  %v4016 = vmul.f32 %v4007, %v196
  %v4017 = vmul.f32 %v4010, %v196
  %v4018 = vmul.f32 %v4013, %v196
  %v4019 = vsub.f32 %v3994, %v4014
  %v4020 = vsub.f32 %v3995, %v4015
  %v4021 = vsub.f32 %v3996, %v4016
  %v4022 = vsub.f32 %v3997, %v4017
  %v4023 = vsub.f32 %v3998, %v4018
  %v4024 = vmul.f32 %v4019, %v4019
  %v4025 = vmul.f32 %v4020, %v4020
  %v4026 = vmul.f32 %v4021, %v4021
  %v4027 = vmul.f32 %v4022, %v4022
  %v4028 = vmul.f32 %v4023, %v4023
  %v4029 = vsel %vm179, %v4024, 0.0
  %4030 = vadd.xlane.f32.xlu0 %v4029
  %v4031 = vpop.xlane.xlu0 %4030
  %v4032 = vsel %vm179, %v4025, 0.0
  %4033 = vadd.xlane.f32.xlu0 %v4032
  %v4034 = vpop.xlane.xlu0 %4033
  %v4035 = vsel %vm179, %v4026, 0.0
  %4036 = vadd.xlane.f32.xlu0 %v4035
  %v4037 = vpop.xlane.xlu0 %4036
  %v4038 = vsel %vm179, %v4027, 0.0
  %4039 = vadd.xlane.f32.xlu0 %v4038
  %v4040 = vpop.xlane.xlu0 %4039
  %v4041 = vsel %vm179, %v4028, 0.0
  %4042 = vadd.xlane.f32.xlu0 %v4041
  %v4043 = vpop.xlane.xlu0 %4042
  %v4044 = vmul.f32 %v4031, %v196
  %v4045 = vmul.f32 %v4034, %v196
  %v4046 = vmul.f32 %v4037, %v196
  %v4047 = vmul.f32 %v4040, %v196
  %v4048 = vmul.f32 %v4043, %v196
  %v4049 = vadd.f32 %v4044, 1e-06
  %v4050 = vadd.f32 %v4045, 1e-06
  %v4051 = vadd.f32 %v4046, 1e-06
  %v4052 = vadd.f32 %v4047, 1e-06
  %v4053 = vadd.f32 %v4048, 1e-06
  %v4054 = vrsqrt.pop %v4049
  %v4055 = vrsqrt.pop %v4050
  %v4056 = vrsqrt.pop %v4051
  %v4057 = vrsqrt.pop %v4052
  %v4058 = vrsqrt.pop %v4053
  %v4059 = vmul.f32 %v4019, %v4054
  %v4060 = vmul.f32 %v4020, %v4055
  %v4061 = vmul.f32 %v4021, %v4056
  %v4062 = vmul.f32 %v4022, %v4057
  %v4063 = vmul.f32 %v4023, %v4058
  %v4064 = vld [vmem:[%s1 + $0x88] sm:$0xff]
  %v4065 = vld [vmem:[%s1 + $0x90] sm:$0xff]
  %v4066 = vld [vmem:[%s1 + $0x98] sm:$0xff]
  %v4067 = vld [vmem:[%s1 + $0xa0] sm:$0xff]
  %v4068 = vpack.c.bf16 %v4060, %v4059
  %v4069 = vpack.c.bf16 %v4062, %v4061
  %v4070 = vpack.c.bf16 %v4063, %v4063
  %v4071 = vpack.c.bf16 %v4065, %v4064
  %v4072 = vpack.c.bf16 %v4067, %v4066
  %v4073 = vld [vmem:[%s1 + $0xa8] sm:$0x1]
  %v4074 = vlaneseq
  %v4075 = vshrl.u32 %v4074, 7
  %v4076 = vsub.s32 0, %v4075
  %v4077 = vrot.slane %v4073, %v4076
  %v4079 = vsel %vm179, %v4068, 0
  %v4082 = vsel %vm179, %v4069, 0
  %v4085 = vsel %vm179, %v4070, 0
  %4087 = vmatprep.subr.bf16.mxu0 0
  %4088 = vmatpush1.bf16.msra.mxu0 0
  %4089 = vmatprep.subr.bf16.mxu0 0
  %4090 = vmatpush1.bf16.msra.mxu0 0
  %4091 = vmatprep.subr.bf16.mxu0 0
  %4092 = vmatpush1.bf16.msra.mxu0 0
  %4093 = vmatprep.subr.bf16.mxu0 0
  %4094 = vmatpush1.bf16.msra.mxu0 0
  %4095 = vmatprep.subr.bf16.mxu0 0
  %4096 = vmatpush1.bf16.msra.mxu0 0
  %4097 = vmatprep.subr.bf16.mxu0 0
  %4098 = vmatpush1.bf16.msra.mxu0 0
  %4099 = vmatprep.subr.bf16.mxu0 0
  %4100 = vmatpush1.bf16.msra.mxu0 %v4072
  %4101 = vmatprep.subr.bf16.mxu0 0
  %4102 = vmatpush1.bf16.msra.mxu0 %v4071
  %4103 = vmatprep.subr.bf16.mxu0 0
  %4104 = vmatpush2.bf16.msra.mxu0 0
  %4105 = vmatprep.subr.bf16.mxu0 0
  %4106 = vmatpush2.bf16.msra.mxu0 0
  %4107 = vmatprep.subr.bf16.mxu0 0
  %4108 = vmatpush2.bf16.msra.mxu0 0
  %4109 = vmatprep.subr.bf16.mxu0 0
  %4110 = vmatpush2.bf16.msra.mxu0 0
  %4111 = vmatprep.subr.bf16.mxu0 0
  %4112 = vmatpush2.bf16.msra.mxu0 0
  %4113 = vmatprep.subr.bf16.mxu0 0
  %4114 = vmatpush2.bf16.msra.mxu0 0
  %4115 = vmatprep.subr.bf16.mxu0 0
  %4116 = vmatpush2.bf16.msra.mxu0 0
  %4117 = vmatprep.subr.bf16.mxu0 0
  %4118 = vmatpush2.bf16.msra.mxu0 0
  %4119 = vmatprep.mubr.bf16.mxu0 0
  %4120 = vmatmul.mubr.bf16.gmra.mxu0 %v4079
  %v4121 = vpop.f32.mrf.mxu0
  %v4122 = vadd.f32 %v4077, %v4121
  %v4123 = vpop.f32.mrf.mxu0
  %v4124 = vpop.f32.mrf.mxu0
  %v4125 = vadd.f32 %v4077, %v4124
  %v4126 = vpop.f32.mrf.mxu0
  %4127 = vmatprep.mubr.bf16.mxu0 0
  %4128 = vmatmul.mubr.bf16.gmra.mxu0 %v4082
  %v4129 = vpop.f32.mrf.mxu0
  %v4130 = vadd.f32 %v4077, %v4129
  %v4131 = vpop.f32.mrf.mxu0
  %v4132 = vpop.f32.mrf.mxu0
  %v4133 = vadd.f32 %v4077, %v4132
  %v4134 = vpop.f32.mrf.mxu0
  %4135 = vmatprep.mubr.bf16.mxu0 0
  %4136 = vmatmul.mubr.bf16.gmra.mxu0 %v4085
  %v4137 = vpop.f32.mrf.mxu0
  %v4138 = vadd.f32 %v4077, %v4137
  %v4139 = vpop.f32.mrf.mxu0
  %v4140 = vpop.f32.mrf.mxu0
  %v4141 = vpop.f32.mrf.mxu0
  %4142 = vdwg.mxu0
  %v4143 = vld [vmem:[%s1 + $0xb0] sm:$0xff]
  %v4144 = vld [vmem:[%s1 + $0xb8] sm:$0xff]
  %v4145 = vld [vmem:[%s1 + $0xc0] sm:$0xff]
  %v4146 = vld [vmem:[%s1 + $0xc8] sm:$0xff]
  %v4147 = vpack.c.bf16 %v4144, %v4143
  %v4148 = vpack.c.bf16 %v4146, %v4145
  %v4149 = vld [vmem:[%s1 + $0xd0] sm:$0x1]
  %v4150 = vlaneseq
  %v4151 = vshrl.u32 %v4150, 7
  %v4152 = vsub.s32 0, %v4151
  %v4153 = vrot.slane %v4149, %v4152
  %4154 = vmatprep.subr.bf16.mxu0 0
  %4155 = vmatpush1.bf16.msra.mxu0 0
  %4156 = vmatprep.subr.bf16.mxu0 0
  %4157 = vmatpush1.bf16.msra.mxu0 0
  %4158 = vmatprep.subr.bf16.mxu0 0
  %4159 = vmatpush1.bf16.msra.mxu0 0
  %4160 = vmatprep.subr.bf16.mxu0 0
  %4161 = vmatpush1.bf16.msra.mxu0 0
  %4162 = vmatprep.subr.bf16.mxu0 0
  %4163 = vmatpush1.bf16.msra.mxu0 0
  %4164 = vmatprep.subr.bf16.mxu0 0
  %4165 = vmatpush1.bf16.msra.mxu0 0
  %4166 = vmatprep.subr.bf16.mxu0 0
  %4167 = vmatpush1.bf16.msra.mxu0 %v4148
  %4168 = vmatprep.subr.bf16.mxu0 0
  %4169 = vmatpush1.bf16.msra.mxu0 %v4147
  %4170 = vmatprep.subr.bf16.mxu0 0
  %4171 = vmatpush2.bf16.msra.mxu0 0
  %4172 = vmatprep.subr.bf16.mxu0 0
  %4173 = vmatpush2.bf16.msra.mxu0 0
  %4174 = vmatprep.subr.bf16.mxu0 0
  %4175 = vmatpush2.bf16.msra.mxu0 0
  %4176 = vmatprep.subr.bf16.mxu0 0
  %4177 = vmatpush2.bf16.msra.mxu0 0
  %4178 = vmatprep.subr.bf16.mxu0 0
  %4179 = vmatpush2.bf16.msra.mxu0 0
  %4180 = vmatprep.subr.bf16.mxu0 0
  %4181 = vmatpush2.bf16.msra.mxu0 0
  %4182 = vmatprep.subr.bf16.mxu0 0
  %4183 = vmatpush2.bf16.msra.mxu0 0
  %4184 = vmatprep.subr.bf16.mxu0 0
  %4185 = vmatpush2.bf16.msra.mxu0 0
  %4186 = vmatprep.mubr.bf16.mxu0 0
  %4187 = vmatmul.mubr.bf16.gmra.mxu0 %v4079
  %v4188 = vpop.f32.mrf.mxu0
  %v4189 = vpop.f32.mrf.mxu0
  %v4190 = vpop.f32.mrf.mxu0
  %v4191 = vpop.f32.mrf.mxu0
  %4192 = vmatprep.mubr.bf16.mxu0 0
  %4193 = vmatmul.mubr.bf16.gmra.mxu0 %v4082
  %v4194 = vpop.f32.mrf.mxu0
  %v4195 = vadd.f32 %v4153, %v4194
  %v4196 = vpop.f32.mrf.mxu0
  %v4197 = vpop.f32.mrf.mxu0
  %v4198 = vpop.f32.mrf.mxu0
  %4199 = vmatprep.mubr.bf16.mxu0 0
  %4200 = vmatmul.mubr.bf16.gmra.mxu0 %v4085
  %v4201 = vpop.f32.mrf.mxu0
  %v4202 = vadd.f32 %v4153, %v4201
  %v4203 = vpop.f32.mrf.mxu0
  %v4204 = vpop.f32.mrf.mxu0
  %v4205 = vpop.f32.mrf.mxu0
  %4206 = vdwg.mxu0
  %v4207 = vmul.f32 %v4122, %v4122
  %v4208 = vmul.f32 %v4125, %v4125
  %v4209 = vmul.f32 %v4130, %v4130
  %v4210 = vmul.f32 %v4133, %v4133
  %v4211 = vmul.f32 %v4138, %v4138
  %v4212 = vsel %vm179, %v4207, 0.0
  %4213 = vadd.xlane.f32.xlu0 %v4212
  %v4214 = vpop.xlane.xlu0 %4213
  %v4215 = vsel %vm179, %v4208, 0.0
  %4216 = vadd.xlane.f32.xlu0 %v4215
  %v4217 = vpop.xlane.xlu0 %4216
  %v4218 = vsel %vm179, %v4209, 0.0
  %4219 = vadd.xlane.f32.xlu0 %v4218
  %v4220 = vpop.xlane.xlu0 %4219
  %v4221 = vsel %vm179, %v4210, 0.0
  %4222 = vadd.xlane.f32.xlu0 %v4221
  %v4223 = vpop.xlane.xlu0 %4222
  %v4224 = vsel %vm179, %v4211, 0.0
  %4225 = vadd.xlane.f32.xlu0 %v4224
  %v4226 = vpop.xlane.xlu0 %4225
  %v4227 = vrsqrt.pop %v4214
  %v4228 = vrsqrt.pop %v4217
  %v4229 = vrsqrt.pop %v4220
  %v4230 = vrsqrt.pop %v4223
  %v4231 = vrsqrt.pop %v4226
  %v4232 = vmul.f32 %v4122, %v4227
  %v4233 = vmul.f32 %v4125, %v4228
  %v4234 = vmul.f32 %v4130, %v4229
  %v4235 = vmul.f32 %v4133, %v4230
  %v4236 = vmul.f32 %v4138, %v4231
  %v4237 = vmul.f32 %v4195, %v4195
  %v4238 = vmul.f32 %v4202, %v4202
  %v4239 = vsel %vm179, %v4237, 0.0
  %4240 = vadd.xlane.f32.xlu0 %v4239
  %v4241 = vpop.xlane.xlu0 %4240
  %v4242 = vsel %vm179, %v4238, 0.0
  %4243 = vadd.xlane.f32.xlu0 %v4242
  %v4244 = vpop.xlane.xlu0 %4243
  %v4245 = vrsqrt.pop %v4241
  %v4246 = vrsqrt.pop %v4244
  %v4247 = vmul.f32 %v4195, %v4245
  %v4248 = vmul.f32 %v4202, %v4246
  %v4249 = vld [vmem:[%s3] sm:$0xf]
  %v4250 = vld [vmem:[%s3 + $0x4] sm:$0xf]
  %v4251 = vld [vmem:[%s4] sm:$0xff]
  %v4252 = vld [vmem:[%s4 + $0x8] sm:$0xff]
  %v4253 = vld [vmem:[%s4 + $0x10] sm:$0xff]
  %v4254 = vld [vmem:[%s4 + $0x18] sm:$0xff]
  %v4255 = vpack.c.bf16 %v4247, %v4247
  %v4256 = vpack.c.bf16 %v4233, %v4232
  %v4258 = vsel %vm179, %v4255, 0
  %v4261 = vsel %vm179, %v4256, 0
  %4263 = vmatprep.subr.bf16.mxu0 0
  %4264 = vmatpush1.bf16.xpose.msra.mxu0 0
  %4265 = vmatprep.subr.bf16.mxu0 0
  %4266 = vmatpush1.bf16.xpose.msra.mxu0 0
  %4267 = vmatprep.subr.bf16.mxu0 0
  %4268 = vmatpush1.bf16.xpose.msra.mxu0 0
  %4269 = vmatprep.subr.bf16.mxu0 0
  %4270 = vmatpush1.bf16.xpose.msra.mxu0 0
  %4271 = vmatprep.subr.bf16.mxu0 0
  %4272 = vmatpush1.bf16.xpose.msra.mxu0 0
  %4273 = vmatprep.subr.bf16.mxu0 0
  %4274 = vmatpush1.bf16.xpose.msra.mxu0 0
  %4275 = vmatprep.subr.bf16.mxu0 0
  %4276 = vmatpush1.bf16.xpose.msra.mxu0 0
  %4277 = vmatprep.subr.bf16.mxu0 0
  %4278 = vmatpush1.bf16.xpose.msra.mxu0 %v4261
  %4279 = vmatprep.subr.bf16.mxu0 0
  %4280 = vmatpush2.bf16.xpose.msra.mxu0 0
  %4281 = vmatprep.subr.bf16.mxu0 0
  %4282 = vmatpush2.bf16.xpose.msra.mxu0 0
  %4283 = vmatprep.subr.bf16.mxu0 0
  %4284 = vmatpush2.bf16.xpose.msra.mxu0 0
  %4285 = vmatprep.subr.bf16.mxu0 0
  %4286 = vmatpush2.bf16.xpose.msra.mxu0 0
  %4287 = vmatprep.subr.bf16.mxu0 0
  %4288 = vmatpush2.bf16.xpose.msra.mxu0 0
  %4289 = vmatprep.subr.bf16.mxu0 0
  %4290 = vmatpush2.bf16.xpose.msra.mxu0 0
  %4291 = vmatprep.subr.bf16.mxu0 0
  %4292 = vmatpush2.bf16.xpose.msra.mxu0 0
  %4293 = vmatprep.subr.bf16.mxu0 0
  %4294 = vmatpush2.bf16.xpose.msra.mxu0 0
  %4295 = vmatprep.mubr.bf16.mxu0 0
  %4296 = vmatmul.mubr.bf16.gmra.mxu0 %v4258
  %v4297 = vpop.f32.mrf.mxu0
  %v4298 = vadd.f32 0.0, %v4297
  %v4299 = vpop.f32.mrf.mxu0
  %v4300 = vpop.f32.mrf.mxu0
  %v4301 = vpop.f32.mrf.mxu0
  %4302 = vdwg.mxu0
  %vm4303 = vcmask 125952
  %v4304 = vsel %vm4303, %v4298, 0.0
  %v4305 = vrot.slane %v4304, 4
  %v4306 = vadd.f32 %v4304, %v4305
  %v4307 = vrot.slane %v4306, 2
  %v4308 = vadd.f32 %v4306, %v4307
  %v4309 = vrot.slane %v4308, 1
  %v4310 = vadd.f32 %v4308, %v4309
  %v4311 = vrcp.pop 4.0
  %v4312 = vmul.f32 %v4310, %v4311
  %v4313 = vsub.f32 %v4298, %v4312
  %v4314 = vmul.f32 %v4313, %v4313
  %v4315 = vsel %vm4303, %v4314, 0.0
  %v4316 = vrot.slane %v4315, 4
  %v4317 = vadd.f32 %v4315, %v4316
  %v4318 = vrot.slane %v4317, 2
  %v4319 = vadd.f32 %v4317, %v4318
  %v4320 = vrot.slane %v4319, 1
  %v4321 = vadd.f32 %v4319, %v4320
  %v4322 = vmul.f32 %v4321, %v4311
  %v4323 = vadd.f32 %v4322, 1e-06
  %v4324 = vrsqrt.pop %v4323
  %v4325 = vmul.f32 %v4313, %v4324
  %4327 = vset.pattern.permute.xlu0 0
  %4328 = vperm.xlu0 %4327, %v4249
  %v4329 = vpop.permute.xlu0 %4328
  %v4331 = vmul.f32 %v4325, %v4329
  %4333 = vset.pattern.permute.xlu0 0
  %4334 = vperm.xlu0 %4333, %v4250
  %v4335 = vpop.permute.xlu0 %4334
  %v4337 = vadd.f32 %v4331, %v4335
  %v4338 = vpack.c.bf16 %v4337, %v4337
  %v4339 = vpack.c.bf16 %v4253, %v4251
  %v4340 = vpack.c.bf16 %v4254, %v4252
  %v4342 = vsel %vm325, %v4338, 0
  %4344 = vmatprep.subr.bf16.mxu0 0
  %4345 = vmatpush1.bf16.msra.mxu0 0
  %4346 = vmatprep.subr.bf16.mxu0 0
  %4347 = vmatpush1.bf16.msra.mxu0 0
  %4348 = vmatprep.subr.bf16.mxu0 0
  %4349 = vmatpush1.bf16.msra.mxu0 0
  %4350 = vmatprep.subr.bf16.mxu0 0
  %4351 = vmatpush1.bf16.msra.mxu0 0
  %4352 = vmatprep.subr.bf16.mxu0 0
  %4353 = vmatpush1.bf16.msra.mxu0 0
  %4354 = vmatprep.subr.bf16.mxu0 0
  %4355 = vmatpush1.bf16.msra.mxu0 0
  %4356 = vmatprep.subr.bf16.mxu0 0
  %4357 = vmatpush1.bf16.msra.mxu0 0
  %4358 = vmatprep.subr.bf16.mxu0 %v4340
  %4359 = vmatpush1.bf16.msra.mxu0 %v4339
  %4360 = vmatprep.subr.bf16.mxu0 0
  %4361 = vmatpush2.bf16.msra.mxu0 0
  %4362 = vmatprep.subr.bf16.mxu0 0
  %4363 = vmatpush2.bf16.msra.mxu0 0
  %4364 = vmatprep.subr.bf16.mxu0 0
  %4365 = vmatpush2.bf16.msra.mxu0 0
  %4366 = vmatprep.subr.bf16.mxu0 0
  %4367 = vmatpush2.bf16.msra.mxu0 0
  %4368 = vmatprep.subr.bf16.mxu0 0
  %4369 = vmatpush2.bf16.msra.mxu0 0
  %4370 = vmatprep.subr.bf16.mxu0 0
  %4371 = vmatpush2.bf16.msra.mxu0 0
  %4372 = vmatprep.subr.bf16.mxu0 0
  %4373 = vmatpush2.bf16.msra.mxu0 0
  %4374 = vmatprep.subr.bf16.mxu0 0
  %4375 = vmatpush2.bf16.msra.mxu0 0
  %4376 = vmatprep.mubr.bf16.mxu0 0
  %4377 = vmatmul.mubr.bf16.gmra.mxu0 %v4342
  %v4378 = vpop.f32.mrf.mxu0
  %v4379 = vadd.f32 0.0, %v4378
  %v4380 = vpop.f32.mrf.mxu0
  %v4381 = vadd.f32 0.0, %v4380
  %v4382 = vpop.f32.mrf.mxu0
  %v4383 = vpop.f32.mrf.mxu0
  %4384 = vdwg.mxu0
  %v4387 = vcombine.low %v4379, %v4381
  %4389 = vst [vmem:[%s5] sm:$0xff] %v4387
  %v4390 = vpack.c.bf16 %v4248, %v4248
  %v4391 = vpack.c.bf16 %v4235, %v4234
  %v4392 = vpack.c.bf16 %v4236, %v4236
  %v4394 = vrot.slane %v4390, 2
  %v4397 = vrot.slane %v4391, 2
  %v4398 = vrot.slane %v4392, 2
  %v4399 = vsel %vm3280, %v4397, %v4398
  %v4401 = vsel %vm179, %v4394, 0
  %v4404 = vsel %vm179, %v4399, 0
  %4406 = vmatprep.subr.bf16.mxu0 0
  %4407 = vmatpush1.bf16.xpose.msra.mxu0 0
  %4408 = vmatprep.subr.bf16.mxu0 0
  %4409 = vmatpush1.bf16.xpose.msra.mxu0 0
  %4410 = vmatprep.subr.bf16.mxu0 0
  %4411 = vmatpush1.bf16.xpose.msra.mxu0 0
  %4412 = vmatprep.subr.bf16.mxu0 0
  %4413 = vmatpush1.bf16.xpose.msra.mxu0 0
  %4414 = vmatprep.subr.bf16.mxu0 0
  %4415 = vmatpush1.bf16.xpose.msra.mxu0 0
  %4416 = vmatprep.subr.bf16.mxu0 0
  %4417 = vmatpush1.bf16.xpose.msra.mxu0 0
  %4418 = vmatprep.subr.bf16.mxu0 0
  %4419 = vmatpush1.bf16.xpose.msra.mxu0 0
  %4420 = vmatprep.subr.bf16.mxu0 0
  %4421 = vmatpush1.bf16.xpose.msra.mxu0 %v4404
  %4422 = vmatprep.subr.bf16.mxu0 0
  %4423 = vmatpush2.bf16.xpose.msra.mxu0 0
  %4424 = vmatprep.subr.bf16.mxu0 0
  %4425 = vmatpush2.bf16.xpose.msra.mxu0 0
  %4426 = vmatprep.subr.bf16.mxu0 0
  %4427 = vmatpush2.bf16.xpose.msra.mxu0 0
  %4428 = vmatprep.subr.bf16.mxu0 0
  %4429 = vmatpush2.bf16.xpose.msra.mxu0 0
  %4430 = vmatprep.subr.bf16.mxu0 0
  %4431 = vmatpush2.bf16.xpose.msra.mxu0 0
  %4432 = vmatprep.subr.bf16.mxu0 0
  %4433 = vmatpush2.bf16.xpose.msra.mxu0 0
  %4434 = vmatprep.subr.bf16.mxu0 0
  %4435 = vmatpush2.bf16.xpose.msra.mxu0 0
  %4436 = vmatprep.subr.bf16.mxu0 0
  %4437 = vmatpush2.bf16.xpose.msra.mxu0 0
  %4438 = vmatprep.mubr.bf16.mxu0 0
  %4439 = vmatmul.mubr.bf16.gmra.mxu0 %v4401
  %v4440 = vpop.f32.mrf.mxu0
  %v4441 = vadd.f32 0.0, %v4440
  %v4442 = vpop.f32.mrf.mxu0
  %v4443 = vpop.f32.mrf.mxu0
  %v4444 = vpop.f32.mrf.mxu0
  %4445 = vdwg.mxu0
  %v4446 = vsel %vm4303, %v4441, 0.0
  %v4447 = vrot.slane %v4446, 4
  %v4448 = vadd.f32 %v4446, %v4447
  %v4449 = vrot.slane %v4448, 2
  %v4450 = vadd.f32 %v4448, %v4449
  %v4451 = vrot.slane %v4450, 1
  %v4452 = vadd.f32 %v4450, %v4451
  %v4453 = vmul.f32 %v4452, %v4311
  %v4454 = vsub.f32 %v4441, %v4453
  %v4455 = vmul.f32 %v4454, %v4454
  %v4456 = vsel %vm4303, %v4455, 0.0
  %v4457 = vrot.slane %v4456, 4
  %v4458 = vadd.f32 %v4456, %v4457
  %v4459 = vrot.slane %v4458, 2
  %v4460 = vadd.f32 %v4458, %v4459
  %v4461 = vrot.slane %v4460, 1
  %v4462 = vadd.f32 %v4460, %v4461
  %v4463 = vmul.f32 %v4462, %v4311
  %v4464 = vadd.f32 %v4463, 1e-06
  %v4465 = vrsqrt.pop %v4464
  %v4466 = vmul.f32 %v4454, %v4465
  %v4467 = vmul.f32 %v4466, %v4329
  %v4468 = vadd.f32 %v4467, %v4335
  %v4469 = vpack.c.bf16 %v4468, %v4468
  %v4471 = vsel %vm325, %v4469, 0
  %4473 = vmatprep.subr.bf16.mxu0 0
  %4474 = vmatpush1.bf16.msra.mxu0 0
  %4475 = vmatprep.subr.bf16.mxu0 0
  %4476 = vmatpush1.bf16.msra.mxu0 0
  %4477 = vmatprep.subr.bf16.mxu0 0
  %4478 = vmatpush1.bf16.msra.mxu0 0
  %4479 = vmatprep.subr.bf16.mxu0 0
  %4480 = vmatpush1.bf16.msra.mxu0 0
  %4481 = vmatprep.subr.bf16.mxu0 0
  %4482 = vmatpush1.bf16.msra.mxu0 0
  %4483 = vmatprep.subr.bf16.mxu0 0
  %4484 = vmatpush1.bf16.msra.mxu0 0
  %4485 = vmatprep.subr.bf16.mxu0 0
  %4486 = vmatpush1.bf16.msra.mxu0 0
  %4487 = vmatprep.subr.bf16.mxu0 %v4340
  %4488 = vmatpush1.bf16.msra.mxu0 %v4339
  %4489 = vmatprep.subr.bf16.mxu0 0
  %4490 = vmatpush2.bf16.msra.mxu0 0
  %4491 = vmatprep.subr.bf16.mxu0 0
  %4492 = vmatpush2.bf16.msra.mxu0 0
  %4493 = vmatprep.subr.bf16.mxu0 0
  %4494 = vmatpush2.bf16.msra.mxu0 0
  %4495 = vmatprep.subr.bf16.mxu0 0
  %4496 = vmatpush2.bf16.msra.mxu0 0
  %4497 = vmatprep.subr.bf16.mxu0 0
  %4498 = vmatpush2.bf16.msra.mxu0 0
  %4499 = vmatprep.subr.bf16.mxu0 0
  %4500 = vmatpush2.bf16.msra.mxu0 0
  %4501 = vmatprep.subr.bf16.mxu0 0
  %4502 = vmatpush2.bf16.msra.mxu0 0
  %4503 = vmatprep.subr.bf16.mxu0 0
  %4504 = vmatpush2.bf16.msra.mxu0 0
  %4505 = vmatprep.mubr.bf16.mxu0 0
  %4506 = vmatmul.mubr.bf16.gmra.mxu0 %v4471
  %v4507 = vpop.f32.mrf.mxu0
  %v4508 = vadd.f32 0.0, %v4507
  %v4509 = vpop.f32.mrf.mxu0
  %v4510 = vadd.f32 0.0, %v4509
  %v4511 = vpop.f32.mrf.mxu0
  %v4512 = vpop.f32.mrf.mxu0
  %4513 = vdwg.mxu0
  %v4516 = vcombine.low %v4508, %v4510
  %s4518 = scalar_lea.vmem %s5, 8
  %4519 = vst [vmem:[%s4518] sm:$0xff] %v4516
  // Predicated region
  $region22: #{segmenter_forward.1} parent=0 // pred_check
    _
  $region23: #{segmenter_forward.1} parent=0 // pred_check_branch
    %4521 = sbr.rel (0) target = $region25
  $region24: #{segmenter_forward.1} parent=0 // pred_region
    _
  $region25: #{segmenter_forward.1} parent=0 // pred_fallthru
    _
  // Predicated region
  $region26: #{segmenter_forward.1} parent=0 // pred_check
    _
  $region27: #{segmenter_forward.1} parent=0 // pred_check_branch
    %4523 = sbr.rel (0) target = $region29
  $region28: #{segmenter_forward.1} parent=0 // pred_region
    _
  $region29: #{segmenter_forward.1} parent=0 // pred_fallthru
    _

</llo_original>
